<compile_context>
chip_gen: v5e
topology: v5e:2x2
jax: 0.10.0
libtpu: 0.0.40
codegen_flags: <defaults>
</compile_context>

<pallas_src>
import jax
import jax.numpy as jnp
from jax.experimental import pallas as pl
from jax.experimental.pallas import tpu as pltpu

# ----------------------------- sizes ---------------------------------------
B = 2            # batch
L = 16           # max_doc_len
WORD_DIM = 16    # word embedding dim (vec.npy columns)
COREF_DIM = 4    # coref_dim
NER_DIM = 4      # pos_dim (entity type size)
INPUT_SIZE = WORD_DIM + COREF_DIM + NER_DIM
H = 32           # hidden_dim
M_NODES = 4      # mention nodes per doc
E_NODES = 3      # entity nodes per doc
S_NODES = 2      # MDP (sdp) nodes per doc
N_NODES = M_NODES + E_NODES + S_NODES
R = 8            # relation pairs per doc (h_t_limit)
DIS_SIZE = 20
RELATION_NUM = 97
OUT_PAD = 128    # lane-dense padded classifier width (97 -> 128)
VOCAB = 50
MAX_LENGTH = 512
NUM_DEPENDENCY = 6
PAIR_DIM = H + DIS_SIZE


# --------------------------- fused Pallas kernel ----------------------------
def _lsr_fused_kernel(
    # per-document (batched) inputs
    sent_ref,        # (1, L, INPUT_SIZE) f32
    smask_ref,       # (1, L, L)          i32
    nodes_ref,       # (1, N_NODES, L)    f32  [mention | entity | sdp]
    ht_ref,          # (1, 2R, L)         f32  [h_mapping ; t_mapping]
    dis_ref,         # (1, 2R, DIS_SIZE)  f32  [dis_h ; dis_t] embeddings
    rmask_ref,       # (1, 1, R)          f32
    # shared weights
    enc_w_ref, enc_b_ref,            # (IN, 2H), (1, 2H)
    re_w_ref, re_b_ref,              # (2H, H), (1, H)
    dep_a_ref, dep_bt_ref,           # (6, H), (H, 6)
    r1_wqk_ref, r1_wg_ref, r1_bg_ref,  # (H, H), (H, H), (1, H)
    r2_wqk_ref, r2_wg_ref, r2_bg_ref,  # (H, H), (H, H), (1, H)
    bili_wt_ref, bili_b_ref,         # (H, PAIR_DIM, PAIR_DIM), (1, H)
    att_win_ref, att_scale_ref,      # (1, H), (1, H)
    out_w_ref, out_b_ref,            # (2H, OUT_PAD), (1, OUT_PAD)
    # output
    o_ref,                           # (1, R, OUT_PAD)
):
    f32 = jnp.float32

    # ---- doc encoder ---------------------------------------------------
    # TODO(synk): BiLSTM doc_encoder replaced by shared linear + tanh projection.
    sent = sent_ref[0]                                             # (L, IN)
    docs = jnp.tanh(
        jnp.dot(sent, enc_w_ref[...], preferred_element_type=f32) + enc_b_ref[...])
    ctx = jnp.maximum(
        jnp.dot(docs, re_w_ref[...], preferred_element_type=f32) + re_b_ref[...],
        0.0)                                                       # (L, H)

    # ---- pairwise structure score (algebraic rewrite, no (L,L,2H) tensor) ----
    # s1[x,y] = dot(ctx[y], dep_embd[m[x,y], :H]) ; s2[x,y] = dot(ctx[x], dep_embd[m[x,y], H:])
    ta = jnp.dot(dep_a_ref[...], ctx.T, preferred_element_type=f32)   # (6, L): ta[d, y]
    tb = jnp.dot(ctx, dep_bt_ref[...], preferred_element_type=f32)    # (L, 6): tb[x, d]
    mask2d = smask_ref[0]                                             # (L, L) int32
    s_sum = jnp.zeros((mask2d.shape[0], mask2d.shape[1]), f32)
    for d in range(NUM_DEPENDENCY):                                   # static unroll (6)
        sel = (mask2d == d)
        s_sum = s_sum + jnp.where(sel, ta[d:d + 1, :] + tb[:, d:d + 1], 0.0)
    ctx = ctx + jnp.mean(s_sum, axis=1, keepdims=True)                # (L, H) + (L, 1)

    # ---- node projections (single matmul over stacked node positions) ----
    all_pos = nodes_ref[0]                                            # (N, L)
    node_rep = jnp.dot(all_pos, ctx, preferred_element_type=f32)      # (N, H)

    # ---- 2 reasoner layers -------------------------------------------------
    # TODO(synk): DynamicReasoner (matrix-tree StructInduction + GCN) simplified
    # to an attention-induced-adjacency GCN layer; Wq @ Wk^T folded offline.
    inv_sqrt_h = 1.0 / jnp.sqrt(jnp.float32(H))

    def reasoner(x, wqk_ref, wg_ref, bg_ref):
        att = jnp.dot(jnp.dot(x, wqk_ref[...], preferred_element_type=f32), x.T,
                      preferred_element_type=f32) * inv_sqrt_h        # (N, N)
        att = att - jnp.max(att, axis=-1, keepdims=True)
        w = jnp.exp(att)
        w = w * pl.reciprocal(jnp.sum(w, axis=-1, keepdims=True), approx=True)
        g = jnp.dot(x, wg_ref[...], preferred_element_type=f32) + bg_ref[...]
        return jnp.maximum(jnp.dot(w, g, preferred_element_type=f32), 0.0)

    node_out = reasoner(node_rep, r1_wqk_ref, r1_wg_ref, r1_bg_ref)
    node_out = reasoner(node_out, r2_wqk_ref, r2_wg_ref, r2_bg_ref)

    # ---- project mention nodes back onto the document, residual add --------
    mention_pos = all_pos[:M_NODES]                                   # (M, L)
    out_m = node_out[:M_NODES]                                        # (M, H)
    ctx = ctx + jnp.dot(mention_pos.T, out_m, preferred_element_type=f32)  # (L, H)

    # ---- head / tail span pooling (h and t stacked on the row axis) --------
    spans = jnp.dot(ht_ref[0], ctx, preferred_element_type=f32)       # (2R, H)
    pair = jnp.concatenate([spans, dis_ref[0]], axis=-1)              # (2R, PAIR_DIM)
    s_pair = pair[:R]                                                 # (R, D)
    t_pair = pair[R:]                                                 # (R, D)

    # ---- bilinear pair scorer (one batched contraction, no per-k loop) -----
    # y[r,k] = sum_{i,j} s[r,i] W[k,i,j] t[r,j] + b[k];  bili_wt[k,j,i] = W[k,i,j]
    s_b = jnp.broadcast_to(s_pair[None, :, :], (H, R, PAIR_DIM))
    v = jnp.einsum("bqd,bkd->bqk", s_b, bili_wt_ref[...],
                   preferred_element_type=f32)                        # (H, R, D)
    y = jnp.sum(v * t_pair[None, :, :], axis=-1)                      # (H, R)
    re_rep = jnp.maximum(y.T + bili_b_ref[...], 0.0)                  # (R, H)

    # ---- self-attention over relation pairs --------------------------------
    rmask = rmask_ref[0]                                              # (1, R)
    idot = jnp.sum(re_rep * att_win_ref[...], axis=-1, keepdims=True)  # (R, 1) VPU
    cross = jnp.dot(re_rep * att_scale_ref[...], re_rep.T,
                    preferred_element_type=f32)                       # (R, R)
    att = idot + cross - 1e30 * (1.0 - rmask)
    att = att - jnp.max(att, axis=-1, keepdims=True)
    w = jnp.exp(att)
    w = w * pl.reciprocal(jnp.sum(w, axis=-1, keepdims=True), approx=True)
    att_out = jnp.dot(w, re_rep, preferred_element_type=f32)          # (R, H)

    # ---- classifier: cat([x, att_out]) @ W == x @ W[:H] + att_out @ W[H:] ---
    w_all = out_w_ref[...]                                            # (2H, OUT_PAD)
    logits = (jnp.dot(re_rep, w_all[:H], preferred_element_type=f32)
              + jnp.dot(att_out, w_all[H:], preferred_element_type=f32)
              + out_b_ref[...])                                       # (R, OUT_PAD)
    o_ref[0] = logits


def lsr_fused_call(sent_emb, structure_mask, all_node_pos, ht_map, dis_pair,
                   rel_mask, enc_w, enc_b, re_w, re_b, dep_a, dep_bt,
                   r1_wqk, r1_wg, r1_bg, r2_wqk, r2_wg, r2_bg,
                   bili_wt, bili_b, att_win, att_scale, out_w_pad, out_b_pad):
    batch = sent_emb.shape[0]

    def batch3(shape):
        return pl.BlockSpec(shape, lambda i: (i, 0, 0))

    def const2(shape):
        return pl.BlockSpec(shape, lambda i: (0, 0))

    def const3(shape):
        return pl.BlockSpec(shape, lambda i: (0, 0, 0))

    in_specs = [
        batch3((1, L, INPUT_SIZE)),
        batch3((1, L, L)),
        batch3((1, N_NODES, L)),
        batch3((1, 2 * R, L)),
        batch3((1, 2 * R, DIS_SIZE)),
        batch3((1, 1, R)),
        const2((INPUT_SIZE, 2 * H)), const2((1, 2 * H)),
        const2((2 * H, H)), const2((1, H)),
        const2((NUM_DEPENDENCY, H)), const2((H, NUM_DEPENDENCY)),
        const2((H, H)), const2((H, H)), const2((1, H)),
        const2((H, H)), const2((H, H)), const2((1, H)),
        const3((H, PAIR_DIM, PAIR_DIM)), const2((1, H)),
        const2((1, H)), const2((1, H)),
        const2((2 * H, OUT_PAD)), const2((1, OUT_PAD)),
    ]

    out = pl.pallas_call(
        _lsr_fused_kernel,
        out_shape=jax.ShapeDtypeStruct((batch, R, OUT_PAD), jnp.float32),
        grid=(batch,),
        in_specs=in_specs,
        out_specs=pl.BlockSpec((1, R, OUT_PAD), lambda i: (i, 0, 0)),
        compiler_params=pltpu.CompilerParams(dimension_semantics=("parallel",)),
    )(sent_emb, structure_mask, all_node_pos, ht_map, dis_pair, rel_mask,
      enc_w, enc_b, re_w, re_b, dep_a, dep_bt,
      r1_wqk, r1_wg, r1_bg, r2_wqk, r2_wg, r2_bg,
      bili_wt, bili_b, att_win, att_scale, out_w_pad, out_b_pad)
    return out[:, :, :RELATION_NUM]   # strip lane padding (97 of 128)


# ------------------------------ parameters ----------------------------------
def init_params(key):
    keys = jax.random.split(key, 24)
    kit = iter(keys)

    def rnd(shape, scale=0.1):
        return jax.random.normal(next(kit), shape, jnp.float32) * scale

    word_emb = rnd((VOCAB, WORD_DIM))
    coref_emb = rnd((MAX_LENGTH, COREF_DIM)).at[0].set(0.0)       # padding_idx=0
    ner_emb = rnd((13, NER_DIM)).at[0].set(0.0)                   # padding_idx=0
    dis_emb = rnd((20, DIS_SIZE)).at[10].set(0.0)                 # padding_idx=10

    # TODO(synk): parameters of the BiLSTM Encoder replaced by a linear projection.
    enc_w = rnd((INPUT_SIZE, 2 * H))
    enc_b = jnp.zeros((1, 2 * H), jnp.float32)

    re_w = rnd((2 * H, H))
    re_b = jnp.zeros((1, H), jnp.float32)

    dep_embd = rnd((NUM_DEPENDENCY, 2 * H))                       # xavier-like init

    reasoners = []
    for _ in range(2):
        reasoners.append((rnd((H, H)), rnd((H, H)), rnd((H, H)),
                          jnp.zeros((1, H), jnp.float32)))

    bili_w = rnd((H, PAIR_DIM, PAIR_DIM))
    bili_b = jnp.zeros((1, H), jnp.float32)

    att_w_in = rnd((H, 1))
    att_scale = rnd((1, H))

    out_w = rnd((2 * H, RELATION_NUM))
    out_b = jnp.zeros((1, RELATION_NUM), jnp.float32)

    return dict(word_emb=word_emb, coref_emb=coref_emb, ner_emb=ner_emb,
                dis_emb=dis_emb, enc_w=enc_w, enc_b=enc_b, re_w=re_w, re_b=re_b,
                dep_embd=dep_embd, reasoners=reasoners, bili_w=bili_w,
                bili_b=bili_b, att_w_in=att_w_in, att_scale=att_scale,
                out_w=out_w, out_b=out_b)


# ------------------------------ forward pass ---------------------------------
def lsr_forward(params, context_idxs, pos, context_ner, h_mapping, t_mapping,
                relation_mask, dis_h_2_t, dis_t_2_h, context_seg,
                mention_node_position, entity_position, sdp_pos, structure_mask):
    p = params
    f32 = jnp.float32

    # TODO(synk): doc_encoder (per-sentence BiLSTM, uses context_seg) replaced by a
    # shared linear+tanh projection inside the fused kernel; context_seg unused.
    del context_seg

    # token embeddings (gather glue, stays in XLA)
    sent_emb = jnp.concatenate(
        [jnp.take(p["word_emb"], context_idxs, axis=0),
         jnp.take(p["coref_emb"], pos, axis=0),
         jnp.take(p["ner_emb"], context_ner, axis=0)], axis=-1)   # (B, L, INPUT_SIZE)

    # TODO(synk): fixed (M, E, S) node counts per batch element (no pad_sequence).
    all_node_pos = jnp.concatenate(
        [mention_node_position, entity_position, sdp_pos], axis=1)   # (B, N, L)
    ht_map = jnp.concatenate([h_mapping, t_mapping], axis=1)         # (B, 2R, L)
    dis_pair = jnp.concatenate(
        [jnp.take(p["dis_emb"], dis_h_2_t, axis=0),
         jnp.take(p["dis_emb"], dis_t_2_h, axis=0)], axis=1)         # (B, 2R, 20)
    rel_mask = relation_mask[:, None, :].astype(f32)                 # (B, 1, R)

    # weight preparation (one-time algebraic folds)
    dep_a = p["dep_embd"][:, :H]                                     # (6, H)
    dep_bt = jnp.transpose(p["dep_embd"][:, H:])                     # (H, 6)

    (wq1, wk1, wg1, bg1), (wq2, wk2, wg2, bg2) = p["reasoners"]
    r1_wqk = jnp.dot(wq1, wk1.T)                                     # (H, H)
    r2_wqk = jnp.dot(wq2, wk2.T)

    bili_wt = jnp.transpose(p["bili_w"], (0, 2, 1))                  # Wt[k,j,i] = W[k,i,j]
    att_win_row = p["att_w_in"].reshape(1, H)

    out_w_pad = jnp.zeros((2 * H, OUT_PAD), f32).at[:, :RELATION_NUM].set(p["out_w"])
    out_b_pad = jnp.zeros((1, OUT_PAD), f32).at[:, :RELATION_NUM].set(p["out_b"])

    return lsr_fused_call(
        sent_emb, structure_mask.astype(jnp.int32), all_node_pos, ht_map,
        dis_pair, rel_mask,
        p["enc_w"], p["enc_b"], p["re_w"], p["re_b"], dep_a, dep_bt,
        r1_wqk, wg1, bg1, r2_wqk, wg2, bg2,
        bili_wt, p["bili_b"], att_win_row, p["att_scale"],
        out_w_pad, out_b_pad)                                        # (B, R, 97)


# ---------------------------------- main -------------------------------------
if __name__ == "__main__":
    key = jax.random.PRNGKey(0)
    pkey, ikey = jax.random.split(key)
    params = init_params(pkey)

    ks = jax.random.split(ikey, 12)
    context_idxs = jax.random.randint(ks[0], (B, L), 0, VOCAB)
    pos = jax.random.randint(ks[1], (B, L), 0, MAX_LENGTH)
    context_ner = jax.random.randint(ks[2], (B, L), 0, 13)
    structure_mask = jax.random.randint(ks[3], (B, L, L), 0, NUM_DEPENDENCY)
    context_seg = jnp.zeros((B, L), jnp.int32)  # unused (see TODO in doc encoder)

    # span-averaging style mappings (rows roughly sum to 1)
    h_mapping = jax.nn.softmax(jax.random.normal(ks[4], (B, R, L)), axis=-1)
    t_mapping = jax.nn.softmax(jax.random.normal(ks[5], (B, R, L)), axis=-1)
    mention_node_position = jax.nn.softmax(
        jax.random.normal(ks[6], (B, M_NODES, L)), axis=-1)
    entity_position = jax.nn.softmax(
        jax.random.normal(ks[7], (B, E_NODES, L)), axis=-1)
    sdp_pos = jax.nn.softmax(jax.random.normal(ks[8], (B, S_NODES, L)), axis=-1)

    relation_mask = jnp.concatenate(
        [jnp.ones((B, R - 2), jnp.float32), jnp.zeros((B, 2), jnp.float32)], axis=-1)
    dis_h_2_t = jax.random.randint(ks[9], (B, R), 0, 20)
    dis_t_2_h = jax.random.randint(ks[10], (B, R), 0, 20)

    logits = lsr_forward(params, context_idxs, pos, context_ner, h_mapping,
                         t_mapping, relation_mask, dis_h_2_t, dis_t_2_h,
                         context_seg, mention_node_position, entity_position,
                         sdp_pos, structure_mask)
    logits = jax.block_until_ready(logits)
    assert logits.shape == (B, R, RELATION_NUM)
    assert bool(jnp.all(jnp.isfinite(logits)))
    print("KERNEL_OK")
</pallas_src>

<mosaic_0001>
module attributes {stable_mosaic.version = 11 : i64} {
  func.func @_lsr_fused_kernel(%arg0: i32, %arg1: memref<1x16x24xf32, #tpu.memory_space<vmem>>, %arg2: memref<1x16x16xi32, #tpu.memory_space<vmem>>, %arg3: memref<1x9x16xf32, #tpu.memory_space<vmem>>, %arg4: memref<1x16x16xf32, #tpu.memory_space<vmem>>, %arg5: memref<1x16x20xf32, #tpu.memory_space<vmem>>, %arg6: memref<1x1x8xf32, #tpu.memory_space<vmem>>, %arg7: memref<24x64xf32, #tpu.memory_space<vmem>>, %arg8: memref<1x64xf32, #tpu.memory_space<vmem>>, %arg9: memref<64x32xf32, #tpu.memory_space<vmem>>, %arg10: memref<1x32xf32, #tpu.memory_space<vmem>>, %arg11: memref<6x32xf32, #tpu.memory_space<vmem>>, %arg12: memref<32x6xf32, #tpu.memory_space<vmem>>, %arg13: memref<32x32xf32, #tpu.memory_space<vmem>>, %arg14: memref<32x32xf32, #tpu.memory_space<vmem>>, %arg15: memref<1x32xf32, #tpu.memory_space<vmem>>, %arg16: memref<32x32xf32, #tpu.memory_space<vmem>>, %arg17: memref<32x32xf32, #tpu.memory_space<vmem>>, %arg18: memref<1x32xf32, #tpu.memory_space<vmem>>, %arg19: memref<32x52x52xf32, #tpu.memory_space<vmem>>, %arg20: memref<1x32xf32, #tpu.memory_space<vmem>>, %arg21: memref<1x32xf32, #tpu.memory_space<vmem>>, %arg22: memref<1x32xf32, #tpu.memory_space<vmem>>, %arg23: memref<64x128xf32, #tpu.memory_space<vmem>>, %arg24: memref<1x128xf32, #tpu.memory_space<vmem>>, %arg25: memref<1x8x128xf32, #tpu.memory_space<vmem>>) attributes {dimension_semantics = [#tpu.dimension_semantics<parallel>], iteration_bounds = array<i64: 2>, scalar_prefetch = 0 : i64, scratch_operands = 0 : i64, tpu.core_type = #tpu.core_type<tc>, window_params = [{transform_indices = @transform_0, window_bounds = array<i64: 1, 16, 24>}, {transform_indices = @transform_1, window_bounds = array<i64: 1, 16, 16>}, {transform_indices = @transform_2, window_bounds = array<i64: 1, 9, 16>}, {transform_indices = @transform_3, window_bounds = array<i64: 1, 16, 16>}, {transform_indices = @transform_4, window_bounds = array<i64: 1, 16, 20>}, {transform_indices = @transform_5, window_bounds = array<i64: 1, 1, 8>}, {pipeline_mode = #tpu.pipeline_mode<synchronous>, transform_indices = @transform_6, window_bounds = array<i64: 24, 64>}, {pipeline_mode = #tpu.pipeline_mode<synchronous>, transform_indices = @transform_7, window_bounds = array<i64: 1, 64>}, {pipeline_mode = #tpu.pipeline_mode<synchronous>, transform_indices = @transform_8, window_bounds = array<i64: 64, 32>}, {pipeline_mode = #tpu.pipeline_mode<synchronous>, transform_indices = @transform_9, window_bounds = array<i64: 1, 32>}, {pipeline_mode = #tpu.pipeline_mode<synchronous>, transform_indices = @transform_10, window_bounds = array<i64: 6, 32>}, {pipeline_mode = #tpu.pipeline_mode<synchronous>, transform_indices = @transform_11, window_bounds = array<i64: 32, 6>}, {pipeline_mode = #tpu.pipeline_mode<synchronous>, transform_indices = @transform_12, window_bounds = array<i64: 32, 32>}, {pipeline_mode = #tpu.pipeline_mode<synchronous>, transform_indices = @transform_13, window_bounds = array<i64: 32, 32>}, {pipeline_mode = #tpu.pipeline_mode<synchronous>, transform_indices = @transform_14, window_bounds = array<i64: 1, 32>}, {pipeline_mode = #tpu.pipeline_mode<synchronous>, transform_indices = @transform_15, window_bounds = array<i64: 32, 32>}, {pipeline_mode = #tpu.pipeline_mode<synchronous>, transform_indices = @transform_16, window_bounds = array<i64: 32, 32>}, {pipeline_mode = #tpu.pipeline_mode<synchronous>, transform_indices = @transform_17, window_bounds = array<i64: 1, 32>}, {pipeline_mode = #tpu.pipeline_mode<synchronous>, transform_indices = @transform_18, window_bounds = array<i64: 32, 52, 52>}, {pipeline_mode = #tpu.pipeline_mode<synchronous>, transform_indices = @transform_19, window_bounds = array<i64: 1, 32>}, {pipeline_mode = #tpu.pipeline_mode<synchronous>, transform_indices = @transform_20, window_bounds = array<i64: 1, 32>}, {pipeline_mode = #tpu.pipeline_mode<synchronous>, transform_indices = @transform_21, window_bounds = array<i64: 1, 32>}, {pipeline_mode = #tpu.pipeline_mode<synchronous>, transform_indices = @transform_22, window_bounds = array<i64: 64, 128>}, {pipeline_mode = #tpu.pipeline_mode<synchronous>, transform_indices = @transform_23, window_bounds = array<i64: 1, 128>}, {transform_indices = @transform_24, window_bounds = array<i64: 1, 8, 128>}]} {
    %c0 = arith.constant 0 : index
    %c0_0 = arith.constant 0 : index
    %c0_1 = arith.constant 0 : index
    %0 = vector.load %arg1[%c0, %c0_0, %c0_1] : memref<1x16x24xf32, #tpu.memory_space<vmem>>, vector<1x16x24xf32>
    %1 = vector.shape_cast %0 : vector<1x16x24xf32> to vector<16x24xf32>
    %c0_2 = arith.constant 0 : index
    %c0_3 = arith.constant 0 : index
    %2 = vector.load %arg7[%c0_2, %c0_3] : memref<24x64xf32, #tpu.memory_space<vmem>>, vector<24x64xf32>
    %cst = arith.constant dense<0.000000e+00> : vector<16x64xf32>
    %3 = tpu.matmul %1, %2, %cst {dimension_numbers = #tpu.dot_dimension_numbers<[1], [0], [0], [1], [0, 0, 1, 1], [], []>} : vector<16x24xf32>, vector<24x64xf32>, vector<16x64xf32> -> vector<16x64xf32>
    %c0_4 = arith.constant 0 : index
    %c0_5 = arith.constant 0 : index
    %4 = vector.load %arg8[%c0_4, %c0_5] : memref<1x64xf32, #tpu.memory_space<vmem>>, vector<1x64xf32>
    %5 = vector.broadcast %4 : vector<1x64xf32> to vector<16x64xf32>
    %6 = arith.addf %3, %5 : vector<16x64xf32>
    %7 = math.tanh %6 : vector<16x64xf32>
    %c0_6 = arith.constant 0 : index
    %c0_7 = arith.constant 0 : index
    %8 = vector.load %arg9[%c0_6, %c0_7] : memref<64x32xf32, #tpu.memory_space<vmem>>, vector<64x32xf32>
    %cst_8 = arith.constant dense<0.000000e+00> : vector<16x32xf32>
    %9 = tpu.matmul %7, %8, %cst_8 {dimension_numbers = #tpu.dot_dimension_numbers<[1], [0], [0], [1], [0, 0, 1, 1], [], []>} : vector<16x64xf32>, vector<64x32xf32>, vector<16x32xf32> -> vector<16x32xf32>
    %c0_9 = arith.constant 0 : index
    %c0_10 = arith.constant 0 : index
    %10 = vector.load %arg10[%c0_9, %c0_10] : memref<1x32xf32, #tpu.memory_space<vmem>>, vector<1x32xf32>
    %11 = vector.broadcast %10 : vector<1x32xf32> to vector<16x32xf32>
    %12 = arith.addf %9, %11 : vector<16x32xf32>
    %cst_11 = arith.constant 0.000000e+00 : f32
    %13 = vector.broadcast %cst_11 : f32 to vector<16x32xf32>
    %14 = arith.maximumf %12, %13 : vector<16x32xf32>
    %c0_12 = arith.constant 0 : index
    %c0_13 = arith.constant 0 : index
    %15 = vector.load %arg11[%c0_12, %c0_13] : memref<6x32xf32, #tpu.memory_space<vmem>>, vector<6x32xf32>
    %16 = tpu.transpose %14, [1, 0] : vector<16x32xf32> -> vector<32x16xf32>
    %cst_14 = arith.constant dense<0.000000e+00> : vector<6x16xf32>
    %17 = tpu.matmul %15, %16, %cst_14 {dimension_numbers = #tpu.dot_dimension_numbers<[1], [0], [0], [1], [0, 0, 1, 1], [], []>} : vector<6x32xf32>, vector<32x16xf32>, vector<6x16xf32> -> vector<6x16xf32>
    %c0_15 = arith.constant 0 : index
    %c0_16 = arith.constant 0 : index
    %18 = vector.load %arg12[%c0_15, %c0_16] : memref<32x6xf32, #tpu.memory_space<vmem>>, vector<32x6xf32>
    %cst_17 = arith.constant dense<0.000000e+00> : vector<16x6xf32>
    %19 = tpu.matmul %14, %18, %cst_17 {dimension_numbers = #tpu.dot_dimension_numbers<[1], [0], [0], [1], [0, 0, 1, 1], [], []>} : vector<16x32xf32>, vector<32x6xf32>, vector<16x6xf32> -> vector<16x6xf32>
    %c0_18 = arith.constant 0 : index
    %c0_19 = arith.constant 0 : index
    %c0_20 = arith.constant 0 : index
    %20 = vector.load %arg2[%c0_18, %c0_19, %c0_20] : memref<1x16x16xi32, #tpu.memory_space<vmem>>, vector<1x16x16xi32>
    %21 = vector.shape_cast %20 : vector<1x16x16xi32> to vector<16x16xi32>
    %cst_21 = arith.constant 0.000000e+00 : f32
    %22 = vector.broadcast %cst_21 : f32 to vector<16x16xf32>
    %c0_i32 = arith.constant 0 : i32
    %23 = vector.broadcast %c0_i32 : i32 to vector<16x16xi32>
    %24 = arith.cmpi eq, %21, %23 : vector<16x16xi32>
    %25 = vector.extract_strided_slice %17 {offsets = [0, 0], sizes = [1, 16], strides = [1, 1]} : vector<6x16xf32> to vector<1x16xf32>
    %26 = vector.extract_strided_slice %19 {offsets = [0, 0], sizes = [16, 1], strides = [1, 1]} : vector<16x6xf32> to vector<16x1xf32>
    %27 = vector.broadcast %25 : vector<1x16xf32> to vector<16x16xf32>
    %28 = vector.broadcast %26 : vector<16x1xf32> to vector<16x16xf32>
    %29 = arith.addf %27, %28 : vector<16x16xf32>
    %cst_22 = arith.constant 0.000000e+00 : f32
    %30 = vector.broadcast %cst_22 : f32 to vector<16x16xf32>
    %31 = arith.select %24, %29, %30 : vector<16x16xi1>, vector<16x16xf32>
    %32 = arith.addf %22, %31 : vector<16x16xf32>
    %c1_i32 = arith.constant 1 : i32
    %33 = vector.broadcast %c1_i32 : i32 to vector<16x16xi32>
    %34 = arith.cmpi eq, %21, %33 : vector<16x16xi32>
    %35 = vector.extract_strided_slice %17 {offsets = [1, 0], sizes = [1, 16], strides = [1, 1]} : vector<6x16xf32> to vector<1x16xf32>
    %36 = vector.extract_strided_slice %19 {offsets = [0, 1], sizes = [16, 1], strides = [1, 1]} : vector<16x6xf32> to vector<16x1xf32>
    %37 = vector.broadcast %35 : vector<1x16xf32> to vector<16x16xf32>
    %38 = vector.broadcast %36 : vector<16x1xf32> to vector<16x16xf32>
    %39 = arith.addf %37, %38 : vector<16x16xf32>
    %cst_23 = arith.constant 0.000000e+00 : f32
    %40 = vector.broadcast %cst_23 : f32 to vector<16x16xf32>
    %41 = arith.select %34, %39, %40 : vector<16x16xi1>, vector<16x16xf32>
    %42 = arith.addf %32, %41 : vector<16x16xf32>
    %c2_i32 = arith.constant 2 : i32
    %43 = vector.broadcast %c2_i32 : i32 to vector<16x16xi32>
    %44 = arith.cmpi eq, %21, %43 : vector<16x16xi32>
    %45 = vector.extract_strided_slice %17 {offsets = [2, 0], sizes = [1, 16], strides = [1, 1]} : vector<6x16xf32> to vector<1x16xf32>
    %46 = vector.extract_strided_slice %19 {offsets = [0, 2], sizes = [16, 1], strides = [1, 1]} : vector<16x6xf32> to vector<16x1xf32>
    %47 = vector.broadcast %45 : vector<1x16xf32> to vector<16x16xf32>
    %48 = vector.broadcast %46 : vector<16x1xf32> to vector<16x16xf32>
    %49 = arith.addf %47, %48 : vector<16x16xf32>
    %cst_24 = arith.constant 0.000000e+00 : f32
    %50 = vector.broadcast %cst_24 : f32 to vector<16x16xf32>
    %51 = arith.select %44, %49, %50 : vector<16x16xi1>, vector<16x16xf32>
    %52 = arith.addf %42, %51 : vector<16x16xf32>
    %c3_i32 = arith.constant 3 : i32
    %53 = vector.broadcast %c3_i32 : i32 to vector<16x16xi32>
    %54 = arith.cmpi eq, %21, %53 : vector<16x16xi32>
    %55 = vector.extract_strided_slice %17 {offsets = [3, 0], sizes = [1, 16], strides = [1, 1]} : vector<6x16xf32> to vector<1x16xf32>
    %56 = vector.extract_strided_slice %19 {offsets = [0, 3], sizes = [16, 1], strides = [1, 1]} : vector<16x6xf32> to vector<16x1xf32>
    %57 = vector.broadcast %55 : vector<1x16xf32> to vector<16x16xf32>
    %58 = vector.broadcast %56 : vector<16x1xf32> to vector<16x16xf32>
    %59 = arith.addf %57, %58 : vector<16x16xf32>
    %cst_25 = arith.constant 0.000000e+00 : f32
    %60 = vector.broadcast %cst_25 : f32 to vector<16x16xf32>
    %61 = arith.select %54, %59, %60 : vector<16x16xi1>, vector<16x16xf32>
    %62 = arith.addf %52, %61 : vector<16x16xf32>
    %c4_i32 = arith.constant 4 : i32
    %63 = vector.broadcast %c4_i32 : i32 to vector<16x16xi32>
    %64 = arith.cmpi eq, %21, %63 : vector<16x16xi32>
    %65 = vector.extract_strided_slice %17 {offsets = [4, 0], sizes = [1, 16], strides = [1, 1]} : vector<6x16xf32> to vector<1x16xf32>
    %66 = vector.extract_strided_slice %19 {offsets = [0, 4], sizes = [16, 1], strides = [1, 1]} : vector<16x6xf32> to vector<16x1xf32>
    %67 = vector.broadcast %65 : vector<1x16xf32> to vector<16x16xf32>
    %68 = vector.broadcast %66 : vector<16x1xf32> to vector<16x16xf32>
    %69 = arith.addf %67, %68 : vector<16x16xf32>
    %cst_26 = arith.constant 0.000000e+00 : f32
    %70 = vector.broadcast %cst_26 : f32 to vector<16x16xf32>
    %71 = arith.select %64, %69, %70 : vector<16x16xi1>, vector<16x16xf32>
    %72 = arith.addf %62, %71 : vector<16x16xf32>
    %c5_i32 = arith.constant 5 : i32
    %73 = vector.broadcast %c5_i32 : i32 to vector<16x16xi32>
    %74 = arith.cmpi eq, %21, %73 : vector<16x16xi32>
    %75 = vector.extract_strided_slice %17 {offsets = [5, 0], sizes = [1, 16], strides = [1, 1]} : vector<6x16xf32> to vector<1x16xf32>
    %76 = vector.extract_strided_slice %19 {offsets = [0, 5], sizes = [16, 1], strides = [1, 1]} : vector<16x6xf32> to vector<16x1xf32>
    %77 = vector.broadcast %75 : vector<1x16xf32> to vector<16x16xf32>
    %78 = vector.broadcast %76 : vector<16x1xf32> to vector<16x16xf32>
    %79 = arith.addf %77, %78 : vector<16x16xf32>
    %cst_27 = arith.constant 0.000000e+00 : f32
    %80 = vector.broadcast %cst_27 : f32 to vector<16x16xf32>
    %81 = arith.select %74, %79, %80 : vector<16x16xi1>, vector<16x16xf32>
    %82 = arith.addf %72, %81 : vector<16x16xf32>
    %cst_28 = arith.constant dense<0.000000e+00> : vector<16xf32>
    %83 = vector.multi_reduction <add>, %82, %cst_28 [1] : vector<16x16xf32> to vector<16xf32>
    %84 = vector.shape_cast %83 : vector<16xf32> to vector<16x1xf32>
    %cst_29 = arith.constant 1.600000e+01 : f32
    %85 = vector.broadcast %cst_29 : f32 to vector<16x1xf32>
    %86 = arith.divf %84, %85 : vector<16x1xf32>
    %87 = vector.broadcast %86 : vector<16x1xf32> to vector<16x32xf32>
    %88 = arith.addf %14, %87 : vector<16x32xf32>
    %c0_30 = arith.constant 0 : index
    %c0_31 = arith.constant 0 : index
    %c0_32 = arith.constant 0 : index
    %89 = vector.load %arg3[%c0_30, %c0_31, %c0_32] : memref<1x9x16xf32, #tpu.memory_space<vmem>>, vector<1x9x16xf32>
    %90 = vector.shape_cast %89 : vector<1x9x16xf32> to vector<9x16xf32>
    %cst_33 = arith.constant dense<0.000000e+00> : vector<9x32xf32>
    %91 = tpu.matmul %90, %88, %cst_33 {dimension_numbers = #tpu.dot_dimension_numbers<[1], [0], [0], [1], [0, 0, 1, 1], [], []>} : vector<9x16xf32>, vector<16x32xf32>, vector<9x32xf32> -> vector<9x32xf32>
    %cst_34 = arith.constant 3.200000e+01 : f32
    %92 = math.sqrt %cst_34 : f32
    %cst_35 = arith.constant 1.000000e+00 : f32
    %93 = arith.divf %cst_35, %92 : f32
    %c0_36 = arith.constant 0 : index
    %c0_37 = arith.constant 0 : index
    %94 = vector.load %arg13[%c0_36, %c0_37] : memref<32x32xf32, #tpu.memory_space<vmem>>, vector<32x32xf32>
    %cst_38 = arith.constant dense<0.000000e+00> : vector<9x32xf32>
    %95 = tpu.matmul %91, %94, %cst_38 {dimension_numbers = #tpu.dot_dimension_numbers<[1], [0], [0], [1], [0, 0, 1, 1], [], []>} : vector<9x32xf32>, vector<32x32xf32>, vector<9x32xf32> -> vector<9x32xf32>
    %96 = tpu.transpose %91, [1, 0] : vector<9x32xf32> -> vector<32x9xf32>
    %cst_39 = arith.constant dense<0.000000e+00> : vector<9x9xf32>
    %97 = tpu.matmul %95, %96, %cst_39 {dimension_numbers = #tpu.dot_dimension_numbers<[1], [0], [0], [1], [0, 0, 1, 1], [], []>} : vector<9x32xf32>, vector<32x9xf32>, vector<9x9xf32> -> vector<9x9xf32>
    %98 = vector.broadcast %93 : f32 to vector<9x9xf32>
    %99 = arith.mulf %97, %98 : vector<9x9xf32>
    %cst_40 = arith.constant dense<0xFF800000> : vector<9xf32>
    %100 = vector.multi_reduction <maximumf>, %99, %cst_40 [1] : vector<9x9xf32> to vector<9xf32>
    %101 = vector.shape_cast %100 : vector<9xf32> to vector<9x1xf32>
    %102 = vector.broadcast %101 : vector<9x1xf32> to vector<9x9xf32>
    %103 = arith.subf %99, %102 : vector<9x9xf32>
    %104 = math.exp %103 : vector<9x9xf32>
    %cst_41 = arith.constant dense<0.000000e+00> : vector<9xf32>
    %105 = vector.multi_reduction <add>, %104, %cst_41 [1] : vector<9x9xf32> to vector<9xf32>
    %106 = vector.shape_cast %105 : vector<9xf32> to vector<9x1xf32>
    %107 = tpu.reciprocal %106 {approx = true} : vector<9x1xf32> -> vector<9x1xf32>
    %108 = vector.broadcast %107 : vector<9x1xf32> to vector<9x9xf32>
    %109 = arith.mulf %104, %108 : vector<9x9xf32>
    %c0_42 = arith.constant 0 : index
    %c0_43 = arith.constant 0 : index
    %110 = vector.load %arg14[%c0_42, %c0_43] : memref<32x32xf32, #tpu.memory_space<vmem>>, vector<32x32xf32>
    %cst_44 = arith.constant dense<0.000000e+00> : vector<9x32xf32>
    %111 = tpu.matmul %91, %110, %cst_44 {dimension_numbers = #tpu.dot_dimension_numbers<[1], [0], [0], [1], [0, 0, 1, 1], [], []>} : vector<9x32xf32>, vector<32x32xf32>, vector<9x32xf32> -> vector<9x32xf32>
    %c0_45 = arith.constant 0 : index
    %c0_46 = arith.constant 0 : index
    %112 = vector.load %arg15[%c0_45, %c0_46] : memref<1x32xf32, #tpu.memory_space<vmem>>, vector<1x32xf32>
    %113 = vector.broadcast %112 : vector<1x32xf32> to vector<9x32xf32>
    %114 = arith.addf %111, %113 : vector<9x32xf32>
    %cst_47 = arith.constant dense<0.000000e+00> : vector<9x32xf32>
    %115 = tpu.matmul %109, %114, %cst_47 {dimension_numbers = #tpu.dot_dimension_numbers<[1], [0], [0], [1], [0, 0, 1, 1], [], []>} : vector<9x9xf32>, vector<9x32xf32>, vector<9x32xf32> -> vector<9x32xf32>
    %cst_48 = arith.constant 0.000000e+00 : f32
    %116 = vector.broadcast %cst_48 : f32 to vector<9x32xf32>
    %117 = arith.maximumf %115, %116 : vector<9x32xf32>
    %c0_49 = arith.constant 0 : index
    %c0_50 = arith.constant 0 : index
    %118 = vector.load %arg16[%c0_49, %c0_50] : memref<32x32xf32, #tpu.memory_space<vmem>>, vector<32x32xf32>
    %cst_51 = arith.constant dense<0.000000e+00> : vector<9x32xf32>
    %119 = tpu.matmul %117, %118, %cst_51 {dimension_numbers = #tpu.dot_dimension_numbers<[1], [0], [0], [1], [0, 0, 1, 1], [], []>} : vector<9x32xf32>, vector<32x32xf32>, vector<9x32xf32> -> vector<9x32xf32>
    %120 = tpu.transpose %117, [1, 0] : vector<9x32xf32> -> vector<32x9xf32>
    %cst_52 = arith.constant dense<0.000000e+00> : vector<9x9xf32>
    %121 = tpu.matmul %119, %120, %cst_52 {dimension_numbers = #tpu.dot_dimension_numbers<[1], [0], [0], [1], [0, 0, 1, 1], [], []>} : vector<9x32xf32>, vector<32x9xf32>, vector<9x9xf32> -> vector<9x9xf32>
    %122 = vector.broadcast %93 : f32 to vector<9x9xf32>
    %123 = arith.mulf %121, %122 : vector<9x9xf32>
    %cst_53 = arith.constant dense<0xFF800000> : vector<9xf32>
    %124 = vector.multi_reduction <maximumf>, %123, %cst_53 [1] : vector<9x9xf32> to vector<9xf32>
    %125 = vector.shape_cast %124 : vector<9xf32> to vector<9x1xf32>
    %126 = vector.broadcast %125 : vector<9x1xf32> to vector<9x9xf32>
    %127 = arith.subf %123, %126 : vector<9x9xf32>
    %128 = math.exp %127 : vector<9x9xf32>
    %cst_54 = arith.constant dense<0.000000e+00> : vector<9xf32>
    %129 = vector.multi_reduction <add>, %128, %cst_54 [1] : vector<9x9xf32> to vector<9xf32>
    %130 = vector.shape_cast %129 : vector<9xf32> to vector<9x1xf32>
    %131 = tpu.reciprocal %130 {approx = true} : vector<9x1xf32> -> vector<9x1xf32>
    %132 = vector.broadcast %131 : vector<9x1xf32> to vector<9x9xf32>
    %133 = arith.mulf %128, %132 : vector<9x9xf32>
    %c0_55 = arith.constant 0 : index
    %c0_56 = arith.constant 0 : index
    %134 = vector.load %arg17[%c0_55, %c0_56] : memref<32x32xf32, #tpu.memory_space<vmem>>, vector<32x32xf32>
    %cst_57 = arith.constant dense<0.000000e+00> : vector<9x32xf32>
    %135 = tpu.matmul %117, %134, %cst_57 {dimension_numbers = #tpu.dot_dimension_numbers<[1], [0], [0], [1], [0, 0, 1, 1], [], []>} : vector<9x32xf32>, vector<32x32xf32>, vector<9x32xf32> -> vector<9x32xf32>
    %c0_58 = arith.constant 0 : index
    %c0_59 = arith.constant 0 : index
    %136 = vector.load %arg18[%c0_58, %c0_59] : memref<1x32xf32, #tpu.memory_space<vmem>>, vector<1x32xf32>
    %137 = vector.broadcast %136 : vector<1x32xf32> to vector<9x32xf32>
    %138 = arith.addf %135, %137 : vector<9x32xf32>
    %cst_60 = arith.constant dense<0.000000e+00> : vector<9x32xf32>
    %139 = tpu.matmul %133, %138, %cst_60 {dimension_numbers = #tpu.dot_dimension_numbers<[1], [0], [0], [1], [0, 0, 1, 1], [], []>} : vector<9x9xf32>, vector<9x32xf32>, vector<9x32xf32> -> vector<9x32xf32>
    %cst_61 = arith.constant 0.000000e+00 : f32
    %140 = vector.broadcast %cst_61 : f32 to vector<9x32xf32>
    %141 = arith.maximumf %139, %140 : vector<9x32xf32>
    %142 = vector.extract_strided_slice %90 {offsets = [0, 0], sizes = [4, 16], strides = [1, 1]} : vector<9x16xf32> to vector<4x16xf32>
    %143 = vector.extract_strided_slice %141 {offsets = [0, 0], sizes = [4, 32], strides = [1, 1]} : vector<9x32xf32> to vector<4x32xf32>
    %144 = tpu.transpose %142, [1, 0] : vector<4x16xf32> -> vector<16x4xf32>
    %cst_62 = arith.constant dense<0.000000e+00> : vector<16x32xf32>
    %145 = tpu.matmul %144, %143, %cst_62 {dimension_numbers = #tpu.dot_dimension_numbers<[1], [0], [0], [1], [0, 0, 1, 1], [], []>} : vector<16x4xf32>, vector<4x32xf32>, vector<16x32xf32> -> vector<16x32xf32>
    %146 = arith.addf %88, %145 : vector<16x32xf32>
    %c0_63 = arith.constant 0 : index
    %c0_64 = arith.constant 0 : index
    %c0_65 = arith.constant 0 : index
    %147 = vector.load %arg4[%c0_63, %c0_64, %c0_65] : memref<1x16x16xf32, #tpu.memory_space<vmem>>, vector<1x16x16xf32>
    %148 = vector.shape_cast %147 : vector<1x16x16xf32> to vector<16x16xf32>
    %cst_66 = arith.constant dense<0.000000e+00> : vector<16x32xf32>
    %149 = tpu.matmul %148, %146, %cst_66 {dimension_numbers = #tpu.dot_dimension_numbers<[1], [0], [0], [1], [0, 0, 1, 1], [], []>} : vector<16x16xf32>, vector<16x32xf32>, vector<16x32xf32> -> vector<16x32xf32>
    %c0_67 = arith.constant 0 : index
    %c0_68 = arith.constant 0 : index
    %c0_69 = arith.constant 0 : index
    %150 = vector.load %arg5[%c0_67, %c0_68, %c0_69] : memref<1x16x20xf32, #tpu.memory_space<vmem>>, vector<1x16x20xf32>
    %151 = vector.shape_cast %150 : vector<1x16x20xf32> to vector<16x20xf32>
    %152 = tpu.concatenate %149, %151 in 1 : vector<16x32xf32>, vector<16x20xf32> -> vector<16x52xf32>
    %153 = vector.extract_strided_slice %152 {offsets = [0, 0], sizes = [8, 52], strides = [1, 1]} : vector<16x52xf32> to vector<8x52xf32>
    %154 = vector.extract_strided_slice %152 {offsets = [8, 0], sizes = [8, 52], strides = [1, 1]} : vector<16x52xf32> to vector<8x52xf32>
    %155 = vector.shape_cast %153 : vector<8x52xf32> to vector<1x8x52xf32>
    %156 = vector.shape_cast %155 : vector<1x8x52xf32> to vector<1x8x52xf32>
    %157 = vector.broadcast %156 : vector<1x8x52xf32> to vector<32x8x52xf32>
    %c0_70 = arith.constant 0 : index
    %c0_71 = arith.constant 0 : index
    %c0_72 = arith.constant 0 : index
    %158 = vector.load %arg19[%c0_70, %c0_71, %c0_72] : memref<32x52x52xf32, #tpu.memory_space<vmem>>, vector<32x52x52xf32>
    "tpu.trace_start"() <{level = 10 : i32, message = "bqd,bkd->bqk"}> : () -> ()
    %cst_73 = arith.constant dense<0.000000e+00> : vector<32x8x52xf32>
    %159 = tpu.matmul %157, %158, %cst_73 {dimension_numbers = #tpu.dot_dimension_numbers<[2], [2], [1], [1], [0, 0, 0, 1, 1, 1], [0], [0]>} : vector<32x8x52xf32>, vector<32x52x52xf32>, vector<32x8x52xf32> -> vector<32x8x52xf32>
    "tpu.trace_stop"() : () -> ()
    %160 = vector.shape_cast %154 : vector<8x52xf32> to vector<1x8x52xf32>
    %161 = vector.broadcast %160 : vector<1x8x52xf32> to vector<32x8x52xf32>
    %162 = arith.mulf %159, %161 : vector<32x8x52xf32>
    %cst_74 = arith.constant dense<0.000000e+00> : vector<32x8xf32>
    %163 = vector.multi_reduction <add>, %162, %cst_74 [2] : vector<32x8x52xf32> to vector<32x8xf32>
    %164 = tpu.transpose %163, [1, 0] : vector<32x8xf32> -> vector<8x32xf32>
    %c0_75 = arith.constant 0 : index
    %c0_76 = arith.constant 0 : index
    %165 = vector.load %arg20[%c0_75, %c0_76] : memref<1x32xf32, #tpu.memory_space<vmem>>, vector<1x32xf32>
    %166 = vector.broadcast %165 : vector<1x32xf32> to vector<8x32xf32>
    %167 = arith.addf %164, %166 : vector<8x32xf32>
    %cst_77 = arith.constant 0.000000e+00 : f32
    %168 = vector.broadcast %cst_77 : f32 to vector<8x32xf32>
    %169 = arith.maximumf %167, %168 : vector<8x32xf32>
    %c0_78 = arith.constant 0 : index
    %c0_79 = arith.constant 0 : index
    %c0_80 = arith.constant 0 : index
    %170 = vector.load %arg6[%c0_78, %c0_79, %c0_80] : memref<1x1x8xf32, #tpu.memory_space<vmem>>, vector<1x1x8xf32>
    %171 = vector.shape_cast %170 : vector<1x1x8xf32> to vector<1x8xf32>
    %c0_81 = arith.constant 0 : index
    %c0_82 = arith.constant 0 : index
    %172 = vector.load %arg21[%c0_81, %c0_82] : memref<1x32xf32, #tpu.memory_space<vmem>>, vector<1x32xf32>
    %173 = vector.broadcast %172 : vector<1x32xf32> to vector<8x32xf32>
    %174 = arith.mulf %169, %173 : vector<8x32xf32>
    %cst_83 = arith.constant dense<0.000000e+00> : vector<8xf32>
    %175 = vector.multi_reduction <add>, %174, %cst_83 [1] : vector<8x32xf32> to vector<8xf32>
    %176 = vector.shape_cast %175 : vector<8xf32> to vector<8x1xf32>
    %c0_84 = arith.constant 0 : index
    %c0_85 = arith.constant 0 : index
    %177 = vector.load %arg22[%c0_84, %c0_85] : memref<1x32xf32, #tpu.memory_space<vmem>>, vector<1x32xf32>
    %178 = vector.broadcast %177 : vector<1x32xf32> to vector<8x32xf32>
    %179 = arith.mulf %169, %178 : vector<8x32xf32>
    %180 = tpu.transpose %169, [1, 0] : vector<8x32xf32> -> vector<32x8xf32>
    %cst_86 = arith.constant dense<0.000000e+00> : vector<8x8xf32>
    %181 = tpu.matmul %179, %180, %cst_86 {dimension_numbers = #tpu.dot_dimension_numbers<[1], [0], [0], [1], [0, 0, 1, 1], [], []>} : vector<8x32xf32>, vector<32x8xf32>, vector<8x8xf32> -> vector<8x8xf32>
    %182 = vector.broadcast %176 : vector<8x1xf32> to vector<8x8xf32>
    %183 = arith.addf %182, %181 : vector<8x8xf32>
    %cst_87 = arith.constant 1.000000e+00 : f32
    %184 = vector.broadcast %cst_87 : f32 to vector<1x8xf32>
    %185 = arith.subf %184, %171 : vector<1x8xf32>
    %cst_88 = arith.constant 1.000000e+30 : f32
    %186 = vector.broadcast %cst_88 : f32 to vector<1x8xf32>
    %187 = arith.mulf %186, %185 : vector<1x8xf32>
    %188 = vector.broadcast %187 : vector<1x8xf32> to vector<8x8xf32>
    %189 = arith.subf %183, %188 : vector<8x8xf32>
    %cst_89 = arith.constant dense<0xFF800000> : vector<8xf32>
    %190 = vector.multi_reduction <maximumf>, %189, %cst_89 [1] : vector<8x8xf32> to vector<8xf32>
    %191 = vector.shape_cast %190 : vector<8xf32> to vector<8x1xf32>
    %192 = vector.broadcast %191 : vector<8x1xf32> to vector<8x8xf32>
    %193 = arith.subf %189, %192 : vector<8x8xf32>
    %194 = math.exp %193 : vector<8x8xf32>
    %cst_90 = arith.constant dense<0.000000e+00> : vector<8xf32>
    %195 = vector.multi_reduction <add>, %194, %cst_90 [1] : vector<8x8xf32> to vector<8xf32>
    %196 = vector.shape_cast %195 : vector<8xf32> to vector<8x1xf32>
    %197 = tpu.reciprocal %196 {approx = true} : vector<8x1xf32> -> vector<8x1xf32>
    %198 = vector.broadcast %197 : vector<8x1xf32> to vector<8x8xf32>
    %199 = arith.mulf %194, %198 : vector<8x8xf32>
    %cst_91 = arith.constant dense<0.000000e+00> : vector<8x32xf32>
    %200 = tpu.matmul %199, %169, %cst_91 {dimension_numbers = #tpu.dot_dimension_numbers<[1], [0], [0], [1], [0, 0, 1, 1], [], []>} : vector<8x8xf32>, vector<8x32xf32>, vector<8x32xf32> -> vector<8x32xf32>
    %c0_92 = arith.constant 0 : index
    %c0_93 = arith.constant 0 : index
    %201 = vector.load %arg23[%c0_92, %c0_93] : memref<64x128xf32, #tpu.memory_space<vmem>>, vector<64x128xf32>
    %202 = vector.extract_strided_slice %201 {offsets = [0, 0], sizes = [32, 128], strides = [1, 1]} : vector<64x128xf32> to vector<32x128xf32>
    %cst_94 = arith.constant dense<0.000000e+00> : vector<8x128xf32>
    %203 = tpu.matmul %169, %202, %cst_94 {dimension_numbers = #tpu.dot_dimension_numbers<[1], [0], [0], [1], [0, 0, 1, 1], [], []>} : vector<8x32xf32>, vector<32x128xf32>, vector<8x128xf32> -> vector<8x128xf32>
    %204 = vector.extract_strided_slice %201 {offsets = [32, 0], sizes = [32, 128], strides = [1, 1]} : vector<64x128xf32> to vector<32x128xf32>
    %cst_95 = arith.constant dense<0.000000e+00> : vector<8x128xf32>
    %205 = tpu.matmul %200, %204, %cst_95 {dimension_numbers = #tpu.dot_dimension_numbers<[1], [0], [0], [1], [0, 0, 1, 1], [], []>} : vector<8x32xf32>, vector<32x128xf32>, vector<8x128xf32> -> vector<8x128xf32>
    %206 = arith.addf %203, %205 : vector<8x128xf32>
    %c0_96 = arith.constant 0 : index
    %c0_97 = arith.constant 0 : index
    %207 = vector.load %arg24[%c0_96, %c0_97] : memref<1x128xf32, #tpu.memory_space<vmem>>, vector<1x128xf32>
    %208 = vector.broadcast %207 : vector<1x128xf32> to vector<8x128xf32>
    %209 = arith.addf %206, %208 : vector<8x128xf32>
    %c0_98 = arith.constant 0 : index
    %c0_99 = arith.constant 0 : index
    %c0_100 = arith.constant 0 : index
    %210 = vector.load %arg25[%c0_98, %c0_99, %c0_100] : memref<1x8x128xf32, #tpu.memory_space<vmem>>, vector<1x8x128xf32>
    %211 = vector.shape_cast %210 : vector<1x8x128xf32> to vector<8x128xf32>
    %212 = vector.shape_cast %209 : vector<8x128xf32> to vector<1x8x128xf32>
    tpu.vector_store %arg25[%c0_98, %c0_99, %c0_100], %212 {strides = array<i32>} : memref<1x8x128xf32, #tpu.memory_space<vmem>>, vector<1x8x128xf32>,
    return
  }
  func.func @transform_0(%arg0: i32) -> (i32, i32, i32) {
    %c0_i32 = arith.constant 0 : i32
    %c0_i32_0 = arith.constant 0 : i32
    %c0_i32_1 = arith.constant 0 : i32
    return %arg0, %c0_i32, %c0_i32_0 : i32, i32, i32
  }
  func.func @transform_1(%arg0: i32) -> (i32, i32, i32) {
    %c0_i32 = arith.constant 0 : i32
    %c0_i32_0 = arith.constant 0 : i32
    %c0_i32_1 = arith.constant 0 : i32
    return %arg0, %c0_i32, %c0_i32_0 : i32, i32, i32
  }
  func.func @transform_2(%arg0: i32) -> (i32, i32, i32) {
    %c0_i32 = arith.constant 0 : i32
    %c0_i32_0 = arith.constant 0 : i32
    %c0_i32_1 = arith.constant 0 : i32
    return %arg0, %c0_i32, %c0_i32_0 : i32, i32, i32
  }
  func.func @transform_3(%arg0: i32) -> (i32, i32, i32) {
    %c0_i32 = arith.constant 0 : i32
    %c0_i32_0 = arith.constant 0 : i32
    %c0_i32_1 = arith.constant 0 : i32
    return %arg0, %c0_i32, %c0_i32_0 : i32, i32, i32
  }
  func.func @transform_4(%arg0: i32) -> (i32, i32, i32) {
    %c0_i32 = arith.constant 0 : i32
    %c0_i32_0 = arith.constant 0 : i32
    %c0_i32_1 = arith.constant 0 : i32
    return %arg0, %c0_i32, %c0_i32_0 : i32, i32, i32
  }
  func.func @transform_5(%arg0: i32) -> (i32, i32, i32) {
    %c0_i32 = arith.constant 0 : i32
    %c0_i32_0 = arith.constant 0 : i32
    %c0_i32_1 = arith.constant 0 : i32
    return %arg0, %c0_i32, %c0_i32_0 : i32, i32, i32
  }
  func.func @transform_6(%arg0: i32) -> (i32, i32) {
    %c0_i32 = arith.constant 0 : i32
    %c0_i32_0 = arith.constant 0 : i32
    %c0_i32_1 = arith.constant 0 : i32
    return %c0_i32, %c0_i32_0 : i32, i32
  }
  func.func @transform_7(%arg0: i32) -> (i32, i32) {
    %c0_i32 = arith.constant 0 : i32
    %c0_i32_0 = arith.constant 0 : i32
    %c0_i32_1 = arith.constant 0 : i32
    return %c0_i32, %c0_i32_0 : i32, i32
  }
  func.func @transform_8(%arg0: i32) -> (i32, i32) {
    %c0_i32 = arith.constant 0 : i32
    %c0_i32_0 = arith.constant 0 : i32
    %c0_i32_1 = arith.constant 0 : i32
    return %c0_i32, %c0_i32_0 : i32, i32
  }
  func.func @transform_9(%arg0: i32) -> (i32, i32) {
    %c0_i32 = arith.constant 0 : i32
    %c0_i32_0 = arith.constant 0 : i32
    %c0_i32_1 = arith.constant 0 : i32
    return %c0_i32, %c0_i32_0 : i32, i32
  }
  func.func @transform_10(%arg0: i32) -> (i32, i32) {
    %c0_i32 = arith.constant 0 : i32
    %c0_i32_0 = arith.constant 0 : i32
    %c0_i32_1 = arith.constant 0 : i32
    return %c0_i32, %c0_i32_0 : i32, i32
  }
  func.func @transform_11(%arg0: i32) -> (i32, i32) {
    %c0_i32 = arith.constant 0 : i32
    %c0_i32_0 = arith.constant 0 : i32
    %c0_i32_1 = arith.constant 0 : i32
    return %c0_i32, %c0_i32_0 : i32, i32
  }
  func.func @transform_12(%arg0: i32) -> (i32, i32) {
    %c0_i32 = arith.constant 0 : i32
    %c0_i32_0 = arith.constant 0 : i32
    %c0_i32_1 = arith.constant 0 : i32
    return %c0_i32, %c0_i32_0 : i32, i32
  }
  func.func @transform_13(%arg0: i32) -> (i32, i32) {
    %c0_i32 = arith.constant 0 : i32
    %c0_i32_0 = arith.constant 0 : i32
    %c0_i32_1 = arith.constant 0 : i32
    return %c0_i32, %c0_i32_0 : i32, i32
  }
  func.func @transform_14(%arg0: i32) -> (i32, i32) {
    %c0_i32 = arith.constant 0 : i32
    %c0_i32_0 = arith.constant 0 : i32
    %c0_i32_1 = arith.constant 0 : i32
    return %c0_i32, %c0_i32_0 : i32, i32
  }
  func.func @transform_15(%arg0: i32) -> (i32, i32) {
    %c0_i32 = arith.constant 0 : i32
    %c0_i32_0 = arith.constant 0 : i32
    %c0_i32_1 = arith.constant 0 : i32
    return %c0_i32, %c0_i32_0 : i32, i32
  }
  func.func @transform_16(%arg0: i32) -> (i32, i32) {
    %c0_i32 = arith.constant 0 : i32
    %c0_i32_0 = arith.constant 0 : i32
    %c0_i32_1 = arith.constant 0 : i32
    return %c0_i32, %c0_i32_0 : i32, i32
  }
  func.func @transform_17(%arg0: i32) -> (i32, i32) {
    %c0_i32 = arith.constant 0 : i32
    %c0_i32_0 = arith.constant 0 : i32
    %c0_i32_1 = arith.constant 0 : i32
    return %c0_i32, %c0_i32_0 : i32, i32
  }
  func.func @transform_18(%arg0: i32) -> (i32, i32, i32) {
    %c0_i32 = arith.constant 0 : i32
    %c0_i32_0 = arith.constant 0 : i32
    %c0_i32_1 = arith.constant 0 : i32
    %c0_i32_2 = arith.constant 0 : i32
    return %c0_i32, %c0_i32_0, %c0_i32_1 : i32, i32, i32
  }
  func.func @transform_19(%arg0: i32) -> (i32, i32) {
    %c0_i32 = arith.constant 0 : i32
    %c0_i32_0 = arith.constant 0 : i32
    %c0_i32_1 = arith.constant 0 : i32
    return %c0_i32, %c0_i32_0 : i32, i32
  }
  func.func @transform_20(%arg0: i32) -> (i32, i32) {
    %c0_i32 = arith.constant 0 : i32
    %c0_i32_0 = arith.constant 0 : i32
    %c0_i32_1 = arith.constant 0 : i32
    return %c0_i32, %c0_i32_0 : i32, i32
  }
  func.func @transform_21(%arg0: i32) -> (i32, i32) {
    %c0_i32 = arith.constant 0 : i32
    %c0_i32_0 = arith.constant 0 : i32
    %c0_i32_1 = arith.constant 0 : i32
    return %c0_i32, %c0_i32_0 : i32, i32
  }
  func.func @transform_22(%arg0: i32) -> (i32, i32) {
    %c0_i32 = arith.constant 0 : i32
    %c0_i32_0 = arith.constant 0 : i32
    %c0_i32_1 = arith.constant 0 : i32
    return %c0_i32, %c0_i32_0 : i32, i32
  }
  func.func @transform_23(%arg0: i32) -> (i32, i32) {
    %c0_i32 = arith.constant 0 : i32
    %c0_i32_0 = arith.constant 0 : i32
    %c0_i32_1 = arith.constant 0 : i32
    return %c0_i32, %c0_i32_0 : i32, i32
  }
  func.func @transform_24(%arg0: i32) -> (i32, i32, i32) {
    %c0_i32 = arith.constant 0 : i32
    %c0_i32_0 = arith.constant 0 : i32
    %c0_i32_1 = arith.constant 0 : i32
    return %arg0, %c0_i32, %c0_i32_0 : i32, i32, i32
  }
}

</mosaic_0001>

<llo_original>
// kernel: tpu_custom_call.1
$region0: #{tpu_custom_call.1}
  #allocation0 [shape = 'u32[]', space=smem, size = 0x4, offset = 0x4, fixed_abs, tag = 'smem constant byte address 0x4 - core index']
  #allocation1 [shape = 'u32[72,128]{1,0:T(1,128)}', space=vmem, size = 0x9000, scoped, tag = 'internal scratch']
  %s0 = inlined_call_operand.vmem [shape: f32[2,16,24], index: 0, kind: input, shape index: {}]
  %s1 = inlined_call_operand.vmem [shape: s32[2,16,16], index: 1, kind: input, shape index: {}]
  %s2 = inlined_call_operand.vmem [shape: f32[2,9,16], index: 2, kind: input, shape index: {}]
  %s3 = inlined_call_operand.vmem [shape: f32[2,16,16], index: 3, kind: input, shape index: {}]
  %s4 = inlined_call_operand.vmem [shape: f32[2,16,20], index: 4, kind: input, shape index: {}]
  %s5 = inlined_call_operand.vmem [shape: f32[2,1,8], index: 5, kind: input, shape index: {}]
  %s6 = inlined_call_operand.vmem [shape: f32[24,64], index: 6, kind: input, shape index: {}]
  %s7 = inlined_call_operand.vmem [shape: f32[1,64], index: 7, kind: input, shape index: {}]
  %s8 = inlined_call_operand.vmem [shape: f32[64,32], index: 8, kind: input, shape index: {}]
  %s9 = inlined_call_operand.vmem [shape: f32[1,32], index: 9, kind: input, shape index: {}]
  %s10 = inlined_call_operand.vmem [shape: f32[6,32], index: 10, kind: input, shape index: {}]
  %s11 = inlined_call_operand.vmem [shape: f32[32,6], index: 11, kind: input, shape index: {}]
  %s12 = inlined_call_operand.vmem [shape: f32[32,32], index: 12, kind: input, shape index: {}]
  %s13 = inlined_call_operand.vmem [shape: f32[32,32], index: 13, kind: input, shape index: {}]
  %s14 = inlined_call_operand.vmem [shape: f32[1,32], index: 14, kind: input, shape index: {}]
  %s15 = inlined_call_operand.vmem [shape: f32[32,32], index: 15, kind: input, shape index: {}]
  %s16 = inlined_call_operand.vmem [shape: f32[32,32], index: 16, kind: input, shape index: {}]
  %s17 = inlined_call_operand.vmem [shape: f32[1,32], index: 17, kind: input, shape index: {}]
  %s18 = inlined_call_operand.vmem [shape: f32[32,52,52], index: 18, kind: input, shape index: {}]
  %s19 = inlined_call_operand.vmem [shape: f32[1,32], index: 19, kind: input, shape index: {}]
  %s20 = inlined_call_operand.vmem [shape: f32[1,32], index: 20, kind: input, shape index: {}]
  %s21 = inlined_call_operand.vmem [shape: f32[1,32], index: 21, kind: input, shape index: {}]
  %s22 = inlined_call_operand.vmem [shape: f32[64,128], index: 22, kind: input, shape index: {}]
  %s23 = inlined_call_operand.vmem [shape: f32[1,128], index: 23, kind: input, shape index: {}]
  %s24 = inlined_call_operand.hbm [shape: f32[2,8,128], index: 24, kind: output, shape index: {}]
  %s25 = sld [smem:[#allocation0]]
  $region129: #{tpu_custom_call.1} parent=0
    _
  %s27 = ssub.s32 1, %s25
  %s28 = scalar_select 0, %s27, %s25
  $region1: #{tpu_custom_call.1} parent=0
    #allocation2 [shape = 'u8[8192]{0}', space=vmem, size = 0x2000, scoped, tag = 'output window, operand 0']
    #allocation3 [shape = 's32[2]{0}', space=sflag, size = 0x8, scoped, tag = 'scoped memory for tpu_custom_call.1']
    %29 = vsyncpa [#allocation3], 0
    %s30 = scalar_lea.sflag [#allocation3], 1
    %31 = vsyncpa %s30, 0
    loop: start=0, step=1, limit=4
    $region2: #{tpu_custom_call.1} parent=1 // loop_pre_header
      _
    $region3: #{tpu_custom_call.1} parent=1 // loop_header
      %s33 = sphi 0, %s37
      %p34 = scmp.ge.s32.totalorder %s33, 4
      %s43 = sphi 0, %s45
      %s46 = sphi 0, %s43
      %s47 = sphi 0, %s46
      %s63 = sphi 0, %s47
      %s69 = sphi 0, %s71
      %s72 = sphi 0, %s69
      %s73 = sphi 0, %s72
      %s89 = sphi 0, %s73
      %s95 = sphi 0, %s97
      %s98 = sphi 0, %s95
      %s99 = sphi 0, %s98
      %s115 = sphi 0, %s99
      %s121 = sphi 0, %s123
      %s124 = sphi 0, %s121
      %s125 = sphi 0, %s124
      %s141 = sphi 0, %s125
      %s147 = sphi 0, %s149
      %s150 = sphi 0, %s147
      %s151 = sphi 0, %s150
      %s167 = sphi 0, %s151
      %s173 = sphi 0, %s175
      %s176 = sphi 0, %s173
      %s177 = sphi 0, %s176
      %s193 = sphi 0, %s177
      %s197 = sphi 0, %s197
      %s199 = sphi 0, %s197
      %s200 = sphi 0, %s199
      %s214 = sphi 0, %s200
      %s218 = sphi 0, %s218
      %s220 = sphi 0, %s218
      %s221 = sphi 0, %s220
      %s235 = sphi 0, %s221
      %s239 = sphi 0, %s239
      %s241 = sphi 0, %s239
      %s242 = sphi 0, %s241
      %s256 = sphi 0, %s242
      %s260 = sphi 0, %s260
      %s262 = sphi 0, %s260
      %s263 = sphi 0, %s262
      %s277 = sphi 0, %s263
      %s281 = sphi 0, %s281
      %s283 = sphi 0, %s281
      %s284 = sphi 0, %s283
      %s298 = sphi 0, %s284
      %s302 = sphi 0, %s302
      %s304 = sphi 0, %s302
      %s305 = sphi 0, %s304
      %s319 = sphi 0, %s305
      %s323 = sphi 0, %s323
      %s325 = sphi 0, %s323
      %s326 = sphi 0, %s325
      %s340 = sphi 0, %s326
      %s344 = sphi 0, %s344
      %s346 = sphi 0, %s344
      %s347 = sphi 0, %s346
      %s361 = sphi 0, %s347
      %s365 = sphi 0, %s365
      %s367 = sphi 0, %s365
      %s368 = sphi 0, %s367
      %s382 = sphi 0, %s368
      %s386 = sphi 0, %s386
      %s388 = sphi 0, %s386
      %s389 = sphi 0, %s388
      %s403 = sphi 0, %s389
      %s407 = sphi 0, %s407
      %s409 = sphi 0, %s407
      %s410 = sphi 0, %s409
      %s424 = sphi 0, %s410
      %s428 = sphi 0, %s428
      %s430 = sphi 0, %s428
      %s431 = sphi 0, %s430
      %s445 = sphi 0, %s431
      %s449 = sphi 0, %s449
      %s451 = sphi 0, %s449
      %s452 = sphi 0, %s451
      %s466 = sphi 0, %s452
      %s470 = sphi 0, %s470
      %s472 = sphi 0, %s470
      %s473 = sphi 0, %s472
      %s487 = sphi 0, %s473
      %s491 = sphi 0, %s491
      %s493 = sphi 0, %s491
      %s494 = sphi 0, %s493
      %s508 = sphi 0, %s494
      %s512 = sphi 0, %s512
      %s514 = sphi 0, %s512
      %s515 = sphi 0, %s514
      %s529 = sphi 0, %s515
      %s533 = sphi 0, %s533
      %s535 = sphi 0, %s533
      %s536 = sphi 0, %s535
      %s550 = sphi 0, %s536
      %s554 = sphi 0, %s554
      %s556 = sphi 0, %s554
      %s557 = sphi 0, %s556
      %s571 = sphi 0, %s557
      %s577 = sphi 0, %s579
      %s580 = sphi 0, %s577
      %s581 = sphi 0, %s580
      %s597 = sphi 0, %s581
    $region4: #{tpu_custom_call.1} parent=1 // loop_header_branch
      %36 = sbr.rel (%p34) target = $region8
    $region5: #{tpu_custom_call.1} parent=1 // loop_body
      %s38 = ssub.s32 %s33, 1
      %s39 = ssub.s32 %s33, 2
      %s40 = sadd.s32 %s33, 1
      %s41 = ssub.s32 %s33, %s40
      %p42 = scmp.eq.s32.totalorder %s41, 0
      %s44 = sadd.s32 %s43, 1
      %s45 = scalar_select %p42, %s43, %s44
      %p48 = pneg %p42
      %p49 = scmp.eq.s32.totalorder %s33, 1
      %p50 = por %p48, %p49
      %p51 = scmp.ne.s32.totalorder %s43, %s46
      %p52 = scmp.eq.s32.totalorder %s33, 0
      %p53 = por %p51, %p52
      %p54 = scmp.ne.s32.totalorder %s43, %s46
      %p55 = scmp.eq.s32.totalorder %s38, 1
      %p56 = por %p54, %p55
      %p57 = scmp.ne.s32.totalorder %s46, %s47
      %p58 = scmp.eq.s32.totalorder %s38, 0
      %p59 = por %p57, %p58
      %p60 = scmp.ne.s32.totalorder %s46, %s47
      %p61 = scmp.eq.s32.totalorder %s39, 1
      %p62 = por %p60, %p61
      %p64 = scmp.ne.s32.totalorder %s47, %s63
      %p65 = scmp.eq.s32.totalorder %s39, 0
      %p66 = por %p64, %p65
      %s67 = ssub.s32 %s33, %s40
      %p68 = scmp.eq.s32.totalorder %s67, 0
      %s70 = sadd.s32 %s69, 1
      %s71 = scalar_select %p68, %s69, %s70
      %p74 = pneg %p68
      %p75 = scmp.eq.s32.totalorder %s33, 1
      %p76 = por %p74, %p75
      %p77 = scmp.ne.s32.totalorder %s69, %s72
      %p78 = scmp.eq.s32.totalorder %s33, 0
      %p79 = por %p77, %p78
      %p80 = scmp.ne.s32.totalorder %s69, %s72
      %p81 = scmp.eq.s32.totalorder %s38, 1
      %p82 = por %p80, %p81
      %p83 = scmp.ne.s32.totalorder %s72, %s73
      %p84 = scmp.eq.s32.totalorder %s38, 0
      %p85 = por %p83, %p84
      %p86 = scmp.ne.s32.totalorder %s72, %s73
      %p87 = scmp.eq.s32.totalorder %s39, 1
      %p88 = por %p86, %p87
      %p90 = scmp.ne.s32.totalorder %s73, %s89
      %p91 = scmp.eq.s32.totalorder %s39, 0
      %p92 = por %p90, %p91
      %s93 = ssub.s32 %s33, %s40
      %p94 = scmp.eq.s32.totalorder %s93, 0
      %s96 = sadd.s32 %s95, 1
      %s97 = scalar_select %p94, %s95, %s96
      %p100 = pneg %p94
      %p101 = scmp.eq.s32.totalorder %s33, 1
      %p102 = por %p100, %p101
      %p103 = scmp.ne.s32.totalorder %s95, %s98
      %p104 = scmp.eq.s32.totalorder %s33, 0
      %p105 = por %p103, %p104
      %p106 = scmp.ne.s32.totalorder %s95, %s98
      %p107 = scmp.eq.s32.totalorder %s38, 1
      %p108 = por %p106, %p107
      %p109 = scmp.ne.s32.totalorder %s98, %s99
      %p110 = scmp.eq.s32.totalorder %s38, 0
      %p111 = por %p109, %p110
      %p112 = scmp.ne.s32.totalorder %s98, %s99
      %p113 = scmp.eq.s32.totalorder %s39, 1
      %p114 = por %p112, %p113
      %p116 = scmp.ne.s32.totalorder %s99, %s115
      %p117 = scmp.eq.s32.totalorder %s39, 0
      %p118 = por %p116, %p117
      %s119 = ssub.s32 %s33, %s40
      %p120 = scmp.eq.s32.totalorder %s119, 0
      %s122 = sadd.s32 %s121, 1
      %s123 = scalar_select %p120, %s121, %s122
      %p126 = pneg %p120
      %p127 = scmp.eq.s32.totalorder %s33, 1
      %p128 = por %p126, %p127
      %p129 = scmp.ne.s32.totalorder %s121, %s124
      %p130 = scmp.eq.s32.totalorder %s33, 0
      %p131 = por %p129, %p130
      %p132 = scmp.ne.s32.totalorder %s121, %s124
      %p133 = scmp.eq.s32.totalorder %s38, 1
      %p134 = por %p132, %p133
      %p135 = scmp.ne.s32.totalorder %s124, %s125
      %p136 = scmp.eq.s32.totalorder %s38, 0
      %p137 = por %p135, %p136
      %p138 = scmp.ne.s32.totalorder %s124, %s125
      %p139 = scmp.eq.s32.totalorder %s39, 1
      %p140 = por %p138, %p139
      %p142 = scmp.ne.s32.totalorder %s125, %s141
      %p143 = scmp.eq.s32.totalorder %s39, 0
      %p144 = por %p142, %p143
      %s145 = ssub.s32 %s33, %s40
      %p146 = scmp.eq.s32.totalorder %s145, 0
      %s148 = sadd.s32 %s147, 1
      %s149 = scalar_select %p146, %s147, %s148
      %p152 = pneg %p146
      %p153 = scmp.eq.s32.totalorder %s33, 1
      %p154 = por %p152, %p153
      %p155 = scmp.ne.s32.totalorder %s147, %s150
      %p156 = scmp.eq.s32.totalorder %s33, 0
      %p157 = por %p155, %p156
      %p158 = scmp.ne.s32.totalorder %s147, %s150
      %p159 = scmp.eq.s32.totalorder %s38, 1
      %p160 = por %p158, %p159
      %p161 = scmp.ne.s32.totalorder %s150, %s151
      %p162 = scmp.eq.s32.totalorder %s38, 0
      %p163 = por %p161, %p162
      %p164 = scmp.ne.s32.totalorder %s150, %s151
      %p165 = scmp.eq.s32.totalorder %s39, 1
      %p166 = por %p164, %p165
      %p168 = scmp.ne.s32.totalorder %s151, %s167
      %p169 = scmp.eq.s32.totalorder %s39, 0
      %p170 = por %p168, %p169
      %s171 = ssub.s32 %s33, %s40
      %p172 = scmp.eq.s32.totalorder %s171, 0
      %s174 = sadd.s32 %s173, 1
      %s175 = scalar_select %p172, %s173, %s174
      %p178 = pneg %p172
      %p179 = scmp.eq.s32.totalorder %s33, 1
      %p180 = por %p178, %p179
      %p181 = scmp.ne.s32.totalorder %s173, %s176
      %p182 = scmp.eq.s32.totalorder %s33, 0
      %p183 = por %p181, %p182
      %p184 = scmp.ne.s32.totalorder %s173, %s176
      %p185 = scmp.eq.s32.totalorder %s38, 1
      %p186 = por %p184, %p185
      %p187 = scmp.ne.s32.totalorder %s176, %s177
      %p188 = scmp.eq.s32.totalorder %s38, 0
      %p189 = por %p187, %p188
      %p190 = scmp.ne.s32.totalorder %s176, %s177
      %p191 = scmp.eq.s32.totalorder %s39, 1
      %p192 = por %p190, %p191
      %p194 = scmp.ne.s32.totalorder %s177, %s193
      %p195 = scmp.eq.s32.totalorder %s39, 0
      %p196 = por %p194, %p195
      %s198 = sadd.s32 %s197, 1
      %p201 = scmp.eq.s32.totalorder %s33, 1
      %p202 = scmp.ne.s32.totalorder %s197, %s199
      %p203 = scmp.eq.s32.totalorder %s33, 0
      %p204 = por %p202, %p203
      %p205 = scmp.ne.s32.totalorder %s197, %s199
      %p206 = scmp.eq.s32.totalorder %s38, 1
      %p207 = por %p205, %p206
      %p208 = scmp.ne.s32.totalorder %s199, %s200
      %p209 = scmp.eq.s32.totalorder %s38, 0
      %p210 = por %p208, %p209
      %p211 = scmp.ne.s32.totalorder %s199, %s200
      %p212 = scmp.eq.s32.totalorder %s39, 1
      %p213 = por %p211, %p212
      %p215 = scmp.ne.s32.totalorder %s200, %s214
      %p216 = scmp.eq.s32.totalorder %s39, 0
      %p217 = por %p215, %p216
      %s219 = sadd.s32 %s218, 1
      %p222 = scmp.eq.s32.totalorder %s33, 1
      %p223 = scmp.ne.s32.totalorder %s218, %s220
      %p224 = scmp.eq.s32.totalorder %s33, 0
      %p225 = por %p223, %p224
      %p226 = scmp.ne.s32.totalorder %s218, %s220
      %p227 = scmp.eq.s32.totalorder %s38, 1
      %p228 = por %p226, %p227
      %p229 = scmp.ne.s32.totalorder %s220, %s221
      %p230 = scmp.eq.s32.totalorder %s38, 0
      %p231 = por %p229, %p230
      %p232 = scmp.ne.s32.totalorder %s220, %s221
      %p233 = scmp.eq.s32.totalorder %s39, 1
      %p234 = por %p232, %p233
      %p236 = scmp.ne.s32.totalorder %s221, %s235
      %p237 = scmp.eq.s32.totalorder %s39, 0
      %p238 = por %p236, %p237
      %s240 = sadd.s32 %s239, 1
      %p243 = scmp.eq.s32.totalorder %s33, 1
      %p244 = scmp.ne.s32.totalorder %s239, %s241
      %p245 = scmp.eq.s32.totalorder %s33, 0
      %p246 = por %p244, %p245
      %p247 = scmp.ne.s32.totalorder %s239, %s241
      %p248 = scmp.eq.s32.totalorder %s38, 1
      %p249 = por %p247, %p248
      %p250 = scmp.ne.s32.totalorder %s241, %s242
      %p251 = scmp.eq.s32.totalorder %s38, 0
      %p252 = por %p250, %p251
      %p253 = scmp.ne.s32.totalorder %s241, %s242
      %p254 = scmp.eq.s32.totalorder %s39, 1
      %p255 = por %p253, %p254
      %p257 = scmp.ne.s32.totalorder %s242, %s256
      %p258 = scmp.eq.s32.totalorder %s39, 0
      %p259 = por %p257, %p258
      %s261 = sadd.s32 %s260, 1
      %p264 = scmp.eq.s32.totalorder %s33, 1
      %p265 = scmp.ne.s32.totalorder %s260, %s262
      %p266 = scmp.eq.s32.totalorder %s33, 0
      %p267 = por %p265, %p266
      %p268 = scmp.ne.s32.totalorder %s260, %s262
      %p269 = scmp.eq.s32.totalorder %s38, 1
      %p270 = por %p268, %p269
      %p271 = scmp.ne.s32.totalorder %s262, %s263
      %p272 = scmp.eq.s32.totalorder %s38, 0
      %p273 = por %p271, %p272
      %p274 = scmp.ne.s32.totalorder %s262, %s263
      %p275 = scmp.eq.s32.totalorder %s39, 1
      %p276 = por %p274, %p275
      %p278 = scmp.ne.s32.totalorder %s263, %s277
      %p279 = scmp.eq.s32.totalorder %s39, 0
      %p280 = por %p278, %p279
      %s282 = sadd.s32 %s281, 1
      %p285 = scmp.eq.s32.totalorder %s33, 1
      %p286 = scmp.ne.s32.totalorder %s281, %s283
      %p287 = scmp.eq.s32.totalorder %s33, 0
      %p288 = por %p286, %p287
      %p289 = scmp.ne.s32.totalorder %s281, %s283
      %p290 = scmp.eq.s32.totalorder %s38, 1
      %p291 = por %p289, %p290
      %p292 = scmp.ne.s32.totalorder %s283, %s284
      %p293 = scmp.eq.s32.totalorder %s38, 0
      %p294 = por %p292, %p293
      %p295 = scmp.ne.s32.totalorder %s283, %s284
      %p296 = scmp.eq.s32.totalorder %s39, 1
      %p297 = por %p295, %p296
      %p299 = scmp.ne.s32.totalorder %s284, %s298
      %p300 = scmp.eq.s32.totalorder %s39, 0
      %p301 = por %p299, %p300
      %s303 = sadd.s32 %s302, 1
      %p306 = scmp.eq.s32.totalorder %s33, 1
      %p307 = scmp.ne.s32.totalorder %s302, %s304
      %p308 = scmp.eq.s32.totalorder %s33, 0
      %p309 = por %p307, %p308
      %p310 = scmp.ne.s32.totalorder %s302, %s304
      %p311 = scmp.eq.s32.totalorder %s38, 1
      %p312 = por %p310, %p311
      %p313 = scmp.ne.s32.totalorder %s304, %s305
      %p314 = scmp.eq.s32.totalorder %s38, 0
      %p315 = por %p313, %p314
      %p316 = scmp.ne.s32.totalorder %s304, %s305
      %p317 = scmp.eq.s32.totalorder %s39, 1
      %p318 = por %p316, %p317
      %p320 = scmp.ne.s32.totalorder %s305, %s319
      %p321 = scmp.eq.s32.totalorder %s39, 0
      %p322 = por %p320, %p321
      %s324 = sadd.s32 %s323, 1
      %p327 = scmp.eq.s32.totalorder %s33, 1
      %p328 = scmp.ne.s32.totalorder %s323, %s325
      %p329 = scmp.eq.s32.totalorder %s33, 0
      %p330 = por %p328, %p329
      %p331 = scmp.ne.s32.totalorder %s323, %s325
      %p332 = scmp.eq.s32.totalorder %s38, 1
      %p333 = por %p331, %p332
      %p334 = scmp.ne.s32.totalorder %s325, %s326
      %p335 = scmp.eq.s32.totalorder %s38, 0
      %p336 = por %p334, %p335
      %p337 = scmp.ne.s32.totalorder %s325, %s326
      %p338 = scmp.eq.s32.totalorder %s39, 1
      %p339 = por %p337, %p338
      %p341 = scmp.ne.s32.totalorder %s326, %s340
      %p342 = scmp.eq.s32.totalorder %s39, 0
      %p343 = por %p341, %p342
      %s345 = sadd.s32 %s344, 1
      %p348 = scmp.eq.s32.totalorder %s33, 1
      %p349 = scmp.ne.s32.totalorder %s344, %s346
      %p350 = scmp.eq.s32.totalorder %s33, 0
      %p351 = por %p349, %p350
      %p352 = scmp.ne.s32.totalorder %s344, %s346
      %p353 = scmp.eq.s32.totalorder %s38, 1
      %p354 = por %p352, %p353
      %p355 = scmp.ne.s32.totalorder %s346, %s347
      %p356 = scmp.eq.s32.totalorder %s38, 0
      %p357 = por %p355, %p356
      %p358 = scmp.ne.s32.totalorder %s346, %s347
      %p359 = scmp.eq.s32.totalorder %s39, 1
      %p360 = por %p358, %p359
      %p362 = scmp.ne.s32.totalorder %s347, %s361
      %p363 = scmp.eq.s32.totalorder %s39, 0
      %p364 = por %p362, %p363
      %s366 = sadd.s32 %s365, 1
      %p369 = scmp.eq.s32.totalorder %s33, 1
      %p370 = scmp.ne.s32.totalorder %s365, %s367
      %p371 = scmp.eq.s32.totalorder %s33, 0
      %p372 = por %p370, %p371
      %p373 = scmp.ne.s32.totalorder %s365, %s367
      %p374 = scmp.eq.s32.totalorder %s38, 1
      %p375 = por %p373, %p374
      %p376 = scmp.ne.s32.totalorder %s367, %s368
      %p377 = scmp.eq.s32.totalorder %s38, 0
      %p378 = por %p376, %p377
      %p379 = scmp.ne.s32.totalorder %s367, %s368
      %p380 = scmp.eq.s32.totalorder %s39, 1
      %p381 = por %p379, %p380
      %p383 = scmp.ne.s32.totalorder %s368, %s382
      %p384 = scmp.eq.s32.totalorder %s39, 0
      %p385 = por %p383, %p384
      %s387 = sadd.s32 %s386, 1
      %p390 = scmp.eq.s32.totalorder %s33, 1
      %p391 = scmp.ne.s32.totalorder %s386, %s388
      %p392 = scmp.eq.s32.totalorder %s33, 0
      %p393 = por %p391, %p392
      %p394 = scmp.ne.s32.totalorder %s386, %s388
      %p395 = scmp.eq.s32.totalorder %s38, 1
      %p396 = por %p394, %p395
      %p397 = scmp.ne.s32.totalorder %s388, %s389
      %p398 = scmp.eq.s32.totalorder %s38, 0
      %p399 = por %p397, %p398
      %p400 = scmp.ne.s32.totalorder %s388, %s389
      %p401 = scmp.eq.s32.totalorder %s39, 1
      %p402 = por %p400, %p401
      %p404 = scmp.ne.s32.totalorder %s389, %s403
      %p405 = scmp.eq.s32.totalorder %s39, 0
      %p406 = por %p404, %p405
      %s408 = sadd.s32 %s407, 1
      %p411 = scmp.eq.s32.totalorder %s33, 1
      %p412 = scmp.ne.s32.totalorder %s407, %s409
      %p413 = scmp.eq.s32.totalorder %s33, 0
      %p414 = por %p412, %p413
      %p415 = scmp.ne.s32.totalorder %s407, %s409
      %p416 = scmp.eq.s32.totalorder %s38, 1
      %p417 = por %p415, %p416
      %p418 = scmp.ne.s32.totalorder %s409, %s410
      %p419 = scmp.eq.s32.totalorder %s38, 0
      %p420 = por %p418, %p419
      %p421 = scmp.ne.s32.totalorder %s409, %s410
      %p422 = scmp.eq.s32.totalorder %s39, 1
      %p423 = por %p421, %p422
      %p425 = scmp.ne.s32.totalorder %s410, %s424
      %p426 = scmp.eq.s32.totalorder %s39, 0
      %p427 = por %p425, %p426
      %s429 = sadd.s32 %s428, 1
      %p432 = scmp.eq.s32.totalorder %s33, 1
      %p433 = scmp.ne.s32.totalorder %s428, %s430
      %p434 = scmp.eq.s32.totalorder %s33, 0
      %p435 = por %p433, %p434
      %p436 = scmp.ne.s32.totalorder %s428, %s430
      %p437 = scmp.eq.s32.totalorder %s38, 1
      %p438 = por %p436, %p437
      %p439 = scmp.ne.s32.totalorder %s430, %s431
      %p440 = scmp.eq.s32.totalorder %s38, 0
      %p441 = por %p439, %p440
      %p442 = scmp.ne.s32.totalorder %s430, %s431
      %p443 = scmp.eq.s32.totalorder %s39, 1
      %p444 = por %p442, %p443
      %p446 = scmp.ne.s32.totalorder %s431, %s445
      %p447 = scmp.eq.s32.totalorder %s39, 0
      %p448 = por %p446, %p447
      %s450 = sadd.s32 %s449, 1
      %p453 = scmp.eq.s32.totalorder %s33, 1
      %p454 = scmp.ne.s32.totalorder %s449, %s451
      %p455 = scmp.eq.s32.totalorder %s33, 0
      %p456 = por %p454, %p455
      %p457 = scmp.ne.s32.totalorder %s449, %s451
      %p458 = scmp.eq.s32.totalorder %s38, 1
      %p459 = por %p457, %p458
      %p460 = scmp.ne.s32.totalorder %s451, %s452
      %p461 = scmp.eq.s32.totalorder %s38, 0
      %p462 = por %p460, %p461
      %p463 = scmp.ne.s32.totalorder %s451, %s452
      %p464 = scmp.eq.s32.totalorder %s39, 1
      %p465 = por %p463, %p464
      %p467 = scmp.ne.s32.totalorder %s452, %s466
      %p468 = scmp.eq.s32.totalorder %s39, 0
      %p469 = por %p467, %p468
      %s471 = sadd.s32 %s470, 1
      %p474 = scmp.eq.s32.totalorder %s33, 1
      %p475 = scmp.ne.s32.totalorder %s470, %s472
      %p476 = scmp.eq.s32.totalorder %s33, 0
      %p477 = por %p475, %p476
      %p478 = scmp.ne.s32.totalorder %s470, %s472
      %p479 = scmp.eq.s32.totalorder %s38, 1
      %p480 = por %p478, %p479
      %p481 = scmp.ne.s32.totalorder %s472, %s473
      %p482 = scmp.eq.s32.totalorder %s38, 0
      %p483 = por %p481, %p482
      %p484 = scmp.ne.s32.totalorder %s472, %s473
      %p485 = scmp.eq.s32.totalorder %s39, 1
      %p486 = por %p484, %p485
      %p488 = scmp.ne.s32.totalorder %s473, %s487
      %p489 = scmp.eq.s32.totalorder %s39, 0
      %p490 = por %p488, %p489
      %s492 = sadd.s32 %s491, 1
      %p495 = scmp.eq.s32.totalorder %s33, 1
      %p496 = scmp.ne.s32.totalorder %s491, %s493
      %p497 = scmp.eq.s32.totalorder %s33, 0
      %p498 = por %p496, %p497
      %p499 = scmp.ne.s32.totalorder %s491, %s493
      %p500 = scmp.eq.s32.totalorder %s38, 1
      %p501 = por %p499, %p500
      %p502 = scmp.ne.s32.totalorder %s493, %s494
      %p503 = scmp.eq.s32.totalorder %s38, 0
      %p504 = por %p502, %p503
      %p505 = scmp.ne.s32.totalorder %s493, %s494
      %p506 = scmp.eq.s32.totalorder %s39, 1
      %p507 = por %p505, %p506
      %p509 = scmp.ne.s32.totalorder %s494, %s508
      %p510 = scmp.eq.s32.totalorder %s39, 0
      %p511 = por %p509, %p510
      %s513 = sadd.s32 %s512, 1
      %p516 = scmp.eq.s32.totalorder %s33, 1
      %p517 = scmp.ne.s32.totalorder %s512, %s514
      %p518 = scmp.eq.s32.totalorder %s33, 0
      %p519 = por %p517, %p518
      %p520 = scmp.ne.s32.totalorder %s512, %s514
      %p521 = scmp.eq.s32.totalorder %s38, 1
      %p522 = por %p520, %p521
      %p523 = scmp.ne.s32.totalorder %s514, %s515
      %p524 = scmp.eq.s32.totalorder %s38, 0
      %p525 = por %p523, %p524
      %p526 = scmp.ne.s32.totalorder %s514, %s515
      %p527 = scmp.eq.s32.totalorder %s39, 1
      %p528 = por %p526, %p527
      %p530 = scmp.ne.s32.totalorder %s515, %s529
      %p531 = scmp.eq.s32.totalorder %s39, 0
      %p532 = por %p530, %p531
      %s534 = sadd.s32 %s533, 1
      %p537 = scmp.eq.s32.totalorder %s33, 1
      %p538 = scmp.ne.s32.totalorder %s533, %s535
      %p539 = scmp.eq.s32.totalorder %s33, 0
      %p540 = por %p538, %p539
      %p541 = scmp.ne.s32.totalorder %s533, %s535
      %p542 = scmp.eq.s32.totalorder %s38, 1
      %p543 = por %p541, %p542
      %p544 = scmp.ne.s32.totalorder %s535, %s536
      %p545 = scmp.eq.s32.totalorder %s38, 0
      %p546 = por %p544, %p545
      %p547 = scmp.ne.s32.totalorder %s535, %s536
      %p548 = scmp.eq.s32.totalorder %s39, 1
      %p549 = por %p547, %p548
      %p551 = scmp.ne.s32.totalorder %s536, %s550
      %p552 = scmp.eq.s32.totalorder %s39, 0
      %p553 = por %p551, %p552
      %s555 = sadd.s32 %s554, 1
      %p558 = scmp.eq.s32.totalorder %s33, 1
      %p559 = scmp.ne.s32.totalorder %s554, %s556
      %p560 = scmp.eq.s32.totalorder %s33, 0
      %p561 = por %p559, %p560
      %p562 = scmp.ne.s32.totalorder %s554, %s556
      %p563 = scmp.eq.s32.totalorder %s38, 1
      %p564 = por %p562, %p563
      %p565 = scmp.ne.s32.totalorder %s556, %s557
      %p566 = scmp.eq.s32.totalorder %s38, 0
      %p567 = por %p565, %p566
      %p568 = scmp.ne.s32.totalorder %s556, %s557
      %p569 = scmp.eq.s32.totalorder %s39, 1
      %p570 = por %p568, %p569
      %p572 = scmp.ne.s32.totalorder %s557, %s571
      %p573 = scmp.eq.s32.totalorder %s39, 0
      %p574 = por %p572, %p573
      %s575 = ssub.s32 %s33, %s40
      %p576 = scmp.eq.s32.totalorder %s575, 0
      %s578 = sadd.s32 %s577, 1
      %s579 = scalar_select %p576, %s577, %s578
      %p582 = pneg %p576
      %p583 = scmp.eq.s32.totalorder %s33, 1
      %p584 = por %p582, %p583
      %p585 = scmp.ne.s32.totalorder %s577, %s580
      %p586 = scmp.eq.s32.totalorder %s33, 0
      %p587 = por %p585, %p586
      %p588 = scmp.ne.s32.totalorder %s577, %s580
      %p589 = scmp.eq.s32.totalorder %s38, 1
      %p590 = por %p588, %p589
      %p591 = scmp.ne.s32.totalorder %s580, %s581
      %p592 = scmp.eq.s32.totalorder %s38, 0
      %p593 = por %p591, %p592
      %p594 = scmp.ne.s32.totalorder %s580, %s581
      %p595 = scmp.eq.s32.totalorder %s39, 1
      %p596 = por %p594, %p595
      %p598 = scmp.ne.s32.totalorder %s581, %s597
      %p599 = scmp.eq.s32.totalorder %s39, 0
      %p600 = por %p598, %p599
      %p601 = scmp.le.s32.totalorder 1, %s33
      %p602 = scmp.lt.s32.totalorder %s33, 3
      %p603 = pnand %p601, %p602
      %p604 = pneg %p603
      // Predicated region
      $region9: #{tpu_custom_call.1} parent=5 // pred_check
        _
      $region10: #{tpu_custom_call.1} parent=5 // pred_check_branch
        %606 = sbr.rel (%p603) target = $region12
      $region11: #{tpu_custom_call.1} parent=5 // pred_region
        %s607 = ssub.s32 %s33, 1
        // Predicated region
        $region13: #{tpu_custom_call.1} parent=11 // pred_check
          %p608 = pneg %p210
        $region14: #{tpu_custom_call.1} parent=11 // pred_check_branch
          %610 = sbr.rel (%p608) target = $region16
        $region15: #{tpu_custom_call.1} parent=11 // pred_region
          _
        $region16: #{tpu_custom_call.1} parent=11 // pred_fallthru
          _
        // Predicated region
        $region17: #{tpu_custom_call.1} parent=11 // pred_check
          %p611 = pneg %p231
        $region18: #{tpu_custom_call.1} parent=11 // pred_check_branch
          %613 = sbr.rel (%p611) target = $region20
        $region19: #{tpu_custom_call.1} parent=11 // pred_region
          _
        $region20: #{tpu_custom_call.1} parent=11 // pred_fallthru
          _
        // Predicated region
        $region21: #{tpu_custom_call.1} parent=11 // pred_check
          %p614 = pneg %p252
        $region22: #{tpu_custom_call.1} parent=11 // pred_check_branch
          %616 = sbr.rel (%p614) target = $region24
        $region23: #{tpu_custom_call.1} parent=11 // pred_region
          _
        $region24: #{tpu_custom_call.1} parent=11 // pred_fallthru
          _
        // Predicated region
        $region25: #{tpu_custom_call.1} parent=11 // pred_check
          %p617 = pneg %p273
        $region26: #{tpu_custom_call.1} parent=11 // pred_check_branch
          %619 = sbr.rel (%p617) target = $region28
        $region27: #{tpu_custom_call.1} parent=11 // pred_region
          _
        $region28: #{tpu_custom_call.1} parent=11 // pred_fallthru
          _
        // Predicated region
        $region29: #{tpu_custom_call.1} parent=11 // pred_check
          %p620 = pneg %p294
        $region30: #{tpu_custom_call.1} parent=11 // pred_check_branch
          %622 = sbr.rel (%p620) target = $region32
        $region31: #{tpu_custom_call.1} parent=11 // pred_region
          _
        $region32: #{tpu_custom_call.1} parent=11 // pred_fallthru
          _
        // Predicated region
        $region33: #{tpu_custom_call.1} parent=11 // pred_check
          %p623 = pneg %p315
        $region34: #{tpu_custom_call.1} parent=11 // pred_check_branch
          %625 = sbr.rel (%p623) target = $region36
        $region35: #{tpu_custom_call.1} parent=11 // pred_region
          _
        $region36: #{tpu_custom_call.1} parent=11 // pred_fallthru
          _
        // Predicated region
        $region37: #{tpu_custom_call.1} parent=11 // pred_check
          %p626 = pneg %p336
        $region38: #{tpu_custom_call.1} parent=11 // pred_check_branch
          %628 = sbr.rel (%p626) target = $region40
        $region39: #{tpu_custom_call.1} parent=11 // pred_region
          _
        $region40: #{tpu_custom_call.1} parent=11 // pred_fallthru
          _
        // Predicated region
        $region41: #{tpu_custom_call.1} parent=11 // pred_check
          %p629 = pneg %p357
        $region42: #{tpu_custom_call.1} parent=11 // pred_check_branch
          %631 = sbr.rel (%p629) target = $region44
        $region43: #{tpu_custom_call.1} parent=11 // pred_region
          _
        $region44: #{tpu_custom_call.1} parent=11 // pred_fallthru
          _
        // Predicated region
        $region45: #{tpu_custom_call.1} parent=11 // pred_check
          %p632 = pneg %p378
        $region46: #{tpu_custom_call.1} parent=11 // pred_check_branch
          %634 = sbr.rel (%p632) target = $region48
        $region47: #{tpu_custom_call.1} parent=11 // pred_region
          _
        $region48: #{tpu_custom_call.1} parent=11 // pred_fallthru
          _
        // Predicated region
        $region49: #{tpu_custom_call.1} parent=11 // pred_check
          %p635 = pneg %p399
        $region50: #{tpu_custom_call.1} parent=11 // pred_check_branch
          %637 = sbr.rel (%p635) target = $region52
        $region51: #{tpu_custom_call.1} parent=11 // pred_region
          _
        $region52: #{tpu_custom_call.1} parent=11 // pred_fallthru
          _
        // Predicated region
        $region53: #{tpu_custom_call.1} parent=11 // pred_check
          %p638 = pneg %p420
        $region54: #{tpu_custom_call.1} parent=11 // pred_check_branch
          %640 = sbr.rel (%p638) target = $region56
        $region55: #{tpu_custom_call.1} parent=11 // pred_region
          _
        $region56: #{tpu_custom_call.1} parent=11 // pred_fallthru
          _
        // Predicated region
        $region57: #{tpu_custom_call.1} parent=11 // pred_check
          %p641 = pneg %p441
        $region58: #{tpu_custom_call.1} parent=11 // pred_check_branch
          %643 = sbr.rel (%p641) target = $region60
        $region59: #{tpu_custom_call.1} parent=11 // pred_region
          _
        $region60: #{tpu_custom_call.1} parent=11 // pred_fallthru
          _
        // Predicated region
        $region61: #{tpu_custom_call.1} parent=11 // pred_check
          %p644 = pneg %p462
        $region62: #{tpu_custom_call.1} parent=11 // pred_check_branch
          %646 = sbr.rel (%p644) target = $region64
        $region63: #{tpu_custom_call.1} parent=11 // pred_region
          _
        $region64: #{tpu_custom_call.1} parent=11 // pred_fallthru
          _
        // Predicated region
        $region65: #{tpu_custom_call.1} parent=11 // pred_check
          %p647 = pneg %p483
        $region66: #{tpu_custom_call.1} parent=11 // pred_check_branch
          %649 = sbr.rel (%p647) target = $region68
        $region67: #{tpu_custom_call.1} parent=11 // pred_region
          _
        $region68: #{tpu_custom_call.1} parent=11 // pred_fallthru
          _
        // Predicated region
        $region69: #{tpu_custom_call.1} parent=11 // pred_check
          %p650 = pneg %p504
        $region70: #{tpu_custom_call.1} parent=11 // pred_check_branch
          %652 = sbr.rel (%p650) target = $region72
        $region71: #{tpu_custom_call.1} parent=11 // pred_region
          _
        $region72: #{tpu_custom_call.1} parent=11 // pred_fallthru
          _
        // Predicated region
        $region73: #{tpu_custom_call.1} parent=11 // pred_check
          %p653 = pneg %p525
        $region74: #{tpu_custom_call.1} parent=11 // pred_check_branch
          %655 = sbr.rel (%p653) target = $region76
        $region75: #{tpu_custom_call.1} parent=11 // pred_region
          _
        $region76: #{tpu_custom_call.1} parent=11 // pred_fallthru
          _
        // Predicated region
        $region77: #{tpu_custom_call.1} parent=11 // pred_check
          %p656 = pneg %p546
        $region78: #{tpu_custom_call.1} parent=11 // pred_check_branch
          %658 = sbr.rel (%p656) target = $region80
        $region79: #{tpu_custom_call.1} parent=11 // pred_region
          _
        $region80: #{tpu_custom_call.1} parent=11 // pred_fallthru
          _
        // Predicated region
        $region81: #{tpu_custom_call.1} parent=11 // pred_check
          %p659 = pneg %p567
        $region82: #{tpu_custom_call.1} parent=11 // pred_check_branch
          %661 = sbr.rel (%p659) target = $region84
        $region83: #{tpu_custom_call.1} parent=11 // pred_region
          _
        $region84: #{tpu_custom_call.1} parent=11 // pred_fallthru
          _
      $region12: #{tpu_custom_call.1} parent=5 // pred_fallthru
        _
      %p662 = scmp.lt.s32.totalorder %s33, 2
      // Predicated region
      $region85: #{tpu_custom_call.1} parent=5 // pred_check
        %p663 = pneg %p662
      $region86: #{tpu_custom_call.1} parent=5 // pred_check_branch
        %665 = sbr.rel (%p663) target = $region88
      $region87: #{tpu_custom_call.1} parent=5 // pred_region
        // Predicated region
        $region89: #{tpu_custom_call.1} parent=87 // pred_check
          %p666 = pneg %p53
        $region90: #{tpu_custom_call.1} parent=87 // pred_check_branch
          %668 = sbr.rel (%p666) target = $region92
        $region91: #{tpu_custom_call.1} parent=87 // pred_region
          %p669 = scmp.lt.s32.totalorder %s33, 1
          %s670 = scalar_select %p669, %s33, 1
          %s671 = smul.addr %s670, 2
          %s672 = smul.addr %s671, 8
          %s673 = scalar_lea.vmem %s0, %s672
        $region92: #{tpu_custom_call.1} parent=87 // pred_fallthru
          _
        // Predicated region
        $region93: #{tpu_custom_call.1} parent=87 // pred_check
          %p674 = pneg %p79
        $region94: #{tpu_custom_call.1} parent=87 // pred_check_branch
          %676 = sbr.rel (%p674) target = $region96
        $region95: #{tpu_custom_call.1} parent=87 // pred_region
          %p677 = scmp.lt.s32.totalorder %s33, 1
          %s678 = scalar_select %p677, %s33, 1
          %s679 = smul.addr %s678, 2
          %s680 = smul.addr %s679, 8
          %s681 = scalar_lea.vmem %s1, %s680
        $region96: #{tpu_custom_call.1} parent=87 // pred_fallthru
          _
        // Predicated region
        $region97: #{tpu_custom_call.1} parent=87 // pred_check
          %p682 = pneg %p105
        $region98: #{tpu_custom_call.1} parent=87 // pred_check_branch
          %684 = sbr.rel (%p682) target = $region100
        $region99: #{tpu_custom_call.1} parent=87 // pred_region
          %p685 = scmp.lt.s32.totalorder %s33, 1
          %s686 = scalar_select %p685, %s33, 1
          %s687 = smul.addr %s686, 2
          %s688 = smul.addr %s687, 8
          %s689 = scalar_lea.vmem %s2, %s688
        $region100: #{tpu_custom_call.1} parent=87 // pred_fallthru
          _
        // Predicated region
        $region101: #{tpu_custom_call.1} parent=87 // pred_check
          %p690 = pneg %p131
        $region102: #{tpu_custom_call.1} parent=87 // pred_check_branch
          %692 = sbr.rel (%p690) target = $region104
        $region103: #{tpu_custom_call.1} parent=87 // pred_region
          %p693 = scmp.lt.s32.totalorder %s33, 1
          %s694 = scalar_select %p693, %s33, 1
          %s695 = smul.addr %s694, 2
          %s696 = smul.addr %s695, 8
          %s697 = scalar_lea.vmem %s3, %s696
        $region104: #{tpu_custom_call.1} parent=87 // pred_fallthru
          _
        // Predicated region
        $region105: #{tpu_custom_call.1} parent=87 // pred_check
          %p698 = pneg %p157
        $region106: #{tpu_custom_call.1} parent=87 // pred_check_branch
          %700 = sbr.rel (%p698) target = $region108
        $region107: #{tpu_custom_call.1} parent=87 // pred_region
          %p701 = scmp.lt.s32.totalorder %s33, 1
          %s702 = scalar_select %p701, %s33, 1
          %s703 = smul.addr %s702, 2
          %s704 = smul.addr %s703, 8
          %s705 = scalar_lea.vmem %s4, %s704
        $region108: #{tpu_custom_call.1} parent=87 // pred_fallthru
          _
        // Predicated region
        $region109: #{tpu_custom_call.1} parent=87 // pred_check
          %p706 = pneg %p183
        $region110: #{tpu_custom_call.1} parent=87 // pred_check_branch
          %708 = sbr.rel (%p706) target = $region112
        $region111: #{tpu_custom_call.1} parent=87 // pred_region
          %p709 = scmp.lt.s32.totalorder %s33, 1
          %s710 = scalar_select %p709, %s33, 1
          %s711 = scalar_lea.vmem %s5, %s710
        $region112: #{tpu_custom_call.1} parent=87 // pred_fallthru
          _
      $region88: #{tpu_custom_call.1} parent=5 // pred_fallthru
        _
      %p712 = scmp.le.s32.totalorder 1, %s33
      %p713 = scmp.lt.s32.totalorder %s33, 3
      %p714 = pnand %p712, %p713
      %p715 = pneg %p714
      // Predicated region
      $region113: #{tpu_custom_call.1} parent=5 // pred_check
        _
      $region114: #{tpu_custom_call.1} parent=5 // pred_check_branch
        %717 = sbr.rel (%p714) target = $region116
      $region115: #{tpu_custom_call.1} parent=5 // pred_region
        %s718 = ssub.s32 %s33, 1
        %p719 = scmp.lt.s32.totalorder %s38, 1
        %s720 = scalar_select %p719, %s38, 1
        %s721 = smul.addr %s720, 2
        %s722 = smul.addr %s721, 8
        %s723 = scalar_lea.vmem %s0, %s722
        %p724 = pneg %p59
        %p725 = pneg %p56
        %p726 = scmp.lt.s32.totalorder %s38, 1
        %s727 = scalar_select %p726, %s38, 1
        %s728 = smul.addr %s727, 2
        %s729 = smul.addr %s728, 8
        %s730 = scalar_lea.vmem %s1, %s729
        %p731 = pneg %p85
        %p732 = pneg %p82
        %p733 = scmp.lt.s32.totalorder %s38, 1
        %s734 = scalar_select %p733, %s38, 1
        %s735 = smul.addr %s734, 2
        %s736 = smul.addr %s735, 8
        %s737 = scalar_lea.vmem %s2, %s736
        %p738 = pneg %p111
        %p739 = pneg %p108
        %p740 = scmp.lt.s32.totalorder %s38, 1
        %s741 = scalar_select %p740, %s38, 1
        %s742 = smul.addr %s741, 2
        %s743 = smul.addr %s742, 8
        %s744 = scalar_lea.vmem %s3, %s743
        %p745 = pneg %p137
        %p746 = pneg %p134
        %p747 = scmp.lt.s32.totalorder %s38, 1
        %s748 = scalar_select %p747, %s38, 1
        %s749 = smul.addr %s748, 2
        %s750 = smul.addr %s749, 8
        %s751 = scalar_lea.vmem %s4, %s750
        %p752 = pneg %p163
        %p753 = pneg %p160
        %p754 = scmp.lt.s32.totalorder %s38, 1
        %s755 = scalar_select %p754, %s38, 1
        %s756 = scalar_lea.vmem %s5, %s755
        %p757 = pneg %p189
        %p758 = pneg %p186
        %p759 = pneg %p210
        %p760 = pneg %p207
        %p761 = pneg %p231
        %p762 = pneg %p228
        %p763 = pneg %p252
        %p764 = pneg %p249
        %p765 = pneg %p273
        %p766 = pneg %p270
        %p767 = pneg %p294
        %p768 = pneg %p291
        %p769 = pneg %p315
        %p770 = pneg %p312
        %p771 = pneg %p336
        %p772 = pneg %p333
        %p773 = pneg %p357
        %p774 = pneg %p354
        %p775 = pneg %p378
        %p776 = pneg %p375
        %p777 = pneg %p399
        %p778 = pneg %p396
        %p779 = pneg %p420
        %p780 = pneg %p417
        %p781 = pneg %p441
        %p782 = pneg %p438
        %p783 = pneg %p462
        %p784 = pneg %p459
        %p785 = pneg %p483
        %p786 = pneg %p480
        %p787 = pneg %p504
        %p788 = pneg %p501
        %p789 = pneg %p525
        %p790 = pneg %p522
        %p791 = pneg %p546
        %p792 = pneg %p543
        %p793 = pneg %p567
        %p794 = pneg %p564
        %p795 = pneg %p593
        %p796 = pneg %p590
        %s797 = sand.u32 %s580, 1
        %s798 = scalar_lea.sflag [#allocation3], %s797
        %s799 = sand.u32 %s580, 1
        %s800 = smul.addr %s799, 8
        %s801 = scalar_lea.vmem [#allocation2], %s800
        %p802 = scmp.lt.s32.totalorder %s38, 1
        %s803 = scalar_select %p802, %s38, 1
        %s804 = smul.addr %s803, 2
        %s805 = smul.addr %s804, 8
        %s806 = scalar_lea.vmem %s0, %s805
        %p807 = scmp.lt.s32.totalorder %s38, 1
        %s808 = scalar_select %p807, %s38, 1
        %s809 = smul.addr %s808, 2
        %s810 = smul.addr %s809, 8
        %s811 = scalar_lea.vmem %s1, %s810
        %p812 = scmp.lt.s32.totalorder %s38, 1
        %s813 = scalar_select %p812, %s38, 1
        %s814 = smul.addr %s813, 2
        %s815 = smul.addr %s814, 8
        %s816 = scalar_lea.vmem %s2, %s815
        %p817 = scmp.lt.s32.totalorder %s38, 1
        %s818 = scalar_select %p817, %s38, 1
        %s819 = smul.addr %s818, 2
        %s820 = smul.addr %s819, 8
        %s821 = scalar_lea.vmem %s3, %s820
        %p822 = scmp.lt.s32.totalorder %s38, 1
        %s823 = scalar_select %p822, %s38, 1
        %s824 = smul.addr %s823, 2
        %s825 = smul.addr %s824, 8
        %s826 = scalar_lea.vmem %s4, %s825
        %p827 = scmp.lt.s32.totalorder %s38, 1
        %s828 = scalar_select %p827, %s38, 1
        %s829 = scalar_lea.vmem %s5, %s828
        %v830 = vld [vmem:[%s806] sm:$0xff]
        %v831 = vld [vmem:[%s806 + $0x8] sm:$0xff]
        %v832 = vld [vmem:[%s6] sm:$0xff]
        %v833 = vld [vmem:[%s6 + $0x8] sm:$0xff]
        %v834 = vld [vmem:[%s6 + $0x10] sm:$0xff]
        %v835 = vld [vmem:[%s7] sm:$0x1]
        %v837 = vperm.slane %v835, 0
        %vm839 = vcmask 195584
        %v841 = vsel %vm839, %v830, 0
        %v844 = vsel %vm839, %v831, 0
        %846 = vmatpush.msra.mxu0 0.0
        %847 = vmatpush.msra.mxu0 0.0
        %848 = vmatpush.msra.mxu0 0.0
        %849 = vmatpush.msra.mxu0 0.0
        %850 = vmatpush.msra.mxu0 0.0
        %851 = vmatpush.msra.mxu0 0.0
        %852 = vmatpush.msra.mxu0 0.0
        %853 = vmatpush.msra.mxu0 0.0
        %854 = vmatpush.msra.mxu0 0.0
        %855 = vmatpush.msra.mxu0 0.0
        %856 = vmatpush.msra.mxu0 0.0
        %857 = vmatpush.msra.mxu0 0.0
        %858 = vmatpush.msra.mxu0 0.0
        %859 = vmatpush.msra.mxu0 %v834
        %860 = vmatpush.msra.mxu0 %v833
        %861 = vmatpush.msra.mxu0 %v832
        %862 = vmatmul.f32.gmra.mxu0 %v841
        %v863 = vpop.f32.mrf.mxu0
        %v864 = vadd.f32 %v837, %v863
        %865 = vmatmul.f32.gmra.mxu0 %v844
        %v866 = vpop.f32.mrf.mxu0
        %v867 = vadd.f32 %v837, %v866
        %868 = vdwg.mxu0
        %v869 = vtanh.pop %v864
        %v870 = vtanh.pop %v867
        %v871 = vld [vmem:[%s8] sm:$0xff]
        %v872 = vld [vmem:[%s8 + $0x8] sm:$0xff]
        %v873 = vld [vmem:[%s8 + $0x10] sm:$0xff]
        %v874 = vld [vmem:[%s8 + $0x18] sm:$0xff]
        %v875 = vld [vmem:[%s8 + $0x20] sm:$0xff]
        %v876 = vld [vmem:[%s8 + $0x28] sm:$0xff]
        %v877 = vld [vmem:[%s8 + $0x30] sm:$0xff]
        %v878 = vld [vmem:[%s8 + $0x38] sm:$0xff]
        %v879 = vld [vmem:[%s9] sm:$0x1]
        %v881 = vperm.slane %v879, 0
        %vm883 = vcmask 523264
        %v885 = vsel %vm883, %v869, 0
        %v888 = vsel %vm883, %v870, 0
        %890 = vmatpush.msra.mxu0 0.0
        %891 = vmatpush.msra.mxu0 0.0
        %892 = vmatpush.msra.mxu0 0.0
        %893 = vmatpush.msra.mxu0 0.0
        %894 = vmatpush.msra.mxu0 0.0
        %895 = vmatpush.msra.mxu0 0.0
        %896 = vmatpush.msra.mxu0 0.0
        %897 = vmatpush.msra.mxu0 0.0
        %898 = vmatpush.msra.mxu0 %v878
        %899 = vmatpush.msra.mxu0 %v877
        %900 = vmatpush.msra.mxu0 %v876
        %901 = vmatpush.msra.mxu0 %v875
        %902 = vmatpush.msra.mxu0 %v874
        %903 = vmatpush.msra.mxu0 %v873
        %904 = vmatpush.msra.mxu0 %v872
        %905 = vmatpush.msra.mxu0 %v871
        %906 = vmatmul.f32.gmra.mxu0 %v885
        %v907 = vpop.f32.mrf.mxu0
        %v908 = vadd.f32 %v881, %v907
        %909 = vmatmul.f32.gmra.mxu0 %v888
        %v910 = vpop.f32.mrf.mxu0
        %v911 = vadd.f32 %v881, %v910
        %912 = vdwg.mxu0
        %v913 = vmax.f32 %v908, 0.0
        %v914 = vmax.f32 %v911, 0.0
        %v915 = vld [vmem:[%s10] sm:$0x3f]
        %vm916 = vcmask 261120
        %v918 = vsel %vm916, %v915, 0
        %v921 = vsel %vm916, %v913, 0
        %v924 = vsel %vm916, %v914, 0
        %926 = vmatpush.xpose.msra.mxu0 0.0
        %927 = vmatpush.xpose.msra.mxu0 0.0
        %928 = vmatpush.xpose.msra.mxu0 0.0
        %929 = vmatpush.xpose.msra.mxu0 0.0
        %930 = vmatpush.xpose.msra.mxu0 0.0
        %931 = vmatpush.xpose.msra.mxu0 0.0
        %932 = vmatpush.xpose.msra.mxu0 0.0
        %933 = vmatpush.xpose.msra.mxu0 0.0
        %934 = vmatpush.xpose.msra.mxu0 0.0
        %935 = vmatpush.xpose.msra.mxu0 0.0
        %936 = vmatpush.xpose.msra.mxu0 0.0
        %937 = vmatpush.xpose.msra.mxu0 0.0
        %938 = vmatpush.xpose.msra.mxu0 0.0
        %939 = vmatpush.xpose.msra.mxu0 0.0
        %940 = vmatpush.xpose.msra.mxu0 %v924
        %941 = vmatpush.xpose.msra.mxu0 %v921
        %942 = vmatmul.f32.gmra.mxu0 %v918
        %v943 = vpop.f32.mrf.mxu0
        %v944 = vadd.f32 0.0, %v943
        %945 = vdwg.mxu0
        %v946 = vld [vmem:[%s11] sm:$0xff]
        %v947 = vld [vmem:[%s11 + $0x8] sm:$0xff]
        %v948 = vld [vmem:[%s11 + $0x10] sm:$0xff]
        %v949 = vld [vmem:[%s11 + $0x18] sm:$0xff]
        %950 = vmatpush.msra.mxu0 0.0
        %951 = vmatpush.msra.mxu0 0.0
        %952 = vmatpush.msra.mxu0 0.0
        %953 = vmatpush.msra.mxu0 0.0
        %954 = vmatpush.msra.mxu0 0.0
        %955 = vmatpush.msra.mxu0 0.0
        %956 = vmatpush.msra.mxu0 0.0
        %957 = vmatpush.msra.mxu0 0.0
        %958 = vmatpush.msra.mxu0 0.0
        %959 = vmatpush.msra.mxu0 0.0
        %960 = vmatpush.msra.mxu0 0.0
        %961 = vmatpush.msra.mxu0 0.0
        %962 = vmatpush.msra.mxu0 %v949
        %963 = vmatpush.msra.mxu0 %v948
        %964 = vmatpush.msra.mxu0 %v947
        %965 = vmatpush.msra.mxu0 %v946
        %966 = vmatmul.f32.gmra.mxu0 %v921
        %v967 = vpop.f32.mrf.mxu0
        %v968 = vadd.f32 0.0, %v967
        %969 = vmatmul.f32.gmra.mxu0 %v924
        %v970 = vpop.f32.mrf.mxu0
        %v971 = vadd.f32 0.0, %v970
        %972 = vdwg.mxu0
        %v973 = vld [vmem:[%s811] sm:$0xff]
        %v974 = vld [vmem:[%s811 + $0x8] sm:$0xff]
        %vm975 = vcmp.eq.s32.totalorder %v973, 0
        %vm976 = vcmp.eq.s32.totalorder %v974, 0
        %v977 = vperm.slane %v944, 0
        %979 = vset.pattern.permute.xlu0 0
        %980 = vperm.xlu0 %979, %v968
        %v981 = vpop.permute.xlu0 %980
        %984 = vset.pattern.permute.xlu0 0
        %985 = vperm.xlu0 %984, %v971
        %v986 = vpop.permute.xlu0 %985
        %v988 = vadd.f32 %v977, %v981
        %v989 = vadd.f32 %v977, %v986
        %v990 = vsel %vm975, %v988, 0.0
        %v991 = vsel %vm976, %v989, 0.0
        %v992 = vadd.f32 %v990, 0.0
        %v993 = vadd.f32 %v991, 0.0
        %vm994 = vcmp.eq.s32.totalorder %v973, 1
        %vm995 = vcmp.eq.s32.totalorder %v974, 1
        %v996 = vperm.slane %v944, 1
        %997 = vset.pattern.permute.xlu0 1
        %998 = vperm.xlu0 %997, %v968
        %v999 = vpop.permute.xlu0 %998
        %1001 = vset.pattern.permute.xlu0 1
        %1002 = vperm.xlu0 %1001, %v971
        %v1003 = vpop.permute.xlu0 %1002
        %v1005 = vadd.f32 %v996, %v999
        %v1006 = vadd.f32 %v996, %v1003
        %v1007 = vsel %vm994, %v1005, 0.0
        %v1008 = vsel %vm995, %v1006, 0.0
        %v1009 = vadd.f32 %v992, %v1007
        %v1010 = vadd.f32 %v993, %v1008
        %vm1011 = vcmp.eq.s32.totalorder %v973, 2
        %vm1012 = vcmp.eq.s32.totalorder %v974, 2
        %v1013 = vperm.slane %v944, 2
        %1014 = vset.pattern.permute.xlu0 2
        %1015 = vperm.xlu0 %1014, %v968
        %v1016 = vpop.permute.xlu0 %1015
        %1018 = vset.pattern.permute.xlu0 2
        %1019 = vperm.xlu0 %1018, %v971
        %v1020 = vpop.permute.xlu0 %1019
        %v1022 = vadd.f32 %v1013, %v1016
        %v1023 = vadd.f32 %v1013, %v1020
        %v1024 = vsel %vm1011, %v1022, 0.0
        %v1025 = vsel %vm1012, %v1023, 0.0
        %v1026 = vadd.f32 %v1009, %v1024
        %v1027 = vadd.f32 %v1010, %v1025
        %vm1028 = vcmp.eq.s32.totalorder %v973, 3
        %vm1029 = vcmp.eq.s32.totalorder %v974, 3
        %v1030 = vperm.slane %v944, 3
        %1031 = vset.pattern.permute.xlu0 3
        %1032 = vperm.xlu0 %1031, %v968
        %v1033 = vpop.permute.xlu0 %1032
        %1035 = vset.pattern.permute.xlu0 3
        %1036 = vperm.xlu0 %1035, %v971
        %v1037 = vpop.permute.xlu0 %1036
        %v1039 = vadd.f32 %v1030, %v1033
        %v1040 = vadd.f32 %v1030, %v1037
        %v1041 = vsel %vm1028, %v1039, 0.0
        %v1042 = vsel %vm1029, %v1040, 0.0
        %v1043 = vadd.f32 %v1026, %v1041
        %v1044 = vadd.f32 %v1027, %v1042
        %vm1045 = vcmp.eq.s32.totalorder %v973, 4
        %vm1046 = vcmp.eq.s32.totalorder %v974, 4
        %v1047 = vperm.slane %v944, 4
        %1048 = vset.pattern.permute.xlu0 4
        %1049 = vperm.xlu0 %1048, %v968
        %v1050 = vpop.permute.xlu0 %1049
        %1052 = vset.pattern.permute.xlu0 4
        %1053 = vperm.xlu0 %1052, %v971
        %v1054 = vpop.permute.xlu0 %1053
        %v1056 = vadd.f32 %v1047, %v1050
        %v1057 = vadd.f32 %v1047, %v1054
        %v1058 = vsel %vm1045, %v1056, 0.0
        %v1059 = vsel %vm1046, %v1057, 0.0
        %v1060 = vadd.f32 %v1043, %v1058
        %v1061 = vadd.f32 %v1044, %v1059
        %vm1062 = vcmp.eq.s32.totalorder %v973, 5
        %vm1063 = vcmp.eq.s32.totalorder %v974, 5
        %v1064 = vperm.slane %v944, 5
        %1065 = vset.pattern.permute.xlu0 5
        %1066 = vperm.xlu0 %1065, %v968
        %v1067 = vpop.permute.xlu0 %1066
        %1069 = vset.pattern.permute.xlu0 5
        %1070 = vperm.xlu0 %1069, %v971
        %v1071 = vpop.permute.xlu0 %1070
        %v1073 = vadd.f32 %v1064, %v1067
        %v1074 = vadd.f32 %v1064, %v1071
        %v1075 = vsel %vm1062, %v1073, 0.0
        %v1076 = vsel %vm1063, %v1074, 0.0
        %v1077 = vadd.f32 %v1060, %v1075
        %v1078 = vadd.f32 %v1061, %v1076
        %vm1079 = vcmask 130048
        %v1080 = vsel %vm1079, %v1077, 0.0
        %1081 = vadd.xlane.f32.xlu0 %v1080
        %v1082 = vpop.xlane.xlu0 %1081
        %v1083 = vsel %vm1079, %v1078, 0.0
        %1084 = vadd.xlane.f32.xlu0 %v1083
        %v1085 = vpop.xlane.xlu0 %1084
        %v1086 = vrcp.pop 16.0
        %v1087 = vmul.f32 16.0, %v1086
        %v1088 = vsub.f32 1.0, %v1087
        %v1089 = vmul.f32 %v1086, %v1088
        %v1090 = vadd.f32 %v1086, %v1089
        %vm1091 = vweird.f32 %v1086
        %v1092 = vsel %vm1091, %v1086, %v1090
        %v1093 = vmul.f32 %v1082, %v1092
        %v1094 = vmul.f32 %v1085, %v1092
        %v1095 = vadd.f32 %v913, %v1093
        %v1096 = vadd.f32 %v914, %v1094
        %v1097 = vld [vmem:[%s816] sm:$0xff]
        %v1098 = vld [vmem:[%s816 + $0x8] sm:$0x1]
        %v1100 = vsel %vm1079, %v1097, 0
        %v1103 = vsel %vm1079, %v1098, 0
        %1105 = vmatpush.msra.mxu0 0.0
        %1106 = vmatpush.msra.mxu0 0.0
        %1107 = vmatpush.msra.mxu0 0.0
        %1108 = vmatpush.msra.mxu0 0.0
        %1109 = vmatpush.msra.mxu0 0.0
        %1110 = vmatpush.msra.mxu0 0.0
        %1111 = vmatpush.msra.mxu0 0.0
        %1112 = vmatpush.msra.mxu0 0.0
        %1113 = vmatpush.msra.mxu0 0.0
        %1114 = vmatpush.msra.mxu0 0.0
        %1115 = vmatpush.msra.mxu0 0.0
        %1116 = vmatpush.msra.mxu0 0.0
        %1117 = vmatpush.msra.mxu0 0.0
        %1118 = vmatpush.msra.mxu0 0.0
        %1119 = vmatpush.msra.mxu0 %v1096
        %1120 = vmatpush.msra.mxu0 %v1095
        %1121 = vmatmul.f32.gmra.mxu0 %v1100
        %v1122 = vpop.f32.mrf.mxu0
        %v1123 = vadd.f32 0.0, %v1122
        %1124 = vmatmul.f32.gmra.mxu0 %v1103
        %v1125 = vpop.f32.mrf.mxu0
        %v1126 = vadd.f32 0.0, %v1125
        %1127 = vdwg.mxu0
        %v1128 = vld [vmem:[%s12] sm:$0xff]
        %v1129 = vld [vmem:[%s12 + $0x8] sm:$0xff]
        %v1130 = vld [vmem:[%s12 + $0x10] sm:$0xff]
        %v1131 = vld [vmem:[%s12 + $0x18] sm:$0xff]
        %v1133 = vsel %vm916, %v1123, 0
        %v1136 = vsel %vm916, %v1126, 0
        %1138 = vmatpush.msra.mxu0 0.0
        %1139 = vmatpush.msra.mxu0 0.0
        %1140 = vmatpush.msra.mxu0 0.0
        %1141 = vmatpush.msra.mxu0 0.0
        %1142 = vmatpush.msra.mxu0 0.0
        %1143 = vmatpush.msra.mxu0 0.0
        %1144 = vmatpush.msra.mxu0 0.0
        %1145 = vmatpush.msra.mxu0 0.0
        %1146 = vmatpush.msra.mxu0 0.0
        %1147 = vmatpush.msra.mxu0 0.0
        %1148 = vmatpush.msra.mxu0 0.0
        %1149 = vmatpush.msra.mxu0 0.0
        %1150 = vmatpush.msra.mxu0 %v1131
        %1151 = vmatpush.msra.mxu0 %v1130
        %1152 = vmatpush.msra.mxu0 %v1129
        %1153 = vmatpush.msra.mxu0 %v1128
        %1154 = vmatmul.f32.gmra.mxu0 %v1133
        %v1155 = vpop.f32.mrf.mxu0
        %v1156 = vadd.f32 0.0, %v1155
        %1157 = vmatmul.f32.gmra.mxu0 %v1136
        %v1158 = vpop.f32.mrf.mxu0
        %v1159 = vadd.f32 0.0, %v1158
        %1160 = vdwg.mxu0
        %v1162 = vsel %vm916, %v1156, 0
        %v1165 = vsel %vm916, %v1159, 0
        %1167 = vmatpush.xpose.msra.mxu0 0.0
        %1168 = vmatpush.xpose.msra.mxu0 0.0
        %1169 = vmatpush.xpose.msra.mxu0 0.0
        %1170 = vmatpush.xpose.msra.mxu0 0.0
        %1171 = vmatpush.xpose.msra.mxu0 0.0
        %1172 = vmatpush.xpose.msra.mxu0 0.0
        %1173 = vmatpush.xpose.msra.mxu0 0.0
        %1174 = vmatpush.xpose.msra.mxu0 0.0
        %1175 = vmatpush.xpose.msra.mxu0 0.0
        %1176 = vmatpush.xpose.msra.mxu0 0.0
        %1177 = vmatpush.xpose.msra.mxu0 0.0
        %1178 = vmatpush.xpose.msra.mxu0 0.0
        %1179 = vmatpush.xpose.msra.mxu0 0.0
        %1180 = vmatpush.xpose.msra.mxu0 0.0
        %1181 = vmatpush.xpose.msra.mxu0 %v1136
        %1182 = vmatpush.xpose.msra.mxu0 %v1133
        %1183 = vmatmul.f32.gmra.mxu0 %v1162
        %v1184 = vpop.f32.mrf.mxu0
        %v1185 = vadd.f32 0.0, %v1184
        %1186 = vmatmul.f32.gmra.mxu0 %v1165
        %v1187 = vpop.f32.mrf.mxu0
        %v1188 = vadd.f32 0.0, %v1187
        %1189 = vdwg.mxu0
        %v1190 = vmul.f32 %v1185, 0.17677669
        %v1191 = vmul.f32 %v1188, 0.17677669
        %vm1192 = vcmask 72704
        %v1193 = vsel %vm1192, %v1190, -inf
        %1194 = vmax.xlane.f32.xlu0 %v1193
        %v1195 = vpop.xlane.xlu0 %1194
        %vm1196 = vcmask 65536
        %v1197 = vsel %vm1196, %v1191, -inf
        %1198 = vmax.xlane.f32.xlu0 %v1197
        %v1199 = vpop.xlane.xlu0 %1198
        %v1200 = vsub.f32 %v1190, %v1195
        %v1201 = vsub.f32 %v1191, %v1199
        %v1202 = vmul.f32 %v1200, 1.442695
        %v1203 = vpow.pop %v1202
        %v1204 = vmul.f32 %v1201, 1.442695
        %v1205 = vpow.pop %v1204
        %v1206 = vsel %vm1192, %v1203, 0.0
        %1207 = vadd.xlane.f32.xlu0 %v1206
        %v1208 = vpop.xlane.xlu0 %1207
        %v1209 = vsel %vm1196, %v1205, 0.0
        %1210 = vadd.xlane.f32.xlu0 %v1209
        %v1211 = vpop.xlane.xlu0 %1210
        %v1212 = vrcp.pop %v1208
        %v1213 = vrcp.pop %v1211
        %v1214 = vmul.f32 %v1203, %v1212
        %v1215 = vmul.f32 %v1205, %v1213
        %v1216 = vld [vmem:[%s13] sm:$0xff]
        %v1217 = vld [vmem:[%s13 + $0x8] sm:$0xff]
        %v1218 = vld [vmem:[%s13 + $0x10] sm:$0xff]
        %v1219 = vld [vmem:[%s13 + $0x18] sm:$0xff]
        %v1220 = vld [vmem:[%s14] sm:$0x1]
        %v1222 = vperm.slane %v1220, 0
        %1224 = vmatpush.msra.mxu0 0.0
        %1225 = vmatpush.msra.mxu0 0.0
        %1226 = vmatpush.msra.mxu0 0.0
        %1227 = vmatpush.msra.mxu0 0.0
        %1228 = vmatpush.msra.mxu0 0.0
        %1229 = vmatpush.msra.mxu0 0.0
        %1230 = vmatpush.msra.mxu0 0.0
        %1231 = vmatpush.msra.mxu0 0.0
        %1232 = vmatpush.msra.mxu0 0.0
        %1233 = vmatpush.msra.mxu0 0.0
        %1234 = vmatpush.msra.mxu0 0.0
        %1235 = vmatpush.msra.mxu0 0.0
        %1236 = vmatpush.msra.mxu0 %v1219
        %1237 = vmatpush.msra.mxu0 %v1218
        %1238 = vmatpush.msra.mxu0 %v1217
        %1239 = vmatpush.msra.mxu0 %v1216
        %1240 = vmatmul.f32.gmra.mxu0 %v1133
        %v1241 = vpop.f32.mrf.mxu0
        %v1242 = vadd.f32 %v1222, %v1241
        %1243 = vmatmul.f32.gmra.mxu0 %v1136
        %v1244 = vpop.f32.mrf.mxu0
        %v1245 = vadd.f32 %v1222, %v1244
        %1246 = vdwg.mxu0
        %v1248 = vsel %vm1192, %v1214, 0
        %v1251 = vsel %vm1192, %v1215, 0
        %vm1253 = vcmask 1040384
        %v1255 = vsel %vm1253, %v1245, 0
        %1257 = vmatpush.msra.mxu0 0.0
        %1258 = vmatpush.msra.mxu0 0.0
        %1259 = vmatpush.msra.mxu0 0.0
        %1260 = vmatpush.msra.mxu0 0.0
        %1261 = vmatpush.msra.mxu0 0.0
        %1262 = vmatpush.msra.mxu0 0.0
        %1263 = vmatpush.msra.mxu0 0.0
        %1264 = vmatpush.msra.mxu0 0.0
        %1265 = vmatpush.msra.mxu0 0.0
        %1266 = vmatpush.msra.mxu0 0.0
        %1267 = vmatpush.msra.mxu0 0.0
        %1268 = vmatpush.msra.mxu0 0.0
        %1269 = vmatpush.msra.mxu0 0.0
        %1270 = vmatpush.msra.mxu0 0.0
        %1271 = vmatpush.msra.mxu0 %v1255
        %1272 = vmatpush.msra.mxu0 %v1242
        %1273 = vmatmul.f32.gmra.mxu0 %v1248
        %v1274 = vpop.f32.mrf.mxu0
        %v1275 = vadd.f32 0.0, %v1274
        %1276 = vmatmul.f32.gmra.mxu0 %v1251
        %v1277 = vpop.f32.mrf.mxu0
        %v1278 = vadd.f32 0.0, %v1277
        %1279 = vdwg.mxu0
        %v1280 = vmax.f32 %v1275, 0.0
        %v1281 = vmax.f32 %v1278, 0.0
        %v1282 = vld [vmem:[%s15] sm:$0xff]
        %v1283 = vld [vmem:[%s15 + $0x8] sm:$0xff]
        %v1284 = vld [vmem:[%s15 + $0x10] sm:$0xff]
        %v1285 = vld [vmem:[%s15 + $0x18] sm:$0xff]
        %v1287 = vsel %vm916, %v1280, 0
        %v1290 = vsel %vm916, %v1281, 0
        %1292 = vmatpush.msra.mxu0 0.0
        %1293 = vmatpush.msra.mxu0 0.0
        %1294 = vmatpush.msra.mxu0 0.0
        %1295 = vmatpush.msra.mxu0 0.0
        %1296 = vmatpush.msra.mxu0 0.0
        %1297 = vmatpush.msra.mxu0 0.0
        %1298 = vmatpush.msra.mxu0 0.0
        %1299 = vmatpush.msra.mxu0 0.0
        %1300 = vmatpush.msra.mxu0 0.0
        %1301 = vmatpush.msra.mxu0 0.0
        %1302 = vmatpush.msra.mxu0 0.0
        %1303 = vmatpush.msra.mxu0 0.0
        %1304 = vmatpush.msra.mxu0 %v1285
        %1305 = vmatpush.msra.mxu0 %v1284
        %1306 = vmatpush.msra.mxu0 %v1283
        %1307 = vmatpush.msra.mxu0 %v1282
        %1308 = vmatmul.f32.gmra.mxu0 %v1287
        %v1309 = vpop.f32.mrf.mxu0
        %v1310 = vadd.f32 0.0, %v1309
        %1311 = vmatmul.f32.gmra.mxu0 %v1290
        %v1312 = vpop.f32.mrf.mxu0
        %v1313 = vadd.f32 0.0, %v1312
        %1314 = vdwg.mxu0
        %v1316 = vsel %vm916, %v1310, 0
        %v1319 = vsel %vm916, %v1313, 0
        %1321 = vmatpush.xpose.msra.mxu0 0.0
        %1322 = vmatpush.xpose.msra.mxu0 0.0
        %1323 = vmatpush.xpose.msra.mxu0 0.0
        %1324 = vmatpush.xpose.msra.mxu0 0.0
        %1325 = vmatpush.xpose.msra.mxu0 0.0
        %1326 = vmatpush.xpose.msra.mxu0 0.0
        %1327 = vmatpush.xpose.msra.mxu0 0.0
        %1328 = vmatpush.xpose.msra.mxu0 0.0
        %1329 = vmatpush.xpose.msra.mxu0 0.0
        %1330 = vmatpush.xpose.msra.mxu0 0.0
        %1331 = vmatpush.xpose.msra.mxu0 0.0
        %1332 = vmatpush.xpose.msra.mxu0 0.0
        %1333 = vmatpush.xpose.msra.mxu0 0.0
        %1334 = vmatpush.xpose.msra.mxu0 0.0
        %1335 = vmatpush.xpose.msra.mxu0 %v1290
        %1336 = vmatpush.xpose.msra.mxu0 %v1287
        %1337 = vmatmul.f32.gmra.mxu0 %v1316
        %v1338 = vpop.f32.mrf.mxu0
        %v1339 = vadd.f32 0.0, %v1338
        %1340 = vmatmul.f32.gmra.mxu0 %v1319
        %v1341 = vpop.f32.mrf.mxu0
        %v1342 = vadd.f32 0.0, %v1341
        %1343 = vdwg.mxu0
        %v1344 = vmul.f32 %v1339, 0.17677669
        %v1345 = vmul.f32 %v1342, 0.17677669
        %v1346 = vsel %vm1192, %v1344, -inf
        %1347 = vmax.xlane.f32.xlu0 %v1346
        %v1348 = vpop.xlane.xlu0 %1347
        %v1349 = vsel %vm1196, %v1345, -inf
        %1350 = vmax.xlane.f32.xlu0 %v1349
        %v1351 = vpop.xlane.xlu0 %1350
        %v1352 = vsub.f32 %v1344, %v1348
        %v1353 = vsub.f32 %v1345, %v1351
        %v1354 = vmul.f32 %v1352, 1.442695
        %v1355 = vpow.pop %v1354
        %v1356 = vmul.f32 %v1353, 1.442695
        %v1357 = vpow.pop %v1356
        %v1358 = vsel %vm1192, %v1355, 0.0
        %1359 = vadd.xlane.f32.xlu0 %v1358
        %v1360 = vpop.xlane.xlu0 %1359
        %v1361 = vsel %vm1196, %v1357, 0.0
        %1362 = vadd.xlane.f32.xlu0 %v1361
        %v1363 = vpop.xlane.xlu0 %1362
        %v1364 = vrcp.pop %v1360
        %v1365 = vrcp.pop %v1363
        %v1366 = vmul.f32 %v1355, %v1364
        %v1367 = vmul.f32 %v1357, %v1365
        %v1368 = vld [vmem:[%s16] sm:$0xff]
        %v1369 = vld [vmem:[%s16 + $0x8] sm:$0xff]
        %v1370 = vld [vmem:[%s16 + $0x10] sm:$0xff]
        %v1371 = vld [vmem:[%s16 + $0x18] sm:$0xff]
        %v1372 = vld [vmem:[%s17] sm:$0x1]
        %v1374 = vperm.slane %v1372, 0
        %1376 = vmatpush.msra.mxu0 0.0
        %1377 = vmatpush.msra.mxu0 0.0
        %1378 = vmatpush.msra.mxu0 0.0
        %1379 = vmatpush.msra.mxu0 0.0
        %1380 = vmatpush.msra.mxu0 0.0
        %1381 = vmatpush.msra.mxu0 0.0
        %1382 = vmatpush.msra.mxu0 0.0
        %1383 = vmatpush.msra.mxu0 0.0
        %1384 = vmatpush.msra.mxu0 0.0
        %1385 = vmatpush.msra.mxu0 0.0
        %1386 = vmatpush.msra.mxu0 0.0
        %1387 = vmatpush.msra.mxu0 0.0
        %1388 = vmatpush.msra.mxu0 %v1371
        %1389 = vmatpush.msra.mxu0 %v1370
        %1390 = vmatpush.msra.mxu0 %v1369
        %1391 = vmatpush.msra.mxu0 %v1368
        %1392 = vmatmul.f32.gmra.mxu0 %v1287
        %v1393 = vpop.f32.mrf.mxu0
        %v1394 = vadd.f32 %v1374, %v1393
        %1395 = vmatmul.f32.gmra.mxu0 %v1290
        %v1396 = vpop.f32.mrf.mxu0
        %v1397 = vadd.f32 %v1374, %v1396
        %1398 = vdwg.mxu0
        %v1400 = vsel %vm1192, %v1366, 0
        %v1403 = vsel %vm1192, %v1367, 0
        %v1406 = vsel %vm1253, %v1397, 0
        %1408 = vmatpush.msra.mxu0 0.0
        %1409 = vmatpush.msra.mxu0 0.0
        %1410 = vmatpush.msra.mxu0 0.0
        %1411 = vmatpush.msra.mxu0 0.0
        %1412 = vmatpush.msra.mxu0 0.0
        %1413 = vmatpush.msra.mxu0 0.0
        %1414 = vmatpush.msra.mxu0 0.0
        %1415 = vmatpush.msra.mxu0 0.0
        %1416 = vmatpush.msra.mxu0 0.0
        %1417 = vmatpush.msra.mxu0 0.0
        %1418 = vmatpush.msra.mxu0 0.0
        %1419 = vmatpush.msra.mxu0 0.0
        %1420 = vmatpush.msra.mxu0 0.0
        %1421 = vmatpush.msra.mxu0 0.0
        %1422 = vmatpush.msra.mxu0 %v1406
        %1423 = vmatpush.msra.mxu0 %v1394
        %1424 = vmatmul.f32.gmra.mxu0 %v1400
        %v1425 = vpop.f32.mrf.mxu0
        %v1426 = vadd.f32 0.0, %v1425
        %1427 = vmatmul.f32.gmra.mxu0 %v1403
        %v1428 = vpop.f32.mrf.mxu0
        %1429 = vdwg.mxu0
        %v1430 = vmax.f32 %v1426, 0.0
        %1431 = vxpose.xlu0.b32.start [1/16] %v1097, 128
        %1432 = vxpose.xlu0.b32.cont [2/16] 0.0, 128
        %1433 = vxpose.xlu0.b32.cont [3/16] 0.0, 128
        %1434 = vxpose.xlu0.b32.cont [4/16] 0.0, 128
        %1435 = vxpose.xlu0.b32.cont [5/16] 0.0, 128
        %1436 = vxpose.xlu0.b32.cont [6/16] 0.0, 128
        %1437 = vxpose.xlu0.b32.cont [7/16] 0.0, 128
        %1438 = vxpose.xlu0.b32.cont [8/16] 0.0, 128
        %1439 = vxpose.xlu0.b32.cont [9/16] 0.0, 128
        %1440 = vxpose.xlu0.b32.cont [10/16] 0.0, 128
        %1441 = vxpose.xlu0.b32.cont [11/16] 0.0, 128
        %1442 = vxpose.xlu0.b32.cont [12/16] 0.0, 128
        %1443 = vxpose.xlu0.b32.cont [13/16] 0.0, 128
        %1444 = vxpose.xlu0.b32.cont [14/16] 0.0, 128
        %1445 = vxpose.xlu0.b32.cont [15/16] 0.0, 128
        %1446 = vxpose.xlu0.b32.end [16/16] 0.0, 128
        %v1447 = vpop.trf.xlu0
        %v1448 = vpop.trf.xlu0
        %v1449 = vpop.trf.xlu0
        %v1450 = vpop.trf.xlu0
        %v1451 = vpop.trf.xlu0
        %v1452 = vpop.trf.xlu0
        %v1453 = vpop.trf.xlu0
        %v1454 = vpop.trf.xlu0
        %v1455 = vpop.trf.xlu0
        %v1456 = vpop.trf.xlu0
        %v1457 = vpop.trf.xlu0
        %v1458 = vpop.trf.xlu0
        %v1459 = vpop.trf.xlu0
        %v1460 = vpop.trf.xlu0
        %v1461 = vpop.trf.xlu0
        %v1462 = vpop.trf.xlu0
        %vm1463 = vcmask 31744
        %v1465 = vsel %vm1463, %v1447, 0
        %v1468 = vsel %vm1463, %v1448, 0
        %vm1470 = vcmask 1043456
        %v1472 = vsel %vm1470, %v1430, 0
        %1474 = vmatpush.msra.mxu0 0.0
        %1475 = vmatpush.msra.mxu0 0.0
        %1476 = vmatpush.msra.mxu0 0.0
        %1477 = vmatpush.msra.mxu0 0.0
        %1478 = vmatpush.msra.mxu0 0.0
        %1479 = vmatpush.msra.mxu0 0.0
        %1480 = vmatpush.msra.mxu0 0.0
        %1481 = vmatpush.msra.mxu0 0.0
        %1482 = vmatpush.msra.mxu0 0.0
        %1483 = vmatpush.msra.mxu0 0.0
        %1484 = vmatpush.msra.mxu0 0.0
        %1485 = vmatpush.msra.mxu0 0.0
        %1486 = vmatpush.msra.mxu0 0.0
        %1487 = vmatpush.msra.mxu0 0.0
        %1488 = vmatpush.msra.mxu0 0.0
        %1489 = vmatpush.msra.mxu0 %v1472
        %1490 = vmatmul.f32.gmra.mxu0 %v1465
        %v1491 = vpop.f32.mrf.mxu0
        %v1492 = vadd.f32 0.0, %v1491
        %1493 = vmatmul.f32.gmra.mxu0 %v1468
        %v1494 = vpop.f32.mrf.mxu0
        %v1495 = vadd.f32 0.0, %v1494
        %1496 = vdwg.mxu0
        %v1497 = vadd.f32 %v1095, %v1492
        %v1498 = vadd.f32 %v1096, %v1495
        %v1499 = vld [vmem:[%s821] sm:$0xff]
        %v1500 = vld [vmem:[%s821 + $0x8] sm:$0xff]
        %v1502 = vsel %vm1079, %v1499, 0
        %v1505 = vsel %vm1079, %v1500, 0
        %1507 = vmatpush.msra.mxu0 0.0
        %1508 = vmatpush.msra.mxu0 0.0
        %1509 = vmatpush.msra.mxu0 0.0
        %1510 = vmatpush.msra.mxu0 0.0
        %1511 = vmatpush.msra.mxu0 0.0
        %1512 = vmatpush.msra.mxu0 0.0
        %1513 = vmatpush.msra.mxu0 0.0
        %1514 = vmatpush.msra.mxu0 0.0
        %1515 = vmatpush.msra.mxu0 0.0
        %1516 = vmatpush.msra.mxu0 0.0
        %1517 = vmatpush.msra.mxu0 0.0
        %1518 = vmatpush.msra.mxu0 0.0
        %1519 = vmatpush.msra.mxu0 0.0
        %1520 = vmatpush.msra.mxu0 0.0
        %1521 = vmatpush.msra.mxu0 %v1498
        %1522 = vmatpush.msra.mxu0 %v1497
        %1523 = vmatmul.f32.gmra.mxu0 %v1502
        %v1524 = vpop.f32.mrf.mxu0
        %v1525 = vadd.f32 0.0, %v1524
        %1526 = vmatmul.f32.gmra.mxu0 %v1505
        %v1527 = vpop.f32.mrf.mxu0
        %v1528 = vadd.f32 0.0, %v1527
        %1529 = vdwg.mxu0
        %v1530 = vld [vmem:[%s826] sm:$0xff]
        %v1531 = vld [vmem:[%s826 + $0x8] sm:$0xff]
        %1534 = vrot.lane.b32.xlu0 %v1530, 32
        %v1535 = vpop.permute.xlu0 %1534
        %1536 = vrot.lane.b32.xlu0 %v1531, 32
        %v1537 = vpop.permute.xlu0 %1536
        %v1540 = vsel %vm916, %v1525, %v1535
        %v1541 = vsel %vm916, %v1528, %v1537
        %v1542 = vld [vmem:[%s18] sm:$0xff]
        %v1543 = vld [vmem:[%s18 + $0x8] sm:$0xff]
        %v1544 = vld [vmem:[%s18 + $0x10] sm:$0xff]
        %v1545 = vld [vmem:[%s18 + $0x18] sm:$0xff]
        %v1546 = vld [vmem:[%s18 + $0x20] sm:$0xff]
        %v1547 = vld [vmem:[%s18 + $0x28] sm:$0xff]
        %v1548 = vld [vmem:[%s18 + $0x30] sm:$0xf]
        %v1549 = vld [vmem:[%s18 + $0x38] sm:$0xff]
        %v1550 = vld [vmem:[%s18 + $0x40] sm:$0xff]
        %v1551 = vld [vmem:[%s18 + $0x48] sm:$0xff]
        %v1552 = vld [vmem:[%s18 + $0x50] sm:$0xff]
        %v1553 = vld [vmem:[%s18 + $0x58] sm:$0xff]
        %v1554 = vld [vmem:[%s18 + $0x60] sm:$0xff]
        %v1555 = vld [vmem:[%s18 + $0x68] sm:$0xf]
        %v1556 = vld [vmem:[%s18 + $0x70] sm:$0xff]
        %v1557 = vld [vmem:[%s18 + $0x78] sm:$0xff]
        %v1558 = vld [vmem:[%s18 + $0x80] sm:$0xff]
        %v1559 = vld [vmem:[%s18 + $0x88] sm:$0xff]
        %v1560 = vld [vmem:[%s18 + $0x90] sm:$0xff]
        %v1561 = vld [vmem:[%s18 + $0x98] sm:$0xff]
        %v1562 = vld [vmem:[%s18 + $0xa0] sm:$0xf]
        %v1563 = vld [vmem:[%s18 + $0xa8] sm:$0xff]
        %v1564 = vld [vmem:[%s18 + $0xb0] sm:$0xff]
        %v1565 = vld [vmem:[%s18 + $0xb8] sm:$0xff]
        %v1566 = vld [vmem:[%s18 + $0xc0] sm:$0xff]
        %v1567 = vld [vmem:[%s18 + $0xc8] sm:$0xff]
        %v1568 = vld [vmem:[%s18 + $0xd0] sm:$0xff]
        %v1569 = vld [vmem:[%s18 + $0xd8] sm:$0xf]
        %v1570 = vld [vmem:[%s18 + $0xe0] sm:$0xff]
        %v1571 = vld [vmem:[%s18 + $0xe8] sm:$0xff]
        %v1572 = vld [vmem:[%s18 + $0xf0] sm:$0xff]
        %v1573 = vld [vmem:[%s18 + $0xf8] sm:$0xff]
        %v1574 = vld [vmem:[%s18 + $0x100] sm:$0xff]
        %v1575 = vld [vmem:[%s18 + $0x108] sm:$0xff]
        %v1576 = vld [vmem:[%s18 + $0x110] sm:$0xf]
        %v1577 = vld [vmem:[%s18 + $0x118] sm:$0xff]
        %v1578 = vld [vmem:[%s18 + $0x120] sm:$0xff]
        %v1579 = vld [vmem:[%s18 + $0x128] sm:$0xff]
        %v1580 = vld [vmem:[%s18 + $0x130] sm:$0xff]
        %v1581 = vld [vmem:[%s18 + $0x138] sm:$0xff]
        %v1582 = vld [vmem:[%s18 + $0x140] sm:$0xff]
        %v1583 = vld [vmem:[%s18 + $0x148] sm:$0xf]
        %v1584 = vld [vmem:[%s18 + $0x150] sm:$0xff]
        %v1585 = vld [vmem:[%s18 + $0x158] sm:$0xff]
        %v1586 = vld [vmem:[%s18 + $0x160] sm:$0xff]
        %v1587 = vld [vmem:[%s18 + $0x168] sm:$0xff]
        %v1588 = vld [vmem:[%s18 + $0x170] sm:$0xff]
        %v1589 = vld [vmem:[%s18 + $0x178] sm:$0xff]
        %v1590 = vld [vmem:[%s18 + $0x180] sm:$0xf]
        %v1591 = vld [vmem:[%s18 + $0x188] sm:$0xff]
        %v1592 = vld [vmem:[%s18 + $0x190] sm:$0xff]
        %v1593 = vld [vmem:[%s18 + $0x198] sm:$0xff]
        %v1594 = vld [vmem:[%s18 + $0x1a0] sm:$0xff]
        %v1595 = vld [vmem:[%s18 + $0x1a8] sm:$0xff]
        %v1596 = vld [vmem:[%s18 + $0x1b0] sm:$0xff]
        %v1597 = vld [vmem:[%s18 + $0x1b8] sm:$0xf]
        %v1598 = vld [vmem:[%s18 + $0x1c0] sm:$0xff]
        %v1599 = vld [vmem:[%s18 + $0x1c8] sm:$0xff]
        %v1600 = vld [vmem:[%s18 + $0x1d0] sm:$0xff]
        %v1601 = vld [vmem:[%s18 + $0x1d8] sm:$0xff]
        %v1602 = vld [vmem:[%s18 + $0x1e0] sm:$0xff]
        %v1603 = vld [vmem:[%s18 + $0x1e8] sm:$0xff]
        %v1604 = vld [vmem:[%s18 + $0x1f0] sm:$0xf]
        %v1605 = vld [vmem:[%s18 + $0x1f8] sm:$0xff]
        %v1606 = vld [vmem:[%s18 + $0x200] sm:$0xff]
        %v1607 = vld [vmem:[%s18 + $0x208] sm:$0xff]
        %v1608 = vld [vmem:[%s18 + $0x210] sm:$0xff]
        %v1609 = vld [vmem:[%s18 + $0x218] sm:$0xff]
        %v1610 = vld [vmem:[%s18 + $0x220] sm:$0xff]
        %v1611 = vld [vmem:[%s18 + $0x228] sm:$0xf]
        %v1612 = vld [vmem:[%s18 + $0x230] sm:$0xff]
        %v1613 = vld [vmem:[%s18 + $0x238] sm:$0xff]
        %v1614 = vld [vmem:[%s18 + $0x240] sm:$0xff]
        %v1615 = vld [vmem:[%s18 + $0x248] sm:$0xff]
        %v1616 = vld [vmem:[%s18 + $0x250] sm:$0xff]
        %v1617 = vld [vmem:[%s18 + $0x258] sm:$0xff]
        %v1618 = vld [vmem:[%s18 + $0x260] sm:$0xf]
        %v1619 = vld [vmem:[%s18 + $0x268] sm:$0xff]
        %v1620 = vld [vmem:[%s18 + $0x270] sm:$0xff]
        %v1621 = vld [vmem:[%s18 + $0x278] sm:$0xff]
        %v1622 = vld [vmem:[%s18 + $0x280] sm:$0xff]
        %v1623 = vld [vmem:[%s18 + $0x288] sm:$0xff]
        %v1624 = vld [vmem:[%s18 + $0x290] sm:$0xff]
        %v1625 = vld [vmem:[%s18 + $0x298] sm:$0xf]
        %v1626 = vld [vmem:[%s18 + $0x2a0] sm:$0xff]
        %v1627 = vld [vmem:[%s18 + $0x2a8] sm:$0xff]
        %v1628 = vld [vmem:[%s18 + $0x2b0] sm:$0xff]
        %v1629 = vld [vmem:[%s18 + $0x2b8] sm:$0xff]
        %v1630 = vld [vmem:[%s18 + $0x2c0] sm:$0xff]
        %v1631 = vld [vmem:[%s18 + $0x2c8] sm:$0xff]
        %v1632 = vld [vmem:[%s18 + $0x2d0] sm:$0xf]
        %v1633 = vld [vmem:[%s18 + $0x2d8] sm:$0xff]
        %v1634 = vld [vmem:[%s18 + $0x2e0] sm:$0xff]
        %v1635 = vld [vmem:[%s18 + $0x2e8] sm:$0xff]
        %v1636 = vld [vmem:[%s18 + $0x2f0] sm:$0xff]
        %v1637 = vld [vmem:[%s18 + $0x2f8] sm:$0xff]
        %v1638 = vld [vmem:[%s18 + $0x300] sm:$0xff]
        %v1639 = vld [vmem:[%s18 + $0x308] sm:$0xf]
        %v1640 = vld [vmem:[%s18 + $0x310] sm:$0xff]
        %v1641 = vld [vmem:[%s18 + $0x318] sm:$0xff]
        %v1642 = vld [vmem:[%s18 + $0x320] sm:$0xff]
        %v1643 = vld [vmem:[%s18 + $0x328] sm:$0xff]
        %v1644 = vld [vmem:[%s18 + $0x330] sm:$0xff]
        %v1645 = vld [vmem:[%s18 + $0x338] sm:$0xff]
        %v1646 = vld [vmem:[%s18 + $0x340] sm:$0xf]
        %v1647 = vld [vmem:[%s18 + $0x348] sm:$0xff]
        %v1648 = vld [vmem:[%s18 + $0x350] sm:$0xff]
        %v1649 = vld [vmem:[%s18 + $0x358] sm:$0xff]
        %v1650 = vld [vmem:[%s18 + $0x360] sm:$0xff]
        %v1651 = vld [vmem:[%s18 + $0x368] sm:$0xff]
        %v1652 = vld [vmem:[%s18 + $0x370] sm:$0xff]
        %v1653 = vld [vmem:[%s18 + $0x378] sm:$0xf]
        %v1654 = vld [vmem:[%s18 + $0x380] sm:$0xff]
        %v1655 = vld [vmem:[%s18 + $0x388] sm:$0xff]
        %v1656 = vld [vmem:[%s18 + $0x390] sm:$0xff]
        %v1657 = vld [vmem:[%s18 + $0x398] sm:$0xff]
        %v1658 = vld [vmem:[%s18 + $0x3a0] sm:$0xff]
        %v1659 = vld [vmem:[%s18 + $0x3a8] sm:$0xff]
        %v1660 = vld [vmem:[%s18 + $0x3b0] sm:$0xf]
        %v1661 = vld [vmem:[%s18 + $0x3b8] sm:$0xff]
        %v1662 = vld [vmem:[%s18 + $0x3c0] sm:$0xff]
        %v1663 = vld [vmem:[%s18 + $0x3c8] sm:$0xff]
        %v1664 = vld [vmem:[%s18 + $0x3d0] sm:$0xff]
        %v1665 = vld [vmem:[%s18 + $0x3d8] sm:$0xff]
        %v1666 = vld [vmem:[%s18 + $0x3e0] sm:$0xff]
        %v1667 = vld [vmem:[%s18 + $0x3e8] sm:$0xf]
        %v1668 = vld [vmem:[%s18 + $0x3f0] sm:$0xff]
        %v1669 = vld [vmem:[%s18 + $0x3f8] sm:$0xff]
        %v1670 = vld [vmem:[%s18 + $0x400] sm:$0xff]
        %v1671 = vld [vmem:[%s18 + $0x408] sm:$0xff]
        %v1672 = vld [vmem:[%s18 + $0x410] sm:$0xff]
        %v1673 = vld [vmem:[%s18 + $0x418] sm:$0xff]
        %v1674 = vld [vmem:[%s18 + $0x420] sm:$0xf]
        %v1675 = vld [vmem:[%s18 + $0x428] sm:$0xff]
        %v1676 = vld [vmem:[%s18 + $0x430] sm:$0xff]
        %v1677 = vld [vmem:[%s18 + $0x438] sm:$0xff]
        %v1678 = vld [vmem:[%s18 + $0x440] sm:$0xff]
        %v1679 = vld [vmem:[%s18 + $0x448] sm:$0xff]
        %v1680 = vld [vmem:[%s18 + $0x450] sm:$0xff]
        %v1681 = vld [vmem:[%s18 + $0x458] sm:$0xf]
        %v1682 = vld [vmem:[%s18 + $0x460] sm:$0xff]
        %v1683 = vld [vmem:[%s18 + $0x468] sm:$0xff]
        %v1684 = vld [vmem:[%s18 + $0x470] sm:$0xff]
        %v1685 = vld [vmem:[%s18 + $0x478] sm:$0xff]
        %v1686 = vld [vmem:[%s18 + $0x480] sm:$0xff]
        %v1687 = vld [vmem:[%s18 + $0x488] sm:$0xff]
        %v1688 = vld [vmem:[%s18 + $0x490] sm:$0xf]
        %v1689 = vld [vmem:[%s18 + $0x498] sm:$0xff]
        %v1690 = vld [vmem:[%s18 + $0x4a0] sm:$0xff]
        %v1691 = vld [vmem:[%s18 + $0x4a8] sm:$0xff]
        %v1692 = vld [vmem:[%s18 + $0x4b0] sm:$0xff]
        %v1693 = vld [vmem:[%s18 + $0x4b8] sm:$0xff]
        %v1694 = vld [vmem:[%s18 + $0x4c0] sm:$0xff]
        %v1695 = vld [vmem:[%s18 + $0x4c8] sm:$0xf]
        %v1696 = vld [vmem:[%s18 + $0x4d0] sm:$0xff]
        %v1697 = vld [vmem:[%s18 + $0x4d8] sm:$0xff]
        %v1698 = vld [vmem:[%s18 + $0x4e0] sm:$0xff]
        %v1699 = vld [vmem:[%s18 + $0x4e8] sm:$0xff]
        %v1700 = vld [vmem:[%s18 + $0x4f0] sm:$0xff]
        %v1701 = vld [vmem:[%s18 + $0x4f8] sm:$0xff]
        %v1702 = vld [vmem:[%s18 + $0x500] sm:$0xf]
        %v1703 = vld [vmem:[%s18 + $0x508] sm:$0xff]
        %v1704 = vld [vmem:[%s18 + $0x510] sm:$0xff]
        %v1705 = vld [vmem:[%s18 + $0x518] sm:$0xff]
        %v1706 = vld [vmem:[%s18 + $0x520] sm:$0xff]
        %v1707 = vld [vmem:[%s18 + $0x528] sm:$0xff]
        %v1708 = vld [vmem:[%s18 + $0x530] sm:$0xff]
        %v1709 = vld [vmem:[%s18 + $0x538] sm:$0xf]
        %v1710 = vld [vmem:[%s18 + $0x540] sm:$0xff]
        %v1711 = vld [vmem:[%s18 + $0x548] sm:$0xff]
        %v1712 = vld [vmem:[%s18 + $0x550] sm:$0xff]
        %v1713 = vld [vmem:[%s18 + $0x558] sm:$0xff]
        %v1714 = vld [vmem:[%s18 + $0x560] sm:$0xff]
        %v1715 = vld [vmem:[%s18 + $0x568] sm:$0xff]
        %v1716 = vld [vmem:[%s18 + $0x570] sm:$0xf]
        %v1717 = vld [vmem:[%s18 + $0x578] sm:$0xff]
        %v1718 = vld [vmem:[%s18 + $0x580] sm:$0xff]
        %v1719 = vld [vmem:[%s18 + $0x588] sm:$0xff]
        %v1720 = vld [vmem:[%s18 + $0x590] sm:$0xff]
        %v1721 = vld [vmem:[%s18 + $0x598] sm:$0xff]
        %v1722 = vld [vmem:[%s18 + $0x5a0] sm:$0xff]
        %v1723 = vld [vmem:[%s18 + $0x5a8] sm:$0xf]
        %v1724 = vld [vmem:[%s18 + $0x5b0] sm:$0xff]
        %v1725 = vld [vmem:[%s18 + $0x5b8] sm:$0xff]
        %v1726 = vld [vmem:[%s18 + $0x5c0] sm:$0xff]
        %v1727 = vld [vmem:[%s18 + $0x5c8] sm:$0xff]
        %v1728 = vld [vmem:[%s18 + $0x5d0] sm:$0xff]
        %v1729 = vld [vmem:[%s18 + $0x5d8] sm:$0xff]
        %v1730 = vld [vmem:[%s18 + $0x5e0] sm:$0xf]
        %v1731 = vld [vmem:[%s18 + $0x5e8] sm:$0xff]
        %v1732 = vld [vmem:[%s18 + $0x5f0] sm:$0xff]
        %v1733 = vld [vmem:[%s18 + $0x5f8] sm:$0xff]
        %v1734 = vld [vmem:[%s18 + $0x600] sm:$0xff]
        %v1735 = vld [vmem:[%s18 + $0x608] sm:$0xff]
        %v1736 = vld [vmem:[%s18 + $0x610] sm:$0xff]
        %v1737 = vld [vmem:[%s18 + $0x618] sm:$0xf]
        %v1738 = vld [vmem:[%s18 + $0x620] sm:$0xff]
        %v1739 = vld [vmem:[%s18 + $0x628] sm:$0xff]
        %v1740 = vld [vmem:[%s18 + $0x630] sm:$0xff]
        %v1741 = vld [vmem:[%s18 + $0x638] sm:$0xff]
        %v1742 = vld [vmem:[%s18 + $0x640] sm:$0xff]
        %v1743 = vld [vmem:[%s18 + $0x648] sm:$0xff]
        %v1744 = vld [vmem:[%s18 + $0x650] sm:$0xf]
        %v1745 = vld [vmem:[%s18 + $0x658] sm:$0xff]
        %v1746 = vld [vmem:[%s18 + $0x660] sm:$0xff]
        %v1747 = vld [vmem:[%s18 + $0x668] sm:$0xff]
        %v1748 = vld [vmem:[%s18 + $0x670] sm:$0xff]
        %v1749 = vld [vmem:[%s18 + $0x678] sm:$0xff]
        %v1750 = vld [vmem:[%s18 + $0x680] sm:$0xff]
        %v1751 = vld [vmem:[%s18 + $0x688] sm:$0xf]
        %v1752 = vld [vmem:[%s18 + $0x690] sm:$0xff]
        %v1753 = vld [vmem:[%s18 + $0x698] sm:$0xff]
        %v1754 = vld [vmem:[%s18 + $0x6a0] sm:$0xff]
        %v1755 = vld [vmem:[%s18 + $0x6a8] sm:$0xff]
        %v1756 = vld [vmem:[%s18 + $0x6b0] sm:$0xff]
        %v1757 = vld [vmem:[%s18 + $0x6b8] sm:$0xff]
        %v1758 = vld [vmem:[%s18 + $0x6c0] sm:$0xf]
        %v1759 = vld [vmem:[%s18 + $0x6c8] sm:$0xff]
        %v1760 = vld [vmem:[%s18 + $0x6d0] sm:$0xff]
        %v1761 = vld [vmem:[%s18 + $0x6d8] sm:$0xff]
        %v1762 = vld [vmem:[%s18 + $0x6e0] sm:$0xff]
        %v1763 = vld [vmem:[%s18 + $0x6e8] sm:$0xff]
        %v1764 = vld [vmem:[%s18 + $0x6f0] sm:$0xff]
        %v1765 = vld [vmem:[%s18 + $0x6f8] sm:$0xf]
        %vm1766 = vcmask 424960
        %v1768 = vsel %vm1766, %v1540, 0
        %v1771 = vsel %vm1766, %v1542, 0
        %v1774 = vsel %vm1766, %v1543, 0
        %v1777 = vsel %vm1766, %v1544, 0
        %v1780 = vsel %vm1766, %v1545, 0
        %v1783 = vsel %vm1766, %v1546, 0
        %v1786 = vsel %vm1766, %v1547, 0
        %v1789 = vsel %vm1766, %v1548, 0
        %1791 = vmatpush.xpose.msra.mxu0 0.0
        %1792 = vmatpush.xpose.msra.mxu0 0.0
        %1793 = vmatpush.xpose.msra.mxu0 0.0
        %1794 = vmatpush.xpose.msra.mxu0 0.0
        %1795 = vmatpush.xpose.msra.mxu0 0.0
        %1796 = vmatpush.xpose.msra.mxu0 0.0
        %1797 = vmatpush.xpose.msra.mxu0 0.0
        %1798 = vmatpush.xpose.msra.mxu0 0.0
        %1799 = vmatpush.xpose.msra.mxu0 0.0
        %1800 = vmatpush.xpose.msra.mxu0 %v1789
        %1801 = vmatpush.xpose.msra.mxu0 %v1786
        %1802 = vmatpush.xpose.msra.mxu0 %v1783
        %1803 = vmatpush.xpose.msra.mxu0 %v1780
        %1804 = vmatpush.xpose.msra.mxu0 %v1777
        %1805 = vmatpush.xpose.msra.mxu0 %v1774
        %1806 = vmatpush.xpose.msra.mxu0 %v1771
        %1807 = vmatmul.f32.gmra.mxu0 %v1768
        %v1808 = vpop.f32.mrf.mxu0
        %v1809 = vadd.f32 0.0, %v1808
        %1810 = vdwg.mxu0
        %v1812 = vsel %vm1766, %v1549, 0
        %v1815 = vsel %vm1766, %v1550, 0
        %v1818 = vsel %vm1766, %v1551, 0
        %v1821 = vsel %vm1766, %v1552, 0
        %v1824 = vsel %vm1766, %v1553, 0
        %v1827 = vsel %vm1766, %v1554, 0
        %v1830 = vsel %vm1766, %v1555, 0
        %1832 = vmatpush.xpose.msra.mxu0 0.0
        %1833 = vmatpush.xpose.msra.mxu0 0.0
        %1834 = vmatpush.xpose.msra.mxu0 0.0
        %1835 = vmatpush.xpose.msra.mxu0 0.0
        %1836 = vmatpush.xpose.msra.mxu0 0.0
        %1837 = vmatpush.xpose.msra.mxu0 0.0
        %1838 = vmatpush.xpose.msra.mxu0 0.0
        %1839 = vmatpush.xpose.msra.mxu0 0.0
        %1840 = vmatpush.xpose.msra.mxu0 0.0
        %1841 = vmatpush.xpose.msra.mxu0 %v1830
        %1842 = vmatpush.xpose.msra.mxu0 %v1827
        %1843 = vmatpush.xpose.msra.mxu0 %v1824
        %1844 = vmatpush.xpose.msra.mxu0 %v1821
        %1845 = vmatpush.xpose.msra.mxu0 %v1818
        %1846 = vmatpush.xpose.msra.mxu0 %v1815
        %1847 = vmatpush.xpose.msra.mxu0 %v1812
        %1848 = vmatmul.f32.gmra.mxu0 %v1768
        %v1849 = vpop.f32.mrf.mxu0
        %v1850 = vadd.f32 0.0, %v1849
        %1851 = vdwg.mxu0
        %v1853 = vsel %vm1766, %v1556, 0
        %v1856 = vsel %vm1766, %v1557, 0
        %v1859 = vsel %vm1766, %v1558, 0
        %v1862 = vsel %vm1766, %v1559, 0
        %v1865 = vsel %vm1766, %v1560, 0
        %v1868 = vsel %vm1766, %v1561, 0
        %v1871 = vsel %vm1766, %v1562, 0
        %1873 = vmatpush.xpose.msra.mxu0 0.0
        %1874 = vmatpush.xpose.msra.mxu0 0.0
        %1875 = vmatpush.xpose.msra.mxu0 0.0
        %1876 = vmatpush.xpose.msra.mxu0 0.0
        %1877 = vmatpush.xpose.msra.mxu0 0.0
        %1878 = vmatpush.xpose.msra.mxu0 0.0
        %1879 = vmatpush.xpose.msra.mxu0 0.0
        %1880 = vmatpush.xpose.msra.mxu0 0.0
        %1881 = vmatpush.xpose.msra.mxu0 0.0
        %1882 = vmatpush.xpose.msra.mxu0 %v1871
        %1883 = vmatpush.xpose.msra.mxu0 %v1868
        %1884 = vmatpush.xpose.msra.mxu0 %v1865
        %1885 = vmatpush.xpose.msra.mxu0 %v1862
        %1886 = vmatpush.xpose.msra.mxu0 %v1859
        %1887 = vmatpush.xpose.msra.mxu0 %v1856
        %1888 = vmatpush.xpose.msra.mxu0 %v1853
        %1889 = vmatmul.f32.gmra.mxu0 %v1768
        %v1890 = vpop.f32.mrf.mxu0
        %v1891 = vadd.f32 0.0, %v1890
        %1892 = vdwg.mxu0
        %v1894 = vsel %vm1766, %v1563, 0
        %v1897 = vsel %vm1766, %v1564, 0
        %v1900 = vsel %vm1766, %v1565, 0
        %v1903 = vsel %vm1766, %v1566, 0
        %v1906 = vsel %vm1766, %v1567, 0
        %v1909 = vsel %vm1766, %v1568, 0
        %v1912 = vsel %vm1766, %v1569, 0
        %1914 = vmatpush.xpose.msra.mxu0 0.0
        %1915 = vmatpush.xpose.msra.mxu0 0.0
        %1916 = vmatpush.xpose.msra.mxu0 0.0
        %1917 = vmatpush.xpose.msra.mxu0 0.0
        %1918 = vmatpush.xpose.msra.mxu0 0.0
        %1919 = vmatpush.xpose.msra.mxu0 0.0
        %1920 = vmatpush.xpose.msra.mxu0 0.0
        %1921 = vmatpush.xpose.msra.mxu0 0.0
        %1922 = vmatpush.xpose.msra.mxu0 0.0
        %1923 = vmatpush.xpose.msra.mxu0 %v1912
        %1924 = vmatpush.xpose.msra.mxu0 %v1909
        %1925 = vmatpush.xpose.msra.mxu0 %v1906
        %1926 = vmatpush.xpose.msra.mxu0 %v1903
        %1927 = vmatpush.xpose.msra.mxu0 %v1900
        %1928 = vmatpush.xpose.msra.mxu0 %v1897
        %1929 = vmatpush.xpose.msra.mxu0 %v1894
        %1930 = vmatmul.f32.gmra.mxu0 %v1768
        %v1931 = vpop.f32.mrf.mxu0
        %v1932 = vadd.f32 0.0, %v1931
        %1933 = vdwg.mxu0
        %v1935 = vsel %vm1766, %v1570, 0
        %v1938 = vsel %vm1766, %v1571, 0
        %v1941 = vsel %vm1766, %v1572, 0
        %v1944 = vsel %vm1766, %v1573, 0
        %v1947 = vsel %vm1766, %v1574, 0
        %v1950 = vsel %vm1766, %v1575, 0
        %v1953 = vsel %vm1766, %v1576, 0
        %1955 = vmatpush.xpose.msra.mxu0 0.0
        %1956 = vmatpush.xpose.msra.mxu0 0.0
        %1957 = vmatpush.xpose.msra.mxu0 0.0
        %1958 = vmatpush.xpose.msra.mxu0 0.0
        %1959 = vmatpush.xpose.msra.mxu0 0.0
        %1960 = vmatpush.xpose.msra.mxu0 0.0
        %1961 = vmatpush.xpose.msra.mxu0 0.0
        %1962 = vmatpush.xpose.msra.mxu0 0.0
        %1963 = vmatpush.xpose.msra.mxu0 0.0
        %1964 = vmatpush.xpose.msra.mxu0 %v1953
        %1965 = vmatpush.xpose.msra.mxu0 %v1950
        %1966 = vmatpush.xpose.msra.mxu0 %v1947
        %1967 = vmatpush.xpose.msra.mxu0 %v1944
        %1968 = vmatpush.xpose.msra.mxu0 %v1941
        %1969 = vmatpush.xpose.msra.mxu0 %v1938
        %1970 = vmatpush.xpose.msra.mxu0 %v1935
        %1971 = vmatmul.f32.gmra.mxu0 %v1768
        %v1972 = vpop.f32.mrf.mxu0
        %v1973 = vadd.f32 0.0, %v1972
        %1974 = vdwg.mxu0
        %v1976 = vsel %vm1766, %v1577, 0
        %v1979 = vsel %vm1766, %v1578, 0
        %v1982 = vsel %vm1766, %v1579, 0
        %v1985 = vsel %vm1766, %v1580, 0
        %v1988 = vsel %vm1766, %v1581, 0
        %v1991 = vsel %vm1766, %v1582, 0
        %v1994 = vsel %vm1766, %v1583, 0
        %1996 = vmatpush.xpose.msra.mxu0 0.0
        %1997 = vmatpush.xpose.msra.mxu0 0.0
        %1998 = vmatpush.xpose.msra.mxu0 0.0
        %1999 = vmatpush.xpose.msra.mxu0 0.0
        %2000 = vmatpush.xpose.msra.mxu0 0.0
        %2001 = vmatpush.xpose.msra.mxu0 0.0
        %2002 = vmatpush.xpose.msra.mxu0 0.0
        %2003 = vmatpush.xpose.msra.mxu0 0.0
        %2004 = vmatpush.xpose.msra.mxu0 0.0
        %2005 = vmatpush.xpose.msra.mxu0 %v1994
        %2006 = vmatpush.xpose.msra.mxu0 %v1991
        %2007 = vmatpush.xpose.msra.mxu0 %v1988
        %2008 = vmatpush.xpose.msra.mxu0 %v1985
        %2009 = vmatpush.xpose.msra.mxu0 %v1982
        %2010 = vmatpush.xpose.msra.mxu0 %v1979
        %2011 = vmatpush.xpose.msra.mxu0 %v1976
        %2012 = vmatmul.f32.gmra.mxu0 %v1768
        %v2013 = vpop.f32.mrf.mxu0
        %v2014 = vadd.f32 0.0, %v2013
        %2015 = vdwg.mxu0
        %v2017 = vsel %vm1766, %v1584, 0
        %v2020 = vsel %vm1766, %v1585, 0
        %v2023 = vsel %vm1766, %v1586, 0
        %v2026 = vsel %vm1766, %v1587, 0
        %v2029 = vsel %vm1766, %v1588, 0
        %v2032 = vsel %vm1766, %v1589, 0
        %v2035 = vsel %vm1766, %v1590, 0
        %2037 = vmatpush.xpose.msra.mxu0 0.0
        %2038 = vmatpush.xpose.msra.mxu0 0.0
        %2039 = vmatpush.xpose.msra.mxu0 0.0
        %2040 = vmatpush.xpose.msra.mxu0 0.0
        %2041 = vmatpush.xpose.msra.mxu0 0.0
        %2042 = vmatpush.xpose.msra.mxu0 0.0
        %2043 = vmatpush.xpose.msra.mxu0 0.0
        %2044 = vmatpush.xpose.msra.mxu0 0.0
        %2045 = vmatpush.xpose.msra.mxu0 0.0
        %2046 = vmatpush.xpose.msra.mxu0 %v2035
        %2047 = vmatpush.xpose.msra.mxu0 %v2032
        %2048 = vmatpush.xpose.msra.mxu0 %v2029
        %2049 = vmatpush.xpose.msra.mxu0 %v2026
        %2050 = vmatpush.xpose.msra.mxu0 %v2023
        %2051 = vmatpush.xpose.msra.mxu0 %v2020
        %2052 = vmatpush.xpose.msra.mxu0 %v2017
        %2053 = vmatmul.f32.gmra.mxu0 %v1768
        %v2054 = vpop.f32.mrf.mxu0
        %v2055 = vadd.f32 0.0, %v2054
        %2056 = vdwg.mxu0
        %v2058 = vsel %vm1766, %v1591, 0
        %v2061 = vsel %vm1766, %v1592, 0
        %v2064 = vsel %vm1766, %v1593, 0
        %v2067 = vsel %vm1766, %v1594, 0
        %v2070 = vsel %vm1766, %v1595, 0
        %v2073 = vsel %vm1766, %v1596, 0
        %v2076 = vsel %vm1766, %v1597, 0
        %2078 = vmatpush.xpose.msra.mxu0 0.0
        %2079 = vmatpush.xpose.msra.mxu0 0.0
        %2080 = vmatpush.xpose.msra.mxu0 0.0
        %2081 = vmatpush.xpose.msra.mxu0 0.0
        %2082 = vmatpush.xpose.msra.mxu0 0.0
        %2083 = vmatpush.xpose.msra.mxu0 0.0
        %2084 = vmatpush.xpose.msra.mxu0 0.0
        %2085 = vmatpush.xpose.msra.mxu0 0.0
        %2086 = vmatpush.xpose.msra.mxu0 0.0
        %2087 = vmatpush.xpose.msra.mxu0 %v2076
        %2088 = vmatpush.xpose.msra.mxu0 %v2073
        %2089 = vmatpush.xpose.msra.mxu0 %v2070
        %2090 = vmatpush.xpose.msra.mxu0 %v2067
        %2091 = vmatpush.xpose.msra.mxu0 %v2064
        %2092 = vmatpush.xpose.msra.mxu0 %v2061
        %2093 = vmatpush.xpose.msra.mxu0 %v2058
        %2094 = vmatmul.f32.gmra.mxu0 %v1768
        %v2095 = vpop.f32.mrf.mxu0
        %v2096 = vadd.f32 0.0, %v2095
        %2097 = vdwg.mxu0
        %v2099 = vsel %vm1766, %v1598, 0
        %v2102 = vsel %vm1766, %v1599, 0
        %v2105 = vsel %vm1766, %v1600, 0
        %v2108 = vsel %vm1766, %v1601, 0
        %v2111 = vsel %vm1766, %v1602, 0
        %v2114 = vsel %vm1766, %v1603, 0
        %v2117 = vsel %vm1766, %v1604, 0
        %2119 = vmatpush.xpose.msra.mxu0 0.0
        %2120 = vmatpush.xpose.msra.mxu0 0.0
        %2121 = vmatpush.xpose.msra.mxu0 0.0
        %2122 = vmatpush.xpose.msra.mxu0 0.0
        %2123 = vmatpush.xpose.msra.mxu0 0.0
        %2124 = vmatpush.xpose.msra.mxu0 0.0
        %2125 = vmatpush.xpose.msra.mxu0 0.0
        %2126 = vmatpush.xpose.msra.mxu0 0.0
        %2127 = vmatpush.xpose.msra.mxu0 0.0
        %2128 = vmatpush.xpose.msra.mxu0 %v2117
        %2129 = vmatpush.xpose.msra.mxu0 %v2114
        %2130 = vmatpush.xpose.msra.mxu0 %v2111
        %2131 = vmatpush.xpose.msra.mxu0 %v2108
        %2132 = vmatpush.xpose.msra.mxu0 %v2105
        %2133 = vmatpush.xpose.msra.mxu0 %v2102
        %2134 = vmatpush.xpose.msra.mxu0 %v2099
        %2135 = vmatmul.f32.gmra.mxu0 %v1768
        %v2136 = vpop.f32.mrf.mxu0
        %v2137 = vadd.f32 0.0, %v2136
        %2138 = vdwg.mxu0
        %v2140 = vsel %vm1766, %v1605, 0
        %v2143 = vsel %vm1766, %v1606, 0
        %v2146 = vsel %vm1766, %v1607, 0
        %v2149 = vsel %vm1766, %v1608, 0
        %v2152 = vsel %vm1766, %v1609, 0
        %v2155 = vsel %vm1766, %v1610, 0
        %v2158 = vsel %vm1766, %v1611, 0
        %2160 = vmatpush.xpose.msra.mxu0 0.0
        %2161 = vmatpush.xpose.msra.mxu0 0.0
        %2162 = vmatpush.xpose.msra.mxu0 0.0
        %2163 = vmatpush.xpose.msra.mxu0 0.0
        %2164 = vmatpush.xpose.msra.mxu0 0.0
        %2165 = vmatpush.xpose.msra.mxu0 0.0
        %2166 = vmatpush.xpose.msra.mxu0 0.0
        %2167 = vmatpush.xpose.msra.mxu0 0.0
        %2168 = vmatpush.xpose.msra.mxu0 0.0
        %2169 = vmatpush.xpose.msra.mxu0 %v2158
        %2170 = vmatpush.xpose.msra.mxu0 %v2155
        %2171 = vmatpush.xpose.msra.mxu0 %v2152
        %2172 = vmatpush.xpose.msra.mxu0 %v2149
        %2173 = vmatpush.xpose.msra.mxu0 %v2146
        %2174 = vmatpush.xpose.msra.mxu0 %v2143
        %2175 = vmatpush.xpose.msra.mxu0 %v2140
        %2176 = vmatmul.f32.gmra.mxu0 %v1768
        %v2177 = vpop.f32.mrf.mxu0
        %v2178 = vadd.f32 0.0, %v2177
        %2179 = vdwg.mxu0
        %v2181 = vsel %vm1766, %v1612, 0
        %v2184 = vsel %vm1766, %v1613, 0
        %v2187 = vsel %vm1766, %v1614, 0
        %v2190 = vsel %vm1766, %v1615, 0
        %v2193 = vsel %vm1766, %v1616, 0
        %v2196 = vsel %vm1766, %v1617, 0
        %v2199 = vsel %vm1766, %v1618, 0
        %2201 = vmatpush.xpose.msra.mxu0 0.0
        %2202 = vmatpush.xpose.msra.mxu0 0.0
        %2203 = vmatpush.xpose.msra.mxu0 0.0
        %2204 = vmatpush.xpose.msra.mxu0 0.0
        %2205 = vmatpush.xpose.msra.mxu0 0.0
        %2206 = vmatpush.xpose.msra.mxu0 0.0
        %2207 = vmatpush.xpose.msra.mxu0 0.0
        %2208 = vmatpush.xpose.msra.mxu0 0.0
        %2209 = vmatpush.xpose.msra.mxu0 0.0
        %2210 = vmatpush.xpose.msra.mxu0 %v2199
        %2211 = vmatpush.xpose.msra.mxu0 %v2196
        %2212 = vmatpush.xpose.msra.mxu0 %v2193
        %2213 = vmatpush.xpose.msra.mxu0 %v2190
        %2214 = vmatpush.xpose.msra.mxu0 %v2187
        %2215 = vmatpush.xpose.msra.mxu0 %v2184
        %2216 = vmatpush.xpose.msra.mxu0 %v2181
        %2217 = vmatmul.f32.gmra.mxu0 %v1768
        %v2218 = vpop.f32.mrf.mxu0
        %v2219 = vadd.f32 0.0, %v2218
        %2220 = vdwg.mxu0
        %v2222 = vsel %vm1766, %v1619, 0
        %v2225 = vsel %vm1766, %v1620, 0
        %v2228 = vsel %vm1766, %v1621, 0
        %v2231 = vsel %vm1766, %v1622, 0
        %v2234 = vsel %vm1766, %v1623, 0
        %v2237 = vsel %vm1766, %v1624, 0
        %v2240 = vsel %vm1766, %v1625, 0
        %2242 = vmatpush.xpose.msra.mxu0 0.0
        %2243 = vmatpush.xpose.msra.mxu0 0.0
        %2244 = vmatpush.xpose.msra.mxu0 0.0
        %2245 = vmatpush.xpose.msra.mxu0 0.0
        %2246 = vmatpush.xpose.msra.mxu0 0.0
        %2247 = vmatpush.xpose.msra.mxu0 0.0
        %2248 = vmatpush.xpose.msra.mxu0 0.0
        %2249 = vmatpush.xpose.msra.mxu0 0.0
        %2250 = vmatpush.xpose.msra.mxu0 0.0
        %2251 = vmatpush.xpose.msra.mxu0 %v2240
        %2252 = vmatpush.xpose.msra.mxu0 %v2237
        %2253 = vmatpush.xpose.msra.mxu0 %v2234
        %2254 = vmatpush.xpose.msra.mxu0 %v2231
        %2255 = vmatpush.xpose.msra.mxu0 %v2228
        %2256 = vmatpush.xpose.msra.mxu0 %v2225
        %2257 = vmatpush.xpose.msra.mxu0 %v2222
        %2258 = vmatmul.f32.gmra.mxu0 %v1768
        %v2259 = vpop.f32.mrf.mxu0
        %v2260 = vadd.f32 0.0, %v2259
        %2261 = vdwg.mxu0
        %v2263 = vsel %vm1766, %v1626, 0
        %v2266 = vsel %vm1766, %v1627, 0
        %v2269 = vsel %vm1766, %v1628, 0
        %v2272 = vsel %vm1766, %v1629, 0
        %v2275 = vsel %vm1766, %v1630, 0
        %v2278 = vsel %vm1766, %v1631, 0
        %v2281 = vsel %vm1766, %v1632, 0
        %2283 = vmatpush.xpose.msra.mxu0 0.0
        %2284 = vmatpush.xpose.msra.mxu0 0.0
        %2285 = vmatpush.xpose.msra.mxu0 0.0
        %2286 = vmatpush.xpose.msra.mxu0 0.0
        %2287 = vmatpush.xpose.msra.mxu0 0.0
        %2288 = vmatpush.xpose.msra.mxu0 0.0
        %2289 = vmatpush.xpose.msra.mxu0 0.0
        %2290 = vmatpush.xpose.msra.mxu0 0.0
        %2291 = vmatpush.xpose.msra.mxu0 0.0
        %2292 = vmatpush.xpose.msra.mxu0 %v2281
        %2293 = vmatpush.xpose.msra.mxu0 %v2278
        %2294 = vmatpush.xpose.msra.mxu0 %v2275
        %2295 = vmatpush.xpose.msra.mxu0 %v2272
        %2296 = vmatpush.xpose.msra.mxu0 %v2269
        %2297 = vmatpush.xpose.msra.mxu0 %v2266
        %2298 = vmatpush.xpose.msra.mxu0 %v2263
        %2299 = vmatmul.f32.gmra.mxu0 %v1768
        %v2300 = vpop.f32.mrf.mxu0
        %v2301 = vadd.f32 0.0, %v2300
        %2302 = vdwg.mxu0
        %v2304 = vsel %vm1766, %v1633, 0
        %v2307 = vsel %vm1766, %v1634, 0
        %v2310 = vsel %vm1766, %v1635, 0
        %v2313 = vsel %vm1766, %v1636, 0
        %v2316 = vsel %vm1766, %v1637, 0
        %v2319 = vsel %vm1766, %v1638, 0
        %v2322 = vsel %vm1766, %v1639, 0
        %2324 = vmatpush.xpose.msra.mxu0 0.0
        %2325 = vmatpush.xpose.msra.mxu0 0.0
        %2326 = vmatpush.xpose.msra.mxu0 0.0
        %2327 = vmatpush.xpose.msra.mxu0 0.0
        %2328 = vmatpush.xpose.msra.mxu0 0.0
        %2329 = vmatpush.xpose.msra.mxu0 0.0
        %2330 = vmatpush.xpose.msra.mxu0 0.0
        %2331 = vmatpush.xpose.msra.mxu0 0.0
        %2332 = vmatpush.xpose.msra.mxu0 0.0
        %2333 = vmatpush.xpose.msra.mxu0 %v2322
        %2334 = vmatpush.xpose.msra.mxu0 %v2319
        %2335 = vmatpush.xpose.msra.mxu0 %v2316
        %2336 = vmatpush.xpose.msra.mxu0 %v2313
        %2337 = vmatpush.xpose.msra.mxu0 %v2310
        %2338 = vmatpush.xpose.msra.mxu0 %v2307
        %2339 = vmatpush.xpose.msra.mxu0 %v2304
        %2340 = vmatmul.f32.gmra.mxu0 %v1768
        %v2341 = vpop.f32.mrf.mxu0
        %v2342 = vadd.f32 0.0, %v2341
        %2343 = vdwg.mxu0
        %v2345 = vsel %vm1766, %v1640, 0
        %v2348 = vsel %vm1766, %v1641, 0
        %v2351 = vsel %vm1766, %v1642, 0
        %v2354 = vsel %vm1766, %v1643, 0
        %v2357 = vsel %vm1766, %v1644, 0
        %v2360 = vsel %vm1766, %v1645, 0
        %v2363 = vsel %vm1766, %v1646, 0
        %2365 = vmatpush.xpose.msra.mxu0 0.0
        %2366 = vmatpush.xpose.msra.mxu0 0.0
        %2367 = vmatpush.xpose.msra.mxu0 0.0
        %2368 = vmatpush.xpose.msra.mxu0 0.0
        %2369 = vmatpush.xpose.msra.mxu0 0.0
        %2370 = vmatpush.xpose.msra.mxu0 0.0
        %2371 = vmatpush.xpose.msra.mxu0 0.0
        %2372 = vmatpush.xpose.msra.mxu0 0.0
        %2373 = vmatpush.xpose.msra.mxu0 0.0
        %2374 = vmatpush.xpose.msra.mxu0 %v2363
        %2375 = vmatpush.xpose.msra.mxu0 %v2360
        %2376 = vmatpush.xpose.msra.mxu0 %v2357
        %2377 = vmatpush.xpose.msra.mxu0 %v2354
        %2378 = vmatpush.xpose.msra.mxu0 %v2351
        %2379 = vmatpush.xpose.msra.mxu0 %v2348
        %2380 = vmatpush.xpose.msra.mxu0 %v2345
        %2381 = vmatmul.f32.gmra.mxu0 %v1768
        %v2382 = vpop.f32.mrf.mxu0
        %v2383 = vadd.f32 0.0, %v2382
        %2384 = vdwg.mxu0
        %v2386 = vsel %vm1766, %v1647, 0
        %v2389 = vsel %vm1766, %v1648, 0
        %v2392 = vsel %vm1766, %v1649, 0
        %v2395 = vsel %vm1766, %v1650, 0
        %v2398 = vsel %vm1766, %v1651, 0
        %v2401 = vsel %vm1766, %v1652, 0
        %v2404 = vsel %vm1766, %v1653, 0
        %2406 = vmatpush.xpose.msra.mxu0 0.0
        %2407 = vmatpush.xpose.msra.mxu0 0.0
        %2408 = vmatpush.xpose.msra.mxu0 0.0
        %2409 = vmatpush.xpose.msra.mxu0 0.0
        %2410 = vmatpush.xpose.msra.mxu0 0.0
        %2411 = vmatpush.xpose.msra.mxu0 0.0
        %2412 = vmatpush.xpose.msra.mxu0 0.0
        %2413 = vmatpush.xpose.msra.mxu0 0.0
        %2414 = vmatpush.xpose.msra.mxu0 0.0
        %2415 = vmatpush.xpose.msra.mxu0 %v2404
        %2416 = vmatpush.xpose.msra.mxu0 %v2401
        %2417 = vmatpush.xpose.msra.mxu0 %v2398
        %2418 = vmatpush.xpose.msra.mxu0 %v2395
        %2419 = vmatpush.xpose.msra.mxu0 %v2392
        %2420 = vmatpush.xpose.msra.mxu0 %v2389
        %2421 = vmatpush.xpose.msra.mxu0 %v2386
        %2422 = vmatmul.f32.gmra.mxu0 %v1768
        %v2423 = vpop.f32.mrf.mxu0
        %v2424 = vadd.f32 0.0, %v2423
        %2425 = vdwg.mxu0
        %v2427 = vsel %vm1766, %v1654, 0
        %v2430 = vsel %vm1766, %v1655, 0
        %v2433 = vsel %vm1766, %v1656, 0
        %v2436 = vsel %vm1766, %v1657, 0
        %v2439 = vsel %vm1766, %v1658, 0
        %v2442 = vsel %vm1766, %v1659, 0
        %v2445 = vsel %vm1766, %v1660, 0
        %2447 = vmatpush.xpose.msra.mxu0 0.0
        %2448 = vmatpush.xpose.msra.mxu0 0.0
        %2449 = vmatpush.xpose.msra.mxu0 0.0
        %2450 = vmatpush.xpose.msra.mxu0 0.0
        %2451 = vmatpush.xpose.msra.mxu0 0.0
        %2452 = vmatpush.xpose.msra.mxu0 0.0
        %2453 = vmatpush.xpose.msra.mxu0 0.0
        %2454 = vmatpush.xpose.msra.mxu0 0.0
        %2455 = vmatpush.xpose.msra.mxu0 0.0
        %2456 = vmatpush.xpose.msra.mxu0 %v2445
        %2457 = vmatpush.xpose.msra.mxu0 %v2442
        %2458 = vmatpush.xpose.msra.mxu0 %v2439
        %2459 = vmatpush.xpose.msra.mxu0 %v2436
        %2460 = vmatpush.xpose.msra.mxu0 %v2433
        %2461 = vmatpush.xpose.msra.mxu0 %v2430
        %2462 = vmatpush.xpose.msra.mxu0 %v2427
        %2463 = vmatmul.f32.gmra.mxu0 %v1768
        %v2464 = vpop.f32.mrf.mxu0
        %v2465 = vadd.f32 0.0, %v2464
        %2466 = vdwg.mxu0
        %v2468 = vsel %vm1766, %v1661, 0
        %v2471 = vsel %vm1766, %v1662, 0
        %v2474 = vsel %vm1766, %v1663, 0
        %v2477 = vsel %vm1766, %v1664, 0
        %v2480 = vsel %vm1766, %v1665, 0
        %v2483 = vsel %vm1766, %v1666, 0
        %v2486 = vsel %vm1766, %v1667, 0
        %2488 = vmatpush.xpose.msra.mxu0 0.0
        %2489 = vmatpush.xpose.msra.mxu0 0.0
        %2490 = vmatpush.xpose.msra.mxu0 0.0
        %2491 = vmatpush.xpose.msra.mxu0 0.0
        %2492 = vmatpush.xpose.msra.mxu0 0.0
        %2493 = vmatpush.xpose.msra.mxu0 0.0
        %2494 = vmatpush.xpose.msra.mxu0 0.0
        %2495 = vmatpush.xpose.msra.mxu0 0.0
        %2496 = vmatpush.xpose.msra.mxu0 0.0
        %2497 = vmatpush.xpose.msra.mxu0 %v2486
        %2498 = vmatpush.xpose.msra.mxu0 %v2483
        %2499 = vmatpush.xpose.msra.mxu0 %v2480
        %2500 = vmatpush.xpose.msra.mxu0 %v2477
        %2501 = vmatpush.xpose.msra.mxu0 %v2474
        %2502 = vmatpush.xpose.msra.mxu0 %v2471
        %2503 = vmatpush.xpose.msra.mxu0 %v2468
        %2504 = vmatmul.f32.gmra.mxu0 %v1768
        %v2505 = vpop.f32.mrf.mxu0
        %v2506 = vadd.f32 0.0, %v2505
        %2507 = vdwg.mxu0
        %v2509 = vsel %vm1766, %v1668, 0
        %v2512 = vsel %vm1766, %v1669, 0
        %v2515 = vsel %vm1766, %v1670, 0
        %v2518 = vsel %vm1766, %v1671, 0
        %v2521 = vsel %vm1766, %v1672, 0
        %v2524 = vsel %vm1766, %v1673, 0
        %v2527 = vsel %vm1766, %v1674, 0
        %2529 = vmatpush.xpose.msra.mxu0 0.0
        %2530 = vmatpush.xpose.msra.mxu0 0.0
        %2531 = vmatpush.xpose.msra.mxu0 0.0
        %2532 = vmatpush.xpose.msra.mxu0 0.0
        %2533 = vmatpush.xpose.msra.mxu0 0.0
        %2534 = vmatpush.xpose.msra.mxu0 0.0
        %2535 = vmatpush.xpose.msra.mxu0 0.0
        %2536 = vmatpush.xpose.msra.mxu0 0.0
        %2537 = vmatpush.xpose.msra.mxu0 0.0
        %2538 = vmatpush.xpose.msra.mxu0 %v2527
        %2539 = vmatpush.xpose.msra.mxu0 %v2524
        %2540 = vmatpush.xpose.msra.mxu0 %v2521
        %2541 = vmatpush.xpose.msra.mxu0 %v2518
        %2542 = vmatpush.xpose.msra.mxu0 %v2515
        %2543 = vmatpush.xpose.msra.mxu0 %v2512
        %2544 = vmatpush.xpose.msra.mxu0 %v2509
        %2545 = vmatmul.f32.gmra.mxu0 %v1768
        %v2546 = vpop.f32.mrf.mxu0
        %v2547 = vadd.f32 0.0, %v2546
        %2548 = vdwg.mxu0
        %v2550 = vsel %vm1766, %v1675, 0
        %v2553 = vsel %vm1766, %v1676, 0
        %v2556 = vsel %vm1766, %v1677, 0
        %v2559 = vsel %vm1766, %v1678, 0
        %v2562 = vsel %vm1766, %v1679, 0
        %v2565 = vsel %vm1766, %v1680, 0
        %v2568 = vsel %vm1766, %v1681, 0
        %2570 = vmatpush.xpose.msra.mxu0 0.0
        %2571 = vmatpush.xpose.msra.mxu0 0.0
        %2572 = vmatpush.xpose.msra.mxu0 0.0
        %2573 = vmatpush.xpose.msra.mxu0 0.0
        %2574 = vmatpush.xpose.msra.mxu0 0.0
        %2575 = vmatpush.xpose.msra.mxu0 0.0
        %2576 = vmatpush.xpose.msra.mxu0 0.0
        %2577 = vmatpush.xpose.msra.mxu0 0.0
        %2578 = vmatpush.xpose.msra.mxu0 0.0
        %2579 = vmatpush.xpose.msra.mxu0 %v2568
        %2580 = vmatpush.xpose.msra.mxu0 %v2565
        %2581 = vmatpush.xpose.msra.mxu0 %v2562
        %2582 = vmatpush.xpose.msra.mxu0 %v2559
        %2583 = vmatpush.xpose.msra.mxu0 %v2556
        %2584 = vmatpush.xpose.msra.mxu0 %v2553
        %2585 = vmatpush.xpose.msra.mxu0 %v2550
        %2586 = vmatmul.f32.gmra.mxu0 %v1768
        %v2587 = vpop.f32.mrf.mxu0
        %v2588 = vadd.f32 0.0, %v2587
        %2589 = vdwg.mxu0
        %v2591 = vsel %vm1766, %v1682, 0
        %v2594 = vsel %vm1766, %v1683, 0
        %v2597 = vsel %vm1766, %v1684, 0
        %v2600 = vsel %vm1766, %v1685, 0
        %v2603 = vsel %vm1766, %v1686, 0
        %v2606 = vsel %vm1766, %v1687, 0
        %v2609 = vsel %vm1766, %v1688, 0
        %2611 = vmatpush.xpose.msra.mxu0 0.0
        %2612 = vmatpush.xpose.msra.mxu0 0.0
        %2613 = vmatpush.xpose.msra.mxu0 0.0
        %2614 = vmatpush.xpose.msra.mxu0 0.0
        %2615 = vmatpush.xpose.msra.mxu0 0.0
        %2616 = vmatpush.xpose.msra.mxu0 0.0
        %2617 = vmatpush.xpose.msra.mxu0 0.0
        %2618 = vmatpush.xpose.msra.mxu0 0.0
        %2619 = vmatpush.xpose.msra.mxu0 0.0
        %2620 = vmatpush.xpose.msra.mxu0 %v2609
        %2621 = vmatpush.xpose.msra.mxu0 %v2606
        %2622 = vmatpush.xpose.msra.mxu0 %v2603
        %2623 = vmatpush.xpose.msra.mxu0 %v2600
        %2624 = vmatpush.xpose.msra.mxu0 %v2597
        %2625 = vmatpush.xpose.msra.mxu0 %v2594
        %2626 = vmatpush.xpose.msra.mxu0 %v2591
        %2627 = vmatmul.f32.gmra.mxu0 %v1768
        %v2628 = vpop.f32.mrf.mxu0
        %v2629 = vadd.f32 0.0, %v2628
        %2630 = vdwg.mxu0
        %v2632 = vsel %vm1766, %v1689, 0
        %v2635 = vsel %vm1766, %v1690, 0
        %v2638 = vsel %vm1766, %v1691, 0
        %v2641 = vsel %vm1766, %v1692, 0
        %v2644 = vsel %vm1766, %v1693, 0
        %v2647 = vsel %vm1766, %v1694, 0
        %v2650 = vsel %vm1766, %v1695, 0
        %2652 = vmatpush.xpose.msra.mxu0 0.0
        %2653 = vmatpush.xpose.msra.mxu0 0.0
        %2654 = vmatpush.xpose.msra.mxu0 0.0
        %2655 = vmatpush.xpose.msra.mxu0 0.0
        %2656 = vmatpush.xpose.msra.mxu0 0.0
        %2657 = vmatpush.xpose.msra.mxu0 0.0
        %2658 = vmatpush.xpose.msra.mxu0 0.0
        %2659 = vmatpush.xpose.msra.mxu0 0.0
        %2660 = vmatpush.xpose.msra.mxu0 0.0
        %2661 = vmatpush.xpose.msra.mxu0 %v2650
        %2662 = vmatpush.xpose.msra.mxu0 %v2647
        %2663 = vmatpush.xpose.msra.mxu0 %v2644
        %2664 = vmatpush.xpose.msra.mxu0 %v2641
        %2665 = vmatpush.xpose.msra.mxu0 %v2638
        %2666 = vmatpush.xpose.msra.mxu0 %v2635
        %2667 = vmatpush.xpose.msra.mxu0 %v2632
        %2668 = vmatmul.f32.gmra.mxu0 %v1768
        %v2669 = vpop.f32.mrf.mxu0
        %v2670 = vadd.f32 0.0, %v2669
        %2671 = vdwg.mxu0
        %v2673 = vsel %vm1766, %v1696, 0
        %v2676 = vsel %vm1766, %v1697, 0
        %v2679 = vsel %vm1766, %v1698, 0
        %v2682 = vsel %vm1766, %v1699, 0
        %v2685 = vsel %vm1766, %v1700, 0
        %v2688 = vsel %vm1766, %v1701, 0
        %v2691 = vsel %vm1766, %v1702, 0
        %2693 = vmatpush.xpose.msra.mxu0 0.0
        %2694 = vmatpush.xpose.msra.mxu0 0.0
        %2695 = vmatpush.xpose.msra.mxu0 0.0
        %2696 = vmatpush.xpose.msra.mxu0 0.0
        %2697 = vmatpush.xpose.msra.mxu0 0.0
        %2698 = vmatpush.xpose.msra.mxu0 0.0
        %2699 = vmatpush.xpose.msra.mxu0 0.0
        %2700 = vmatpush.xpose.msra.mxu0 0.0
        %2701 = vmatpush.xpose.msra.mxu0 0.0
        %2702 = vmatpush.xpose.msra.mxu0 %v2691
        %2703 = vmatpush.xpose.msra.mxu0 %v2688
        %2704 = vmatpush.xpose.msra.mxu0 %v2685
        %2705 = vmatpush.xpose.msra.mxu0 %v2682
        %2706 = vmatpush.xpose.msra.mxu0 %v2679
        %2707 = vmatpush.xpose.msra.mxu0 %v2676
        %2708 = vmatpush.xpose.msra.mxu0 %v2673
        %2709 = vmatmul.f32.gmra.mxu0 %v1768
        %v2710 = vpop.f32.mrf.mxu0
        %v2711 = vadd.f32 0.0, %v2710
        %2712 = vdwg.mxu0
        %v2714 = vsel %vm1766, %v1703, 0
        %v2717 = vsel %vm1766, %v1704, 0
        %v2720 = vsel %vm1766, %v1705, 0
        %v2723 = vsel %vm1766, %v1706, 0
        %v2726 = vsel %vm1766, %v1707, 0
        %v2729 = vsel %vm1766, %v1708, 0
        %v2732 = vsel %vm1766, %v1709, 0
        %2734 = vmatpush.xpose.msra.mxu0 0.0
        %2735 = vmatpush.xpose.msra.mxu0 0.0
        %2736 = vmatpush.xpose.msra.mxu0 0.0
        %2737 = vmatpush.xpose.msra.mxu0 0.0
        %2738 = vmatpush.xpose.msra.mxu0 0.0
        %2739 = vmatpush.xpose.msra.mxu0 0.0
        %2740 = vmatpush.xpose.msra.mxu0 0.0
        %2741 = vmatpush.xpose.msra.mxu0 0.0
        %2742 = vmatpush.xpose.msra.mxu0 0.0
        %2743 = vmatpush.xpose.msra.mxu0 %v2732
        %2744 = vmatpush.xpose.msra.mxu0 %v2729
        %2745 = vmatpush.xpose.msra.mxu0 %v2726
        %2746 = vmatpush.xpose.msra.mxu0 %v2723
        %2747 = vmatpush.xpose.msra.mxu0 %v2720
        %2748 = vmatpush.xpose.msra.mxu0 %v2717
        %2749 = vmatpush.xpose.msra.mxu0 %v2714
        %2750 = vmatmul.f32.gmra.mxu0 %v1768
        %v2751 = vpop.f32.mrf.mxu0
        %v2752 = vadd.f32 0.0, %v2751
        %2753 = vdwg.mxu0
        %v2755 = vsel %vm1766, %v1710, 0
        %v2758 = vsel %vm1766, %v1711, 0
        %v2761 = vsel %vm1766, %v1712, 0
        %v2764 = vsel %vm1766, %v1713, 0
        %v2767 = vsel %vm1766, %v1714, 0
        %v2770 = vsel %vm1766, %v1715, 0
        %v2773 = vsel %vm1766, %v1716, 0
        %2775 = vmatpush.xpose.msra.mxu0 0.0
        %2776 = vmatpush.xpose.msra.mxu0 0.0
        %2777 = vmatpush.xpose.msra.mxu0 0.0
        %2778 = vmatpush.xpose.msra.mxu0 0.0
        %2779 = vmatpush.xpose.msra.mxu0 0.0
        %2780 = vmatpush.xpose.msra.mxu0 0.0
        %2781 = vmatpush.xpose.msra.mxu0 0.0
        %2782 = vmatpush.xpose.msra.mxu0 0.0
        %2783 = vmatpush.xpose.msra.mxu0 0.0
        %2784 = vmatpush.xpose.msra.mxu0 %v2773
        %2785 = vmatpush.xpose.msra.mxu0 %v2770
        %2786 = vmatpush.xpose.msra.mxu0 %v2767
        %2787 = vmatpush.xpose.msra.mxu0 %v2764
        %2788 = vmatpush.xpose.msra.mxu0 %v2761
        %2789 = vmatpush.xpose.msra.mxu0 %v2758
        %2790 = vmatpush.xpose.msra.mxu0 %v2755
        %2791 = vmatmul.f32.gmra.mxu0 %v1768
        %v2792 = vpop.f32.mrf.mxu0
        %v2793 = vadd.f32 0.0, %v2792
        %2794 = vdwg.mxu0
        %v2796 = vsel %vm1766, %v1717, 0
        %v2799 = vsel %vm1766, %v1718, 0
        %v2802 = vsel %vm1766, %v1719, 0
        %v2805 = vsel %vm1766, %v1720, 0
        %v2808 = vsel %vm1766, %v1721, 0
        %v2811 = vsel %vm1766, %v1722, 0
        %v2814 = vsel %vm1766, %v1723, 0
        %2816 = vmatpush.xpose.msra.mxu0 0.0
        %2817 = vmatpush.xpose.msra.mxu0 0.0
        %2818 = vmatpush.xpose.msra.mxu0 0.0
        %2819 = vmatpush.xpose.msra.mxu0 0.0
        %2820 = vmatpush.xpose.msra.mxu0 0.0
        %2821 = vmatpush.xpose.msra.mxu0 0.0
        %2822 = vmatpush.xpose.msra.mxu0 0.0
        %2823 = vmatpush.xpose.msra.mxu0 0.0
        %2824 = vmatpush.xpose.msra.mxu0 0.0
        %2825 = vmatpush.xpose.msra.mxu0 %v2814
        %2826 = vmatpush.xpose.msra.mxu0 %v2811
        %2827 = vmatpush.xpose.msra.mxu0 %v2808
        %2828 = vmatpush.xpose.msra.mxu0 %v2805
        %2829 = vmatpush.xpose.msra.mxu0 %v2802
        %2830 = vmatpush.xpose.msra.mxu0 %v2799
        %2831 = vmatpush.xpose.msra.mxu0 %v2796
        %2832 = vmatmul.f32.gmra.mxu0 %v1768
        %v2833 = vpop.f32.mrf.mxu0
        %v2834 = vadd.f32 0.0, %v2833
        %2835 = vdwg.mxu0
        %v2837 = vsel %vm1766, %v1724, 0
        %v2840 = vsel %vm1766, %v1725, 0
        %v2843 = vsel %vm1766, %v1726, 0
        %v2846 = vsel %vm1766, %v1727, 0
        %v2849 = vsel %vm1766, %v1728, 0
        %v2852 = vsel %vm1766, %v1729, 0
        %v2855 = vsel %vm1766, %v1730, 0
        %2857 = vmatpush.xpose.msra.mxu0 0.0
        %2858 = vmatpush.xpose.msra.mxu0 0.0
        %2859 = vmatpush.xpose.msra.mxu0 0.0
        %2860 = vmatpush.xpose.msra.mxu0 0.0
        %2861 = vmatpush.xpose.msra.mxu0 0.0
        %2862 = vmatpush.xpose.msra.mxu0 0.0
        %2863 = vmatpush.xpose.msra.mxu0 0.0
        %2864 = vmatpush.xpose.msra.mxu0 0.0
        %2865 = vmatpush.xpose.msra.mxu0 0.0
        %2866 = vmatpush.xpose.msra.mxu0 %v2855
        %2867 = vmatpush.xpose.msra.mxu0 %v2852
        %2868 = vmatpush.xpose.msra.mxu0 %v2849
        %2869 = vmatpush.xpose.msra.mxu0 %v2846
        %2870 = vmatpush.xpose.msra.mxu0 %v2843
        %2871 = vmatpush.xpose.msra.mxu0 %v2840
        %2872 = vmatpush.xpose.msra.mxu0 %v2837
        %2873 = vmatmul.f32.gmra.mxu0 %v1768
        %v2874 = vpop.f32.mrf.mxu0
        %v2875 = vadd.f32 0.0, %v2874
        %2876 = vdwg.mxu0
        %v2878 = vsel %vm1766, %v1731, 0
        %v2881 = vsel %vm1766, %v1732, 0
        %v2884 = vsel %vm1766, %v1733, 0
        %v2887 = vsel %vm1766, %v1734, 0
        %v2890 = vsel %vm1766, %v1735, 0
        %v2893 = vsel %vm1766, %v1736, 0
        %v2896 = vsel %vm1766, %v1737, 0
        %2898 = vmatpush.xpose.msra.mxu0 0.0
        %2899 = vmatpush.xpose.msra.mxu0 0.0
        %2900 = vmatpush.xpose.msra.mxu0 0.0
        %2901 = vmatpush.xpose.msra.mxu0 0.0
        %2902 = vmatpush.xpose.msra.mxu0 0.0
        %2903 = vmatpush.xpose.msra.mxu0 0.0
        %2904 = vmatpush.xpose.msra.mxu0 0.0
        %2905 = vmatpush.xpose.msra.mxu0 0.0
        %2906 = vmatpush.xpose.msra.mxu0 0.0
        %2907 = vmatpush.xpose.msra.mxu0 %v2896
        %2908 = vmatpush.xpose.msra.mxu0 %v2893
        %2909 = vmatpush.xpose.msra.mxu0 %v2890
        %2910 = vmatpush.xpose.msra.mxu0 %v2887
        %2911 = vmatpush.xpose.msra.mxu0 %v2884
        %2912 = vmatpush.xpose.msra.mxu0 %v2881
        %2913 = vmatpush.xpose.msra.mxu0 %v2878
        %2914 = vmatmul.f32.gmra.mxu0 %v1768
        %v2915 = vpop.f32.mrf.mxu0
        %v2916 = vadd.f32 0.0, %v2915
        %2917 = vdwg.mxu0
        %v2919 = vsel %vm1766, %v1738, 0
        %v2922 = vsel %vm1766, %v1739, 0
        %v2925 = vsel %vm1766, %v1740, 0
        %v2928 = vsel %vm1766, %v1741, 0
        %v2931 = vsel %vm1766, %v1742, 0
        %v2934 = vsel %vm1766, %v1743, 0
        %v2937 = vsel %vm1766, %v1744, 0
        %2939 = vmatpush.xpose.msra.mxu0 0.0
        %2940 = vmatpush.xpose.msra.mxu0 0.0
        %2941 = vmatpush.xpose.msra.mxu0 0.0
        %2942 = vmatpush.xpose.msra.mxu0 0.0
        %2943 = vmatpush.xpose.msra.mxu0 0.0
        %2944 = vmatpush.xpose.msra.mxu0 0.0
        %2945 = vmatpush.xpose.msra.mxu0 0.0
        %2946 = vmatpush.xpose.msra.mxu0 0.0
        %2947 = vmatpush.xpose.msra.mxu0 0.0
        %2948 = vmatpush.xpose.msra.mxu0 %v2937
        %2949 = vmatpush.xpose.msra.mxu0 %v2934
        %2950 = vmatpush.xpose.msra.mxu0 %v2931
        %2951 = vmatpush.xpose.msra.mxu0 %v2928
        %2952 = vmatpush.xpose.msra.mxu0 %v2925
        %2953 = vmatpush.xpose.msra.mxu0 %v2922
        %2954 = vmatpush.xpose.msra.mxu0 %v2919
        %2955 = vmatmul.f32.gmra.mxu0 %v1768
        %v2956 = vpop.f32.mrf.mxu0
        %v2957 = vadd.f32 0.0, %v2956
        %2958 = vdwg.mxu0
        %v2960 = vsel %vm1766, %v1745, 0
        %v2963 = vsel %vm1766, %v1746, 0
        %v2966 = vsel %vm1766, %v1747, 0
        %v2969 = vsel %vm1766, %v1748, 0
        %v2972 = vsel %vm1766, %v1749, 0
        %v2975 = vsel %vm1766, %v1750, 0
        %v2978 = vsel %vm1766, %v1751, 0
        %2980 = vmatpush.xpose.msra.mxu0 0.0
        %2981 = vmatpush.xpose.msra.mxu0 0.0
        %2982 = vmatpush.xpose.msra.mxu0 0.0
        %2983 = vmatpush.xpose.msra.mxu0 0.0
        %2984 = vmatpush.xpose.msra.mxu0 0.0
        %2985 = vmatpush.xpose.msra.mxu0 0.0
        %2986 = vmatpush.xpose.msra.mxu0 0.0
        %2987 = vmatpush.xpose.msra.mxu0 0.0
        %2988 = vmatpush.xpose.msra.mxu0 0.0
        %2989 = vmatpush.xpose.msra.mxu0 %v2978
        %2990 = vmatpush.xpose.msra.mxu0 %v2975
        %2991 = vmatpush.xpose.msra.mxu0 %v2972
        %2992 = vmatpush.xpose.msra.mxu0 %v2969
        %2993 = vmatpush.xpose.msra.mxu0 %v2966
        %2994 = vmatpush.xpose.msra.mxu0 %v2963
        %2995 = vmatpush.xpose.msra.mxu0 %v2960
        %2996 = vmatmul.f32.gmra.mxu0 %v1768
        %v2997 = vpop.f32.mrf.mxu0
        %v2998 = vadd.f32 0.0, %v2997
        %2999 = vdwg.mxu0
        %v3001 = vsel %vm1766, %v1752, 0
        %v3004 = vsel %vm1766, %v1753, 0
        %v3007 = vsel %vm1766, %v1754, 0
        %v3010 = vsel %vm1766, %v1755, 0
        %v3013 = vsel %vm1766, %v1756, 0
        %v3016 = vsel %vm1766, %v1757, 0
        %v3019 = vsel %vm1766, %v1758, 0
        %3021 = vmatpush.xpose.msra.mxu0 0.0
        %3022 = vmatpush.xpose.msra.mxu0 0.0
        %3023 = vmatpush.xpose.msra.mxu0 0.0
        %3024 = vmatpush.xpose.msra.mxu0 0.0
        %3025 = vmatpush.xpose.msra.mxu0 0.0
        %3026 = vmatpush.xpose.msra.mxu0 0.0
        %3027 = vmatpush.xpose.msra.mxu0 0.0
        %3028 = vmatpush.xpose.msra.mxu0 0.0
        %3029 = vmatpush.xpose.msra.mxu0 0.0
        %3030 = vmatpush.xpose.msra.mxu0 %v3019
        %3031 = vmatpush.xpose.msra.mxu0 %v3016
        %3032 = vmatpush.xpose.msra.mxu0 %v3013
        %3033 = vmatpush.xpose.msra.mxu0 %v3010
        %3034 = vmatpush.xpose.msra.mxu0 %v3007
        %3035 = vmatpush.xpose.msra.mxu0 %v3004
        %3036 = vmatpush.xpose.msra.mxu0 %v3001
        %3037 = vmatmul.f32.gmra.mxu0 %v1768
        %v3038 = vpop.f32.mrf.mxu0
        %v3039 = vadd.f32 0.0, %v3038
        %3040 = vdwg.mxu0
        %v3042 = vsel %vm1766, %v1759, 0
        %v3045 = vsel %vm1766, %v1760, 0
        %v3048 = vsel %vm1766, %v1761, 0
        %v3051 = vsel %vm1766, %v1762, 0
        %v3054 = vsel %vm1766, %v1763, 0
        %v3057 = vsel %vm1766, %v1764, 0
        %v3060 = vsel %vm1766, %v1765, 0
        %3062 = vmatpush.xpose.msra.mxu0 0.0
        %3063 = vmatpush.xpose.msra.mxu0 0.0
        %3064 = vmatpush.xpose.msra.mxu0 0.0
        %3065 = vmatpush.xpose.msra.mxu0 0.0
        %3066 = vmatpush.xpose.msra.mxu0 0.0
        %3067 = vmatpush.xpose.msra.mxu0 0.0
        %3068 = vmatpush.xpose.msra.mxu0 0.0
        %3069 = vmatpush.xpose.msra.mxu0 0.0
        %3070 = vmatpush.xpose.msra.mxu0 0.0
        %3071 = vmatpush.xpose.msra.mxu0 %v3060
        %3072 = vmatpush.xpose.msra.mxu0 %v3057
        %3073 = vmatpush.xpose.msra.mxu0 %v3054
        %3074 = vmatpush.xpose.msra.mxu0 %v3051
        %3075 = vmatpush.xpose.msra.mxu0 %v3048
        %3076 = vmatpush.xpose.msra.mxu0 %v3045
        %3077 = vmatpush.xpose.msra.mxu0 %v3042
        %3078 = vmatmul.f32.gmra.mxu0 %v1768
        %v3079 = vpop.f32.mrf.mxu0
        %v3080 = vadd.f32 0.0, %v3079
        %3081 = vdwg.mxu0
        %v3082 = vmul.f32 %v1809, %v1541
        %v3083 = vmul.f32 %v1850, %v1541
        %v3084 = vmul.f32 %v1891, %v1541
        %v3085 = vmul.f32 %v1932, %v1541
        %v3086 = vmul.f32 %v1973, %v1541
        %v3087 = vmul.f32 %v2014, %v1541
        %v3088 = vmul.f32 %v2055, %v1541
        %v3089 = vmul.f32 %v2096, %v1541
        %v3090 = vmul.f32 %v2137, %v1541
        %v3091 = vmul.f32 %v2178, %v1541
        %v3092 = vmul.f32 %v2219, %v1541
        %v3093 = vmul.f32 %v2260, %v1541
        %v3094 = vmul.f32 %v2301, %v1541
        %v3095 = vmul.f32 %v2342, %v1541
        %v3096 = vmul.f32 %v2383, %v1541
        %v3097 = vmul.f32 %v2424, %v1541
        %v3098 = vmul.f32 %v2465, %v1541
        %v3099 = vmul.f32 %v2506, %v1541
        %v3100 = vmul.f32 %v2547, %v1541
        %v3101 = vmul.f32 %v2588, %v1541
        %v3102 = vmul.f32 %v2629, %v1541
        %v3103 = vmul.f32 %v2670, %v1541
        %v3104 = vmul.f32 %v2711, %v1541
        %v3105 = vmul.f32 %v2752, %v1541
        %v3106 = vmul.f32 %v2793, %v1541
        %v3107 = vmul.f32 %v2834, %v1541
        %v3108 = vmul.f32 %v2875, %v1541
        %v3109 = vmul.f32 %v2916, %v1541
        %v3110 = vmul.f32 %v2957, %v1541
        %v3111 = vmul.f32 %v2998, %v1541
        %v3112 = vmul.f32 %v3039, %v1541
        %v3113 = vmul.f32 %v3080, %v1541
        %v3114 = vsel %vm1766, %v3082, 0.0
        %3115 = vadd.xlane.f32.xlu0 %v3114
        %v3116 = vpop.xlane.xlu0 %3115
        %v3117 = vsel %vm1766, %v3083, 0.0
        %3118 = vadd.xlane.f32.xlu0 %v3117
        %v3119 = vpop.xlane.xlu0 %3118
        %v3120 = vsel %vm1766, %v3084, 0.0
        %3121 = vadd.xlane.f32.xlu0 %v3120
        %v3122 = vpop.xlane.xlu0 %3121
        %v3123 = vsel %vm1766, %v3085, 0.0
        %3124 = vadd.xlane.f32.xlu0 %v3123
        %v3125 = vpop.xlane.xlu0 %3124
        %v3126 = vsel %vm1766, %v3086, 0.0
        %3127 = vadd.xlane.f32.xlu0 %v3126
        %v3128 = vpop.xlane.xlu0 %3127
        %v3129 = vsel %vm1766, %v3087, 0.0
        %3130 = vadd.xlane.f32.xlu0 %v3129
        %v3131 = vpop.xlane.xlu0 %3130
        %v3132 = vsel %vm1766, %v3088, 0.0
        %3133 = vadd.xlane.f32.xlu0 %v3132
        %v3134 = vpop.xlane.xlu0 %3133
        %v3135 = vsel %vm1766, %v3089, 0.0
        %3136 = vadd.xlane.f32.xlu0 %v3135
        %v3137 = vpop.xlane.xlu0 %3136
        %v3138 = vsel %vm1766, %v3090, 0.0
        %3139 = vadd.xlane.f32.xlu0 %v3138
        %v3140 = vpop.xlane.xlu0 %3139
        %v3141 = vsel %vm1766, %v3091, 0.0
        %3142 = vadd.xlane.f32.xlu0 %v3141
        %v3143 = vpop.xlane.xlu0 %3142
        %v3144 = vsel %vm1766, %v3092, 0.0
        %3145 = vadd.xlane.f32.xlu0 %v3144
        %v3146 = vpop.xlane.xlu0 %3145
        %v3147 = vsel %vm1766, %v3093, 0.0
        %3148 = vadd.xlane.f32.xlu0 %v3147
        %v3149 = vpop.xlane.xlu0 %3148
        %v3150 = vsel %vm1766, %v3094, 0.0
        %3151 = vadd.xlane.f32.xlu0 %v3150
        %v3152 = vpop.xlane.xlu0 %3151
        %v3153 = vsel %vm1766, %v3095, 0.0
        %3154 = vadd.xlane.f32.xlu0 %v3153
        %v3155 = vpop.xlane.xlu0 %3154
        %v3156 = vsel %vm1766, %v3096, 0.0
        %3157 = vadd.xlane.f32.xlu0 %v3156
        %v3158 = vpop.xlane.xlu0 %3157
        %v3159 = vsel %vm1766, %v3097, 0.0
        %3160 = vadd.xlane.f32.xlu0 %v3159
        %v3161 = vpop.xlane.xlu0 %3160
        %v3162 = vsel %vm1766, %v3098, 0.0
        %3163 = vadd.xlane.f32.xlu0 %v3162
        %v3164 = vpop.xlane.xlu0 %3163
        %v3165 = vsel %vm1766, %v3099, 0.0
        %3166 = vadd.xlane.f32.xlu0 %v3165
        %v3167 = vpop.xlane.xlu0 %3166
        %v3168 = vsel %vm1766, %v3100, 0.0
        %3169 = vadd.xlane.f32.xlu0 %v3168
        %v3170 = vpop.xlane.xlu0 %3169
        %v3171 = vsel %vm1766, %v3101, 0.0
        %3172 = vadd.xlane.f32.xlu0 %v3171
        %v3173 = vpop.xlane.xlu0 %3172
        %v3174 = vsel %vm1766, %v3102, 0.0
        %3175 = vadd.xlane.f32.xlu0 %v3174
        %v3176 = vpop.xlane.xlu0 %3175
        %v3177 = vsel %vm1766, %v3103, 0.0
        %3178 = vadd.xlane.f32.xlu0 %v3177
        %v3179 = vpop.xlane.xlu0 %3178
        %v3180 = vsel %vm1766, %v3104, 0.0
        %3181 = vadd.xlane.f32.xlu0 %v3180
        %v3182 = vpop.xlane.xlu0 %3181
        %v3183 = vsel %vm1766, %v3105, 0.0
        %3184 = vadd.xlane.f32.xlu0 %v3183
        %v3185 = vpop.xlane.xlu0 %3184
        %v3186 = vsel %vm1766, %v3106, 0.0
        %3187 = vadd.xlane.f32.xlu0 %v3186
        %v3188 = vpop.xlane.xlu0 %3187
        %v3189 = vsel %vm1766, %v3107, 0.0
        %3190 = vadd.xlane.f32.xlu0 %v3189
        %v3191 = vpop.xlane.xlu0 %3190
        %v3192 = vsel %vm1766, %v3108, 0.0
        %3193 = vadd.xlane.f32.xlu0 %v3192
        %v3194 = vpop.xlane.xlu0 %3193
        %v3195 = vsel %vm1766, %v3109, 0.0
        %3196 = vadd.xlane.f32.xlu0 %v3195
        %v3197 = vpop.xlane.xlu0 %3196
        %v3198 = vsel %vm1766, %v3110, 0.0
        %3199 = vadd.xlane.f32.xlu0 %v3198
        %v3200 = vpop.xlane.xlu0 %3199
        %v3201 = vsel %vm1766, %v3111, 0.0
        %3202 = vadd.xlane.f32.xlu0 %v3201
        %v3203 = vpop.xlane.xlu0 %3202
        %v3204 = vsel %vm1766, %v3112, 0.0
        %3205 = vadd.xlane.f32.xlu0 %v3204
        %v3206 = vpop.xlane.xlu0 %3205
        %v3207 = vsel %vm1766, %v3113, 0.0
        %3208 = vadd.xlane.f32.xlu0 %v3207
        %v3209 = vpop.xlane.xlu0 %3208
        %v3242 = vlaneseq
        %v3243 = vand.u32 %v3242, 127
        %v3244 = vperm.slane %v3116, %v3243
        %v3245 = vperm.slane %v3119, %v3243
        %v3246 = vperm.slane %v3122, %v3243
        %v3247 = vperm.slane %v3125, %v3243
        %v3248 = vperm.slane %v3128, %v3243
        %v3249 = vperm.slane %v3131, %v3243
        %v3250 = vperm.slane %v3134, %v3243
        %v3251 = vperm.slane %v3137, %v3243
        %v3252 = vperm.slane %v3140, %v3243
        %v3253 = vperm.slane %v3143, %v3243
        %v3254 = vperm.slane %v3146, %v3243
        %v3255 = vperm.slane %v3149, %v3243
        %v3256 = vperm.slane %v3152, %v3243
        %v3257 = vperm.slane %v3155, %v3243
        %v3258 = vperm.slane %v3158, %v3243
        %v3259 = vperm.slane %v3161, %v3243
        %v3260 = vperm.slane %v3164, %v3243
        %v3261 = vperm.slane %v3167, %v3243
        %v3262 = vperm.slane %v3170, %v3243
        %v3263 = vperm.slane %v3173, %v3243
        %v3264 = vperm.slane %v3176, %v3243
        %v3265 = vperm.slane %v3179, %v3243
        %v3266 = vperm.slane %v3182, %v3243
        %v3267 = vperm.slane %v3185, %v3243
        %v3268 = vperm.slane %v3188, %v3243
        %v3269 = vperm.slane %v3191, %v3243
        %v3270 = vperm.slane %v3194, %v3243
        %v3271 = vperm.slane %v3197, %v3243
        %v3272 = vperm.slane %v3200, %v3243
        %v3273 = vperm.slane %v3203, %v3243
        %v3274 = vperm.slane %v3206, %v3243
        %v3275 = vperm.slane %v3209, %v3243
        %vm3276 = vcmask 1041409
        %v3277 = vsel %vm3276, %v3245, %v3244
        %vm3278 = vcmask 1042434
        %v3279 = vsel %vm3278, %v3246, %v3277
        %vm3280 = vcmask 1043459
        %v3281 = vsel %vm3280, %v3247, %v3279
        %vm3282 = vcmask 1044484
        %v3283 = vsel %vm3282, %v3248, %v3281
        %vm3284 = vcmask 1045509
        %v3285 = vsel %vm3284, %v3249, %v3283
        %vm3286 = vcmask 1046534
        %v3287 = vsel %vm3286, %v3250, %v3285
        %vm3288 = vcmask 1047559
        %v3289 = vsel %vm3288, %v3251, %v3287
        %v3290 = vsel %vm3276, %v3253, %v3252
        %v3291 = vsel %vm3278, %v3254, %v3290
        %v3292 = vsel %vm3280, %v3255, %v3291
        %v3293 = vsel %vm3282, %v3256, %v3292
        %v3294 = vsel %vm3284, %v3257, %v3293
        %v3295 = vsel %vm3286, %v3258, %v3294
        %v3296 = vsel %vm3288, %v3259, %v3295
        %v3297 = vsel %vm3276, %v3261, %v3260
        %v3298 = vsel %vm3278, %v3262, %v3297
        %v3299 = vsel %vm3280, %v3263, %v3298
        %v3300 = vsel %vm3282, %v3264, %v3299
        %v3301 = vsel %vm3284, %v3265, %v3300
        %v3302 = vsel %vm3286, %v3266, %v3301
        %v3303 = vsel %vm3288, %v3267, %v3302
        %v3304 = vsel %vm3276, %v3269, %v3268
        %v3305 = vsel %vm3278, %v3270, %v3304
        %v3306 = vsel %vm3280, %v3271, %v3305
        %v3307 = vsel %vm3282, %v3272, %v3306
        %v3308 = vsel %vm3284, %v3273, %v3307
        %v3309 = vsel %vm3286, %v3274, %v3308
        %v3310 = vsel %vm3288, %v3275, %v3309
        %3315 = vxpose.xlu0.b32.start [1/16] %v3289, 128
        %3316 = vxpose.xlu0.b32.cont [2/16] %v3296, 128
        %3317 = vxpose.xlu0.b32.cont [3/16] %v3303, 128
        %3318 = vxpose.xlu0.b32.cont [4/16] %v3310, 128
        %3319 = vxpose.xlu0.b32.cont [5/16] 0.0, 128
        %3320 = vxpose.xlu0.b32.cont [6/16] 0.0, 128
        %3321 = vxpose.xlu0.b32.cont [7/16] 0.0, 128
        %3322 = vxpose.xlu0.b32.cont [8/16] 0.0, 128
        %3323 = vxpose.xlu0.b32.cont [9/16] 0.0, 128
        %3324 = vxpose.xlu0.b32.cont [10/16] 0.0, 128
        %3325 = vxpose.xlu0.b32.cont [11/16] 0.0, 128
        %3326 = vxpose.xlu0.b32.cont [12/16] 0.0, 128
        %3327 = vxpose.xlu0.b32.cont [13/16] 0.0, 128
        %3328 = vxpose.xlu0.b32.cont [14/16] 0.0, 128
        %3329 = vxpose.xlu0.b32.cont [15/16] 0.0, 128
        %3330 = vxpose.xlu0.b32.end [16/16] 0.0, 128
        %v3331 = vpop.trf.xlu0
        %v3332 = vpop.trf.xlu0
        %v3333 = vpop.trf.xlu0
        %v3334 = vpop.trf.xlu0
        %v3335 = vpop.trf.xlu0
        %v3336 = vpop.trf.xlu0
        %v3337 = vpop.trf.xlu0
        %v3338 = vpop.trf.xlu0
        %v3339 = vpop.trf.xlu0
        %v3340 = vpop.trf.xlu0
        %v3341 = vpop.trf.xlu0
        %v3342 = vpop.trf.xlu0
        %v3343 = vpop.trf.xlu0
        %v3344 = vpop.trf.xlu0
        %v3345 = vpop.trf.xlu0
        %v3346 = vpop.trf.xlu0
        %v3347 = vld [vmem:[%s19] sm:$0x1]
        %v3349 = vperm.slane %v3347, 0
        %v3351 = vadd.f32 %v3331, %v3349
        %v3352 = vmax.f32 %v3351, 0.0
        %v3353 = vld [vmem:[%s829] sm:$0x1]
        %v3354 = vld [vmem:[%s20] sm:$0x1]
        %v3356 = vperm.slane %v3354, 0
        %v3358 = vmul.f32 %v3352, %v3356
        %v3359 = vsel %vm916, %v3358, 0.0
        %3360 = vadd.xlane.f32.xlu0 %v3359
        %v3361 = vpop.xlane.xlu0 %3360
        %v3362 = vld [vmem:[%s21] sm:$0x1]
        %v3364 = vperm.slane %v3362, 0
        %v3366 = vmul.f32 %v3352, %v3364
        %v3368 = vsel %vm916, %v3366, 0
        %v3371 = vsel %vm916, %v3352, 0
        %3373 = vmatpush.xpose.msra.mxu0 0.0
        %3374 = vmatpush.xpose.msra.mxu0 0.0
        %3375 = vmatpush.xpose.msra.mxu0 0.0
        %3376 = vmatpush.xpose.msra.mxu0 0.0
        %3377 = vmatpush.xpose.msra.mxu0 0.0
        %3378 = vmatpush.xpose.msra.mxu0 0.0
        %3379 = vmatpush.xpose.msra.mxu0 0.0
        %3380 = vmatpush.xpose.msra.mxu0 0.0
        %3381 = vmatpush.xpose.msra.mxu0 0.0
        %3382 = vmatpush.xpose.msra.mxu0 0.0
        %3383 = vmatpush.xpose.msra.mxu0 0.0
        %3384 = vmatpush.xpose.msra.mxu0 0.0
        %3385 = vmatpush.xpose.msra.mxu0 0.0
        %3386 = vmatpush.xpose.msra.mxu0 0.0
        %3387 = vmatpush.xpose.msra.mxu0 0.0
        %3388 = vmatpush.xpose.msra.mxu0 %v3371
        %3389 = vmatmul.f32.gmra.mxu0 %v3368
        %v3390 = vpop.f32.mrf.mxu0
        %v3391 = vadd.f32 0.0, %v3390
        %3392 = vdwg.mxu0
        %v3393 = vadd.f32 %v3361, %v3391
        %v3394 = vsub.f32 1.0, %v3353
        %v3395 = vmul.f32 %v3394, 1e+30
        %v3397 = vperm.slane %v3395, 0
        %v3399 = vsub.f32 %v3393, %v3397
        %vm3400 = vcmask 64512
        %v3401 = vsel %vm3400, %v3399, -inf
        %3402 = vmax.xlane.f32.xlu0 %v3401
        %v3403 = vpop.xlane.xlu0 %3402
        %v3404 = vsub.f32 %v3399, %v3403
        %v3405 = vmul.f32 %v3404, 1.442695
        %v3406 = vpow.pop %v3405
        %v3407 = vsel %vm3400, %v3406, 0.0
        %3408 = vadd.xlane.f32.xlu0 %v3407
        %v3409 = vpop.xlane.xlu0 %3408
        %v3410 = vrcp.pop %v3409
        %v3411 = vmul.f32 %v3406, %v3410
        %v3413 = vsel %vm3400, %v3411, 0
        %3415 = vmatpush.msra.mxu0 0.0
        %3416 = vmatpush.msra.mxu0 0.0
        %3417 = vmatpush.msra.mxu0 0.0
        %3418 = vmatpush.msra.mxu0 0.0
        %3419 = vmatpush.msra.mxu0 0.0
        %3420 = vmatpush.msra.mxu0 0.0
        %3421 = vmatpush.msra.mxu0 0.0
        %3422 = vmatpush.msra.mxu0 0.0
        %3423 = vmatpush.msra.mxu0 0.0
        %3424 = vmatpush.msra.mxu0 0.0
        %3425 = vmatpush.msra.mxu0 0.0
        %3426 = vmatpush.msra.mxu0 0.0
        %3427 = vmatpush.msra.mxu0 0.0
        %3428 = vmatpush.msra.mxu0 0.0
        %3429 = vmatpush.msra.mxu0 0.0
        %3430 = vmatpush.msra.mxu0 %v3352
        %3431 = vmatmul.f32.gmra.mxu0 %v3413
        %v3432 = vpop.f32.mrf.mxu0
        %v3433 = vadd.f32 0.0, %v3432
        %3434 = vdwg.mxu0
        %v3435 = vld [vmem:[%s22] sm:$0xff]
        %v3436 = vld [vmem:[%s22 + $0x8] sm:$0xff]
        %v3437 = vld [vmem:[%s22 + $0x10] sm:$0xff]
        %v3438 = vld [vmem:[%s22 + $0x18] sm:$0xff]
        %v3439 = vld [vmem:[%s22 + $0x20] sm:$0xff]
        %v3440 = vld [vmem:[%s22 + $0x28] sm:$0xff]
        %v3441 = vld [vmem:[%s22 + $0x30] sm:$0xff]
        %v3442 = vld [vmem:[%s22 + $0x38] sm:$0xff]
        %v3444 = vsel %vm916, %v3433, 0
        %3446 = vmatpush.msra.mxu0 0.0
        %3447 = vmatpush.msra.mxu0 0.0
        %3448 = vmatpush.msra.mxu0 0.0
        %3449 = vmatpush.msra.mxu0 0.0
        %3450 = vmatpush.msra.mxu0 0.0
        %3451 = vmatpush.msra.mxu0 0.0
        %3452 = vmatpush.msra.mxu0 0.0
        %3453 = vmatpush.msra.mxu0 0.0
        %3454 = vmatpush.msra.mxu0 0.0
        %3455 = vmatpush.msra.mxu0 0.0
        %3456 = vmatpush.msra.mxu0 0.0
        %3457 = vmatpush.msra.mxu0 0.0
        %3458 = vmatpush.msra.mxu0 %v3442
        %3459 = vmatpush.msra.mxu0 %v3441
        %3460 = vmatpush.msra.mxu0 %v3440
        %3461 = vmatpush.msra.mxu0 %v3439
        %3462 = vmatmul.f32.gmra.mxu0 %v3444
        %v3463 = vpop.f32.mrf.mxu0
        %v3464 = vadd.f32 0.0, %v3463
        %3465 = vdwg.mxu0
        %3466 = vmatpush.msra.mxu0 0.0
        %3467 = vmatpush.msra.mxu0 0.0
        %3468 = vmatpush.msra.mxu0 0.0
        %3469 = vmatpush.msra.mxu0 0.0
        %3470 = vmatpush.msra.mxu0 0.0
        %3471 = vmatpush.msra.mxu0 0.0
        %3472 = vmatpush.msra.mxu0 0.0
        %3473 = vmatpush.msra.mxu0 0.0
        %3474 = vmatpush.msra.mxu0 0.0
        %3475 = vmatpush.msra.mxu0 0.0
        %3476 = vmatpush.msra.mxu0 0.0
        %3477 = vmatpush.msra.mxu0 0.0
        %3478 = vmatpush.msra.mxu0 %v3438
        %3479 = vmatpush.msra.mxu0 %v3437
        %3480 = vmatpush.msra.mxu0 %v3436
        %3481 = vmatpush.msra.mxu0 %v3435
        %3482 = vmatmul.f32.gmra.mxu0 %v3371
        %v3483 = vpop.f32.mrf.mxu0
        %v3484 = vadd.f32 %v3464, %v3483
        %3485 = vdwg.mxu0
        %v3486 = vld [vmem:[%s23] sm:$0x1]
        %v3488 = vperm.slane %v3486, 0
        %v3490 = vadd.f32 %v3484, %v3488
        %3491 = vst [vmem:[%s801] sm:$0xff] %v3490
        %s3492 = sand.u32 %s580, 1
        %s3493 = scalar_lea.sflag [#allocation3], %s3492
        %s3494 = sand.u32 %s580, 1
        %s3495 = smul.addr %s3494, 8
        %s3496 = scalar_lea.vmem [#allocation2], %s3495
        // Predicated region
        $region117: #{tpu_custom_call.1} parent=115 // pred_check
          %p3497 = pneg %p590
        $region118: #{tpu_custom_call.1} parent=115 // pred_check_branch
          %3499 = sbr.rel (%p3497) target = $region120
        $region119: #{tpu_custom_call.1} parent=115 // pred_region
          %3501 = vsyncadd %s3493, 0
          %s3502 = smul.addr %s38, 8
          %s3503 = scalar_lea.hbm %s24, %s3502
          %s3505 = sshll.u32 %s3496, 4
          %s3506 = int_to_ptr.vmem [resolvable:$true] %s3505
          %s3507 = sshll.u32 %s3503, 4
          %s3508 = int_to_ptr.hbm [resolvable:$true] %s3507
          %3510 = dma.vmem_to_hbm [thread:$0]  %s3506, 128, %s3508, %s3493
        $region120: #{tpu_custom_call.1} parent=115 // pred_fallthru
          _
      $region116: #{tpu_custom_call.1} parent=5 // pred_fallthru
        _
      %p3511 = scmp.le.s32.totalorder 2, %s33
      // Predicated region
      $region121: #{tpu_custom_call.1} parent=5 // pred_check
        %p3512 = pneg %p3511
      $region122: #{tpu_custom_call.1} parent=5 // pred_check_branch
        %3514 = sbr.rel (%p3512) target = $region124
      $region123: #{tpu_custom_call.1} parent=5 // pred_region
        %s3515 = ssub.s32 %s33, 2
        // Predicated region
        $region125: #{tpu_custom_call.1} parent=123 // pred_check
          %p3516 = pneg %p596
        $region126: #{tpu_custom_call.1} parent=123 // pred_check_branch
          %3518 = sbr.rel (%p3516) target = $region128
        $region127: #{tpu_custom_call.1} parent=123 // pred_region
          %s3519 = sand.u32 %s581, 1
          %s3520 = scalar_lea.sflag [#allocation3], %s3519
          %s3521 = sand.u32 %s581, 1
          %s3522 = smul.addr %s3521, 8
          %s3523 = scalar_lea.vmem [#allocation2], %s3522
          %3525 = dma.done %s3520, 128
        $region128: #{tpu_custom_call.1} parent=123 // pred_fallthru
          _
      $region124: #{tpu_custom_call.1} parent=5 // pred_fallthru
        _
    $region6: #{tpu_custom_call.1} parent=1 // loop_footer
      %s37 = sadd.s32 1, %s33
    $region7: #{tpu_custom_call.1} parent=1 // loop_footer_branch
      %32 = sbr.rel target = $region3
    $region8: #{tpu_custom_call.1} parent=1 // loop_exit
      _
    %3526 = vsyncpa [#allocation3], 1
    %s3527 = scalar_lea.sflag [#allocation3], 1
    %3528 = vsyncpa %s3527, 1

</llo_original>
